<compile_context>
chip_gen: v5e
topology: v5e:2x2
jax: 0.10.0
libtpu: 0.0.40
codegen_flags: <defaults>
</compile_context>

<pallas_src>
import math

import jax
import jax.numpy as jnp
from jax.experimental import pallas as pl
from jax.experimental.pallas import tpu as pltpu

NEG_SLOPE = 0.01          # F.leaky_relu default
NUM_LAYERS = 3
PAD = 128                 # lane-dense feature width for layer-1 padding

# (src_type, relation, dst_type) -> num_relations
EDGE_TYPES = {
    ("miner", "competes", "miner"): 5,
    ("validator", "validates", "full"): 1,
    ("storage", "serves", "light"): 1,
}
EDGE_LIST = tuple(EDGE_TYPES.keys())
NODE_TYPES = ("miner", "validator", "full", "storage", "light")
DST_TYPES = tuple(et[2] for et in EDGE_LIST)  # ("miner", "full", "light")


# ------------------------------ fused kernel ------------------------------- #
def _make_fused_kernel(num_rels, n_dst_per_edge):
    """Kernel computing all NUM_LAYERS layers over all edge types in one call."""

    def kernel(*refs):
        it = iter(refs)
        x_refs = {t: next(it) for t in NODE_TYPES}
        adj_refs = {et: next(it) for et in EDGE_LIST}
        layer_refs = []
        for _ in range(NUM_LAYERS):
            layer_refs.append([(next(it), next(it), next(it)) for _ in EDGE_LIST])
        out_refs = [next(it) for _ in DST_TYPES]

        # Activations (small, O(16x128) f32) live across layers; weights are
        # loaded only at the point of use so a single relation block is live.
        x = {t: x_refs[t][...] for t in NODE_TYPES}

        for per_edge in layer_refs:
            new_x = dict(x)  # non-destination node types keep their features
            for et, nrel, ndst, (w_ref, root_ref, b_ref) in zip(
                    EDGE_LIST, num_rels, n_dst_per_edge, per_edge):
                src_t, _, dst_t = et

                # 1) aggregate sources once per relation: [R*n_dst, d_src] (f32 acc)
                a = adj_refs[et][...]                       # [R*n_dst, n_src] bf16
                ax = jnp.dot(a, x[src_t].astype(jnp.bfloat16),
                             preferred_element_type=jnp.float32)

                # 2) reassociated relation fusion: one matmul with K = R*d_src
                if nrel == 1:
                    ax_cat = ax                              # [n_dst, d_src]
                else:
                    ax_cat = jnp.concatenate(
                        [ax[r * ndst:(r + 1) * ndst] for r in range(nrel)],
                        axis=-1)                             # [n_dst, R*d_src]
                y = jnp.dot(ax_cat.astype(jnp.bfloat16), w_ref[...],
                            preferred_element_type=jnp.float32)

                # 3) root transform + bias + leaky_relu (f32)
                y = y + jnp.dot(x[dst_t].astype(jnp.bfloat16), root_ref[...],
                                preferred_element_type=jnp.float32)
                y = y + b_ref[...]
                new_x[dst_t] = jnp.where(y >= 0.0, y, NEG_SLOPE * y)
            x = new_x

        for t, o_ref in zip(DST_TYPES, out_refs):
            o_ref[...] = x[t].astype(o_ref.dtype)

    return kernel


def hetero_rgcn_forward(x_pad_dict, adj_stk_dict, params_kernel):
    """x_pad_dict: lane-dense (padded) f32 node features per node type.
    adj_stk_dict: [R*n_dst, n_src] bf16 mean-normalized stacked adjacency.
    params_kernel: NUM_LAYERS dicts per edge type with bf16 'w' [R*d_src, H],
                   bf16 'root' [d_dst, H], f32 'bias' [1, H]."""
    num_rels = tuple(EDGE_TYPES[et] for et in EDGE_LIST)
    n_dst_per_edge = tuple(
        adj_stk_dict[et].shape[0] // EDGE_TYPES[et] for et in EDGE_LIST)
    hidden = params_kernel[0][EDGE_LIST[0]]["w"].shape[1]

    args = [x_pad_dict[t] for t in NODE_TYPES]
    args += [adj_stk_dict[et] for et in EDGE_LIST]
    for layer in params_kernel:
        for et in EDGE_LIST:
            p = layer[et]
            args += [p["w"], p["root"], p["bias"]]

    out_shapes = tuple(
        jax.ShapeDtypeStruct((x_pad_dict[t].shape[0], hidden), jnp.float32)
        for t in DST_TYPES)

    # Advisory cost estimate so XLA schedules surrounding ops around this call.
    flops = 0
    for layer in params_kernel:
        for et in EDGE_LIST:
            rn_dst, n_src = adj_stk_dict[et].shape
            k_w, h = layer[et]["w"].shape
            d_dst = layer[et]["root"].shape[0]
            n_dst = rn_dst // EDGE_TYPES[et]
            d_src = k_w // EDGE_TYPES[et]
            flops += 2 * rn_dst * n_src * d_src     # A_stk @ X_src
            flops += 2 * n_dst * k_w * h            # concat_cols(AX) @ W_stk
            flops += 2 * n_dst * d_dst * h          # X_dst @ W_root
    bytes_accessed = sum(int(a.size) * a.dtype.itemsize for a in args)
    bytes_accessed += sum(int(math.prod(s.shape)) * 4 for s in out_shapes)

    # grid=() -> single invocation; every operand is a full-array VMEM block.
    outs = pl.pallas_call(
        _make_fused_kernel(num_rels, n_dst_per_edge),
        out_shape=out_shapes,
        cost_estimate=pl.CostEstimate(
            flops=flops, transcendentals=0, bytes_accessed=bytes_accessed),
    )(*args)

    new_x = dict(x_pad_dict)
    for t, o in zip(DST_TYPES, outs):
        new_x[t] = o
    return new_x


# ----------------------------- host-side glue ------------------------------ #
def dense_rel_adj(edge_index, edge_type, num_relations, n_dst, n_src):
    """[R, N_dst, N_src] mean-normalized dense adjacency (RGCNConv aggr='mean')."""
    src, dst = edge_index[0], edge_index[1]
    a = jnp.zeros((num_relations, n_dst, n_src), jnp.float32)
    a = a.at[edge_type, dst, src].add(1.0)
    deg = a.sum(axis=-1, keepdims=True)
    return a / jnp.maximum(deg, 1.0)


def glorot(key, shape):
    fan_in, fan_out = shape[-2], shape[-1]
    limit = (6.0 / (fan_in + fan_out)) ** 0.5
    return jax.random.uniform(key, shape, jnp.float32, -limit, limit)


def init_params(key, in_dims, hidden):
    """Raw (reference) RGCNConv params: per layer/edge: w [R,d_src,H], root, bias."""
    params = []
    dims = dict(in_dims)
    for _ in range(NUM_LAYERS):
        layer = {}
        for et, num_rel in EDGE_TYPES.items():
            src_t, _, dst_t = et
            key, k1, k2 = jax.random.split(key, 3)
            layer[et] = {
                "w": glorot(k1, (num_rel, dims[src_t], hidden)),
                "root": glorot(k2, (dims[dst_t], hidden)),
                "bias": jnp.zeros((1, hidden), jnp.float32),
            }
        params.append(layer)
        for et in EDGE_TYPES:        # destination node types now carry hidden dim
            dims[et[2]] = hidden
    return params


def prep_kernel_params(params_raw, pad_to):
    """Zero-pad d_src/d_dst to lane-dense `pad_to`, stack relation weights to
    [R*pad_to, H] (row order matching concat_cols_r(A_r @ X_src)), cast bf16."""
    prepped = []
    for layer in params_raw:
        new_layer = {}
        for et, p in layer.items():
            w = p["w"]                                   # [R, d_src, H]
            num_rel, d_src, hidden = w.shape
            if d_src < pad_to:
                w = jnp.pad(w, ((0, 0), (0, pad_to - d_src), (0, 0)))
            root = p["root"]
            if root.shape[0] < pad_to:
                root = jnp.pad(root, ((0, pad_to - root.shape[0]), (0, 0)))
            new_layer[et] = {
                "w": w.reshape(num_rel * pad_to, hidden).astype(jnp.bfloat16),
                "root": root.astype(jnp.bfloat16),
                "bias": p["bias"],                       # f32
            }
        prepped.append(new_layer)
    return prepped


# --------------------------- pure-JAX reference ----------------------------- #
def ref_forward(x_dict, adj3_dict, params_raw):
    """Unfused f32 reference of the stated RGCNConv(mean)+leaky_relu semantics."""
    x = dict(x_dict)
    for layer in params_raw:
        new_x = dict(x)
        for et in EDGE_LIST:
            src_t, _, dst_t = et
            p = layer[et]
            y = x[dst_t] @ p["root"] + p["bias"]
            for r in range(p["w"].shape[0]):
                y = y + adj3_dict[et][r] @ (x[src_t] @ p["w"][r])
            new_x[dst_t] = jnp.where(y >= 0, y, NEG_SLOPE * y)
        x = new_x
    return x


# ---------------------------------- main ------------------------------------ #
if __name__ == "__main__":
    key = jax.random.PRNGKey(0)
    hidden = 128        # lane-dense; module default 256 is also a multiple of 128
    in_dim = 32
    n_nodes = {"miner": 16, "validator": 16, "full": 16, "storage": 8, "light": 8}
    in_dims = {t: in_dim for t in n_nodes}

    # Node features: raw (reference) + lane-dense zero-padded (kernel).
    x_raw, x_pad = {}, {}
    for t, n in n_nodes.items():
        key, k = jax.random.split(key)
        xr = jax.random.normal(k, (n, in_dim), jnp.float32)
        x_raw[t] = xr
        x_pad[t] = jnp.pad(xr, ((0, 0), (0, PAD - in_dim)))

    # Random edges per edge type -> dense mean-normalized adjacency per relation.
    edge_counts = {
        ("miner", "competes", "miner"): 40,
        ("validator", "validates", "full"): 24,
        ("storage", "serves", "light"): 16,
    }
    adj3, adj_stk = {}, {}
    for et, num_rel in EDGE_TYPES.items():
        src_t, _, dst_t = et
        num_edges = edge_counts[et]
        key, k1, k2, k3 = jax.random.split(key, 4)
        src = jax.random.randint(k1, (num_edges,), 0, n_nodes[src_t])
        dst = jax.random.randint(k2, (num_edges,), 0, n_nodes[dst_t])
        etype = jax.random.randint(k3, (num_edges,), 0, num_rel)
        a3 = dense_rel_adj(jnp.stack([src, dst]), etype, num_rel,
                           n_nodes[dst_t], n_nodes[src_t])
        adj3[et] = a3
        # [R, n_dst, n_src] -> [R*n_dst, n_src] (r-major), bf16 MXU input.
        adj_stk[et] = a3.reshape(num_rel * n_nodes[dst_t],
                                 n_nodes[src_t]).astype(jnp.bfloat16)

    params_raw = init_params(jax.random.PRNGKey(42), in_dims, hidden)
    params_kernel = prep_kernel_params(params_raw, PAD)

    out = hetero_rgcn_forward(x_pad, adj_stk, params_kernel)
    out = {k: jax.block_until_ready(v) for k, v in out.items()}

    ref = ref_forward(x_raw, adj3, params_raw)
    for t in DST_TYPES:
        assert out[t].shape == ref[t].shape, (t, out[t].shape, ref[t].shape)
        err = float(jnp.max(jnp.abs(out[t] - ref[t])))
        scale = float(jnp.max(jnp.abs(ref[t]))) + 1e-6
        # bf16 MXU inputs (f32 accumulation) drift ~1% vs the pure-f32 reference.
        assert err / scale < 5e-2, f"mismatch in {t}: max_err={err}, scale={scale}"

    print("KERNEL_OK")
</pallas_src>

<mosaic_0001>
module attributes {stable_mosaic.version = 11 : i64} {
  func.func @kernel(%arg0: memref<16x128xf32, #tpu.memory_space<vmem>>, %arg1: memref<16x128xf32, #tpu.memory_space<vmem>>, %arg2: memref<16x128xf32, #tpu.memory_space<vmem>>, %arg3: memref<8x128xf32, #tpu.memory_space<vmem>>, %arg4: memref<8x128xf32, #tpu.memory_space<vmem>>, %arg5: memref<80x16xbf16, #tpu.memory_space<vmem>>, %arg6: memref<16x16xbf16, #tpu.memory_space<vmem>>, %arg7: memref<8x8xbf16, #tpu.memory_space<vmem>>, %arg8: memref<640x128xbf16, #tpu.memory_space<vmem>>, %arg9: memref<128x128xbf16, #tpu.memory_space<vmem>>, %arg10: memref<1x128xf32, #tpu.memory_space<vmem>>, %arg11: memref<128x128xbf16, #tpu.memory_space<vmem>>, %arg12: memref<128x128xbf16, #tpu.memory_space<vmem>>, %arg13: memref<1x128xf32, #tpu.memory_space<vmem>>, %arg14: memref<128x128xbf16, #tpu.memory_space<vmem>>, %arg15: memref<128x128xbf16, #tpu.memory_space<vmem>>, %arg16: memref<1x128xf32, #tpu.memory_space<vmem>>, %arg17: memref<640x128xbf16, #tpu.memory_space<vmem>>, %arg18: memref<128x128xbf16, #tpu.memory_space<vmem>>, %arg19: memref<1x128xf32, #tpu.memory_space<vmem>>, %arg20: memref<128x128xbf16, #tpu.memory_space<vmem>>, %arg21: memref<128x128xbf16, #tpu.memory_space<vmem>>, %arg22: memref<1x128xf32, #tpu.memory_space<vmem>>, %arg23: memref<128x128xbf16, #tpu.memory_space<vmem>>, %arg24: memref<128x128xbf16, #tpu.memory_space<vmem>>, %arg25: memref<1x128xf32, #tpu.memory_space<vmem>>, %arg26: memref<640x128xbf16, #tpu.memory_space<vmem>>, %arg27: memref<128x128xbf16, #tpu.memory_space<vmem>>, %arg28: memref<1x128xf32, #tpu.memory_space<vmem>>, %arg29: memref<128x128xbf16, #tpu.memory_space<vmem>>, %arg30: memref<128x128xbf16, #tpu.memory_space<vmem>>, %arg31: memref<1x128xf32, #tpu.memory_space<vmem>>, %arg32: memref<128x128xbf16, #tpu.memory_space<vmem>>, %arg33: memref<128x128xbf16, #tpu.memory_space<vmem>>, %arg34: memref<1x128xf32, #tpu.memory_space<vmem>>, %arg35: memref<16x128xf32, #tpu.memory_space<vmem>>, %arg36: memref<16x128xf32, #tpu.memory_space<vmem>>, %arg37: memref<8x128xf32, #tpu.memory_space<vmem>>) attributes {dimension_semantics = [], scalar_prefetch = 0 : i64, scratch_operands = 0 : i64, tpu.core_type = #tpu.core_type<tc>} {
    %c0 = arith.constant 0 : index
    %c0_0 = arith.constant 0 : index
    %0 = vector.load %arg0[%c0, %c0_0] : memref<16x128xf32, #tpu.memory_space<vmem>>, vector<16x128xf32>
    %c0_1 = arith.constant 0 : index
    %c0_2 = arith.constant 0 : index
    %1 = vector.load %arg1[%c0_1, %c0_2] : memref<16x128xf32, #tpu.memory_space<vmem>>, vector<16x128xf32>
    %c0_3 = arith.constant 0 : index
    %c0_4 = arith.constant 0 : index
    %2 = vector.load %arg2[%c0_3, %c0_4] : memref<16x128xf32, #tpu.memory_space<vmem>>, vector<16x128xf32>
    %c0_5 = arith.constant 0 : index
    %c0_6 = arith.constant 0 : index
    %3 = vector.load %arg3[%c0_5, %c0_6] : memref<8x128xf32, #tpu.memory_space<vmem>>, vector<8x128xf32>
    %c0_7 = arith.constant 0 : index
    %c0_8 = arith.constant 0 : index
    %4 = vector.load %arg4[%c0_7, %c0_8] : memref<8x128xf32, #tpu.memory_space<vmem>>, vector<8x128xf32>
    %c0_9 = arith.constant 0 : index
    %c0_10 = arith.constant 0 : index
    %5 = vector.load %arg5[%c0_9, %c0_10] : memref<80x16xbf16, #tpu.memory_space<vmem>>, vector<80x16xbf16>
    %6 = arith.truncf %0 : vector<16x128xf32> to vector<16x128xbf16>
    %cst = arith.constant dense<0.000000e+00> : vector<80x128xf32>
    %7 = tpu.matmul %5, %6, %cst {dimension_numbers = #tpu.dot_dimension_numbers<[1], [0], [0], [1], [0, 0, 1, 1], [], []>} : vector<80x16xbf16>, vector<16x128xbf16>, vector<80x128xf32> -> vector<80x128xf32>
    %8 = vector.extract_strided_slice %7 {offsets = [0, 0], sizes = [16, 128], strides = [1, 1]} : vector<80x128xf32> to vector<16x128xf32>
    %9 = vector.extract_strided_slice %7 {offsets = [16, 0], sizes = [16, 128], strides = [1, 1]} : vector<80x128xf32> to vector<16x128xf32>
    %10 = vector.extract_strided_slice %7 {offsets = [32, 0], sizes = [16, 128], strides = [1, 1]} : vector<80x128xf32> to vector<16x128xf32>
    %11 = vector.extract_strided_slice %7 {offsets = [48, 0], sizes = [16, 128], strides = [1, 1]} : vector<80x128xf32> to vector<16x128xf32>
    %12 = vector.extract_strided_slice %7 {offsets = [64, 0], sizes = [16, 128], strides = [1, 1]} : vector<80x128xf32> to vector<16x128xf32>
    %13 = tpu.concatenate %8, %9, %10, %11, %12 in 1 : vector<16x128xf32>, vector<16x128xf32>, vector<16x128xf32>, vector<16x128xf32>, vector<16x128xf32> -> vector<16x640xf32>
    %14 = arith.truncf %13 : vector<16x640xf32> to vector<16x640xbf16>
    %c0_11 = arith.constant 0 : index
    %c0_12 = arith.constant 0 : index
    %15 = vector.load %arg8[%c0_11, %c0_12] : memref<640x128xbf16, #tpu.memory_space<vmem>>, vector<640x128xbf16>
    %cst_13 = arith.constant dense<0.000000e+00> : vector<16x128xf32>
    %16 = tpu.matmul %14, %15, %cst_13 {dimension_numbers = #tpu.dot_dimension_numbers<[1], [0], [0], [1], [0, 0, 1, 1], [], []>} : vector<16x640xbf16>, vector<640x128xbf16>, vector<16x128xf32> -> vector<16x128xf32>
    %17 = arith.truncf %0 : vector<16x128xf32> to vector<16x128xbf16>
    %c0_14 = arith.constant 0 : index
    %c0_15 = arith.constant 0 : index
    %18 = vector.load %arg9[%c0_14, %c0_15] : memref<128x128xbf16, #tpu.memory_space<vmem>>, vector<128x128xbf16>
    %cst_16 = arith.constant dense<0.000000e+00> : vector<16x128xf32>
    %19 = tpu.matmul %17, %18, %cst_16 {dimension_numbers = #tpu.dot_dimension_numbers<[1], [0], [0], [1], [0, 0, 1, 1], [], []>} : vector<16x128xbf16>, vector<128x128xbf16>, vector<16x128xf32> -> vector<16x128xf32>
    %20 = arith.addf %16, %19 : vector<16x128xf32>
    %c0_17 = arith.constant 0 : index
    %c0_18 = arith.constant 0 : index
    %21 = vector.load %arg10[%c0_17, %c0_18] : memref<1x128xf32, #tpu.memory_space<vmem>>, vector<1x128xf32>
    %22 = vector.broadcast %21 : vector<1x128xf32> to vector<16x128xf32>
    %23 = arith.addf %20, %22 : vector<16x128xf32>
    %cst_19 = arith.constant 0.000000e+00 : f32
    %24 = vector.broadcast %cst_19 : f32 to vector<16x128xf32>
    %25 = arith.cmpf oge, %23, %24 : vector<16x128xf32>
    %cst_20 = arith.constant 0.00999999977 : f32
    %26 = vector.broadcast %cst_20 : f32 to vector<16x128xf32>
    %27 = arith.mulf %26, %23 : vector<16x128xf32>
    %28 = arith.select %25, %23, %27 : vector<16x128xi1>, vector<16x128xf32>
    %c0_21 = arith.constant 0 : index
    %c0_22 = arith.constant 0 : index
    %29 = vector.load %arg6[%c0_21, %c0_22] : memref<16x16xbf16, #tpu.memory_space<vmem>>, vector<16x16xbf16>
    %30 = arith.truncf %1 : vector<16x128xf32> to vector<16x128xbf16>
    %cst_23 = arith.constant dense<0.000000e+00> : vector<16x128xf32>
    %31 = tpu.matmul %29, %30, %cst_23 {dimension_numbers = #tpu.dot_dimension_numbers<[1], [0], [0], [1], [0, 0, 1, 1], [], []>} : vector<16x16xbf16>, vector<16x128xbf16>, vector<16x128xf32> -> vector<16x128xf32>
    %32 = arith.truncf %31 : vector<16x128xf32> to vector<16x128xbf16>
    %c0_24 = arith.constant 0 : index
    %c0_25 = arith.constant 0 : index
    %33 = vector.load %arg11[%c0_24, %c0_25] : memref<128x128xbf16, #tpu.memory_space<vmem>>, vector<128x128xbf16>
    %cst_26 = arith.constant dense<0.000000e+00> : vector<16x128xf32>
    %34 = tpu.matmul %32, %33, %cst_26 {dimension_numbers = #tpu.dot_dimension_numbers<[1], [0], [0], [1], [0, 0, 1, 1], [], []>} : vector<16x128xbf16>, vector<128x128xbf16>, vector<16x128xf32> -> vector<16x128xf32>
    %35 = arith.truncf %2 : vector<16x128xf32> to vector<16x128xbf16>
    %c0_27 = arith.constant 0 : index
    %c0_28 = arith.constant 0 : index
    %36 = vector.load %arg12[%c0_27, %c0_28] : memref<128x128xbf16, #tpu.memory_space<vmem>>, vector<128x128xbf16>
    %cst_29 = arith.constant dense<0.000000e+00> : vector<16x128xf32>
    %37 = tpu.matmul %35, %36, %cst_29 {dimension_numbers = #tpu.dot_dimension_numbers<[1], [0], [0], [1], [0, 0, 1, 1], [], []>} : vector<16x128xbf16>, vector<128x128xbf16>, vector<16x128xf32> -> vector<16x128xf32>
    %38 = arith.addf %34, %37 : vector<16x128xf32>
    %c0_30 = arith.constant 0 : index
    %c0_31 = arith.constant 0 : index
    %39 = vector.load %arg13[%c0_30, %c0_31] : memref<1x128xf32, #tpu.memory_space<vmem>>, vector<1x128xf32>
    %40 = vector.broadcast %39 : vector<1x128xf32> to vector<16x128xf32>
    %41 = arith.addf %38, %40 : vector<16x128xf32>
    %cst_32 = arith.constant 0.000000e+00 : f32
    %42 = vector.broadcast %cst_32 : f32 to vector<16x128xf32>
    %43 = arith.cmpf oge, %41, %42 : vector<16x128xf32>
    %cst_33 = arith.constant 0.00999999977 : f32
    %44 = vector.broadcast %cst_33 : f32 to vector<16x128xf32>
    %45 = arith.mulf %44, %41 : vector<16x128xf32>
    %46 = arith.select %43, %41, %45 : vector<16x128xi1>, vector<16x128xf32>
    %c0_34 = arith.constant 0 : index
    %c0_35 = arith.constant 0 : index
    %47 = vector.load %arg7[%c0_34, %c0_35] : memref<8x8xbf16, #tpu.memory_space<vmem>>, vector<8x8xbf16>
    %48 = arith.truncf %3 : vector<8x128xf32> to vector<8x128xbf16>
    %cst_36 = arith.constant dense<0.000000e+00> : vector<8x128xf32>
    %49 = tpu.matmul %47, %48, %cst_36 {dimension_numbers = #tpu.dot_dimension_numbers<[1], [0], [0], [1], [0, 0, 1, 1], [], []>} : vector<8x8xbf16>, vector<8x128xbf16>, vector<8x128xf32> -> vector<8x128xf32>
    %50 = arith.truncf %49 : vector<8x128xf32> to vector<8x128xbf16>
    %c0_37 = arith.constant 0 : index
    %c0_38 = arith.constant 0 : index
    %51 = vector.load %arg14[%c0_37, %c0_38] : memref<128x128xbf16, #tpu.memory_space<vmem>>, vector<128x128xbf16>
    %cst_39 = arith.constant dense<0.000000e+00> : vector<8x128xf32>
    %52 = tpu.matmul %50, %51, %cst_39 {dimension_numbers = #tpu.dot_dimension_numbers<[1], [0], [0], [1], [0, 0, 1, 1], [], []>} : vector<8x128xbf16>, vector<128x128xbf16>, vector<8x128xf32> -> vector<8x128xf32>
    %53 = arith.truncf %4 : vector<8x128xf32> to vector<8x128xbf16>
    %c0_40 = arith.constant 0 : index
    %c0_41 = arith.constant 0 : index
    %54 = vector.load %arg15[%c0_40, %c0_41] : memref<128x128xbf16, #tpu.memory_space<vmem>>, vector<128x128xbf16>
    %cst_42 = arith.constant dense<0.000000e+00> : vector<8x128xf32>
    %55 = tpu.matmul %53, %54, %cst_42 {dimension_numbers = #tpu.dot_dimension_numbers<[1], [0], [0], [1], [0, 0, 1, 1], [], []>} : vector<8x128xbf16>, vector<128x128xbf16>, vector<8x128xf32> -> vector<8x128xf32>
    %56 = arith.addf %52, %55 : vector<8x128xf32>
    %c0_43 = arith.constant 0 : index
    %c0_44 = arith.constant 0 : index
    %57 = vector.load %arg16[%c0_43, %c0_44] : memref<1x128xf32, #tpu.memory_space<vmem>>, vector<1x128xf32>
    %58 = vector.broadcast %57 : vector<1x128xf32> to vector<8x128xf32>
    %59 = arith.addf %56, %58 : vector<8x128xf32>
    %cst_45 = arith.constant 0.000000e+00 : f32
    %60 = vector.broadcast %cst_45 : f32 to vector<8x128xf32>
    %61 = arith.cmpf oge, %59, %60 : vector<8x128xf32>
    %cst_46 = arith.constant 0.00999999977 : f32
    %62 = vector.broadcast %cst_46 : f32 to vector<8x128xf32>
    %63 = arith.mulf %62, %59 : vector<8x128xf32>
    %64 = arith.select %61, %59, %63 : vector<8x128xi1>, vector<8x128xf32>
    %c0_47 = arith.constant 0 : index
    %c0_48 = arith.constant 0 : index
    %65 = vector.load %arg5[%c0_47, %c0_48] : memref<80x16xbf16, #tpu.memory_space<vmem>>, vector<80x16xbf16>
    %66 = arith.truncf %28 : vector<16x128xf32> to vector<16x128xbf16>
    %cst_49 = arith.constant dense<0.000000e+00> : vector<80x128xf32>
    %67 = tpu.matmul %65, %66, %cst_49 {dimension_numbers = #tpu.dot_dimension_numbers<[1], [0], [0], [1], [0, 0, 1, 1], [], []>} : vector<80x16xbf16>, vector<16x128xbf16>, vector<80x128xf32> -> vector<80x128xf32>
    %68 = vector.extract_strided_slice %67 {offsets = [0, 0], sizes = [16, 128], strides = [1, 1]} : vector<80x128xf32> to vector<16x128xf32>
    %69 = vector.extract_strided_slice %67 {offsets = [16, 0], sizes = [16, 128], strides = [1, 1]} : vector<80x128xf32> to vector<16x128xf32>
    %70 = vector.extract_strided_slice %67 {offsets = [32, 0], sizes = [16, 128], strides = [1, 1]} : vector<80x128xf32> to vector<16x128xf32>
    %71 = vector.extract_strided_slice %67 {offsets = [48, 0], sizes = [16, 128], strides = [1, 1]} : vector<80x128xf32> to vector<16x128xf32>
    %72 = vector.extract_strided_slice %67 {offsets = [64, 0], sizes = [16, 128], strides = [1, 1]} : vector<80x128xf32> to vector<16x128xf32>
    %73 = tpu.concatenate %68, %69, %70, %71, %72 in 1 : vector<16x128xf32>, vector<16x128xf32>, vector<16x128xf32>, vector<16x128xf32>, vector<16x128xf32> -> vector<16x640xf32>
    %74 = arith.truncf %73 : vector<16x640xf32> to vector<16x640xbf16>
    %c0_50 = arith.constant 0 : index
    %c0_51 = arith.constant 0 : index
    %75 = vector.load %arg17[%c0_50, %c0_51] : memref<640x128xbf16, #tpu.memory_space<vmem>>, vector<640x128xbf16>
    %cst_52 = arith.constant dense<0.000000e+00> : vector<16x128xf32>
    %76 = tpu.matmul %74, %75, %cst_52 {dimension_numbers = #tpu.dot_dimension_numbers<[1], [0], [0], [1], [0, 0, 1, 1], [], []>} : vector<16x640xbf16>, vector<640x128xbf16>, vector<16x128xf32> -> vector<16x128xf32>
    %77 = arith.truncf %28 : vector<16x128xf32> to vector<16x128xbf16>
    %c0_53 = arith.constant 0 : index
    %c0_54 = arith.constant 0 : index
    %78 = vector.load %arg18[%c0_53, %c0_54] : memref<128x128xbf16, #tpu.memory_space<vmem>>, vector<128x128xbf16>
    %cst_55 = arith.constant dense<0.000000e+00> : vector<16x128xf32>
    %79 = tpu.matmul %77, %78, %cst_55 {dimension_numbers = #tpu.dot_dimension_numbers<[1], [0], [0], [1], [0, 0, 1, 1], [], []>} : vector<16x128xbf16>, vector<128x128xbf16>, vector<16x128xf32> -> vector<16x128xf32>
    %80 = arith.addf %76, %79 : vector<16x128xf32>
    %c0_56 = arith.constant 0 : index
    %c0_57 = arith.constant 0 : index
    %81 = vector.load %arg19[%c0_56, %c0_57] : memref<1x128xf32, #tpu.memory_space<vmem>>, vector<1x128xf32>
    %82 = vector.broadcast %81 : vector<1x128xf32> to vector<16x128xf32>
    %83 = arith.addf %80, %82 : vector<16x128xf32>
    %cst_58 = arith.constant 0.000000e+00 : f32
    %84 = vector.broadcast %cst_58 : f32 to vector<16x128xf32>
    %85 = arith.cmpf oge, %83, %84 : vector<16x128xf32>
    %cst_59 = arith.constant 0.00999999977 : f32
    %86 = vector.broadcast %cst_59 : f32 to vector<16x128xf32>
    %87 = arith.mulf %86, %83 : vector<16x128xf32>
    %88 = arith.select %85, %83, %87 : vector<16x128xi1>, vector<16x128xf32>
    %c0_60 = arith.constant 0 : index
    %c0_61 = arith.constant 0 : index
    %89 = vector.load %arg6[%c0_60, %c0_61] : memref<16x16xbf16, #tpu.memory_space<vmem>>, vector<16x16xbf16>
    %90 = arith.truncf %1 : vector<16x128xf32> to vector<16x128xbf16>
    %cst_62 = arith.constant dense<0.000000e+00> : vector<16x128xf32>
    %91 = tpu.matmul %89, %90, %cst_62 {dimension_numbers = #tpu.dot_dimension_numbers<[1], [0], [0], [1], [0, 0, 1, 1], [], []>} : vector<16x16xbf16>, vector<16x128xbf16>, vector<16x128xf32> -> vector<16x128xf32>
    %92 = arith.truncf %91 : vector<16x128xf32> to vector<16x128xbf16>
    %c0_63 = arith.constant 0 : index
    %c0_64 = arith.constant 0 : index
    %93 = vector.load %arg20[%c0_63, %c0_64] : memref<128x128xbf16, #tpu.memory_space<vmem>>, vector<128x128xbf16>
    %cst_65 = arith.constant dense<0.000000e+00> : vector<16x128xf32>
    %94 = tpu.matmul %92, %93, %cst_65 {dimension_numbers = #tpu.dot_dimension_numbers<[1], [0], [0], [1], [0, 0, 1, 1], [], []>} : vector<16x128xbf16>, vector<128x128xbf16>, vector<16x128xf32> -> vector<16x128xf32>
    %95 = arith.truncf %46 : vector<16x128xf32> to vector<16x128xbf16>
    %c0_66 = arith.constant 0 : index
    %c0_67 = arith.constant 0 : index
    %96 = vector.load %arg21[%c0_66, %c0_67] : memref<128x128xbf16, #tpu.memory_space<vmem>>, vector<128x128xbf16>
    %cst_68 = arith.constant dense<0.000000e+00> : vector<16x128xf32>
    %97 = tpu.matmul %95, %96, %cst_68 {dimension_numbers = #tpu.dot_dimension_numbers<[1], [0], [0], [1], [0, 0, 1, 1], [], []>} : vector<16x128xbf16>, vector<128x128xbf16>, vector<16x128xf32> -> vector<16x128xf32>
    %98 = arith.addf %94, %97 : vector<16x128xf32>
    %c0_69 = arith.constant 0 : index
    %c0_70 = arith.constant 0 : index
    %99 = vector.load %arg22[%c0_69, %c0_70] : memref<1x128xf32, #tpu.memory_space<vmem>>, vector<1x128xf32>
    %100 = vector.broadcast %99 : vector<1x128xf32> to vector<16x128xf32>
    %101 = arith.addf %98, %100 : vector<16x128xf32>
    %cst_71 = arith.constant 0.000000e+00 : f32
    %102 = vector.broadcast %cst_71 : f32 to vector<16x128xf32>
    %103 = arith.cmpf oge, %101, %102 : vector<16x128xf32>
    %cst_72 = arith.constant 0.00999999977 : f32
    %104 = vector.broadcast %cst_72 : f32 to vector<16x128xf32>
    %105 = arith.mulf %104, %101 : vector<16x128xf32>
    %106 = arith.select %103, %101, %105 : vector<16x128xi1>, vector<16x128xf32>
    %c0_73 = arith.constant 0 : index
    %c0_74 = arith.constant 0 : index
    %107 = vector.load %arg7[%c0_73, %c0_74] : memref<8x8xbf16, #tpu.memory_space<vmem>>, vector<8x8xbf16>
    %108 = arith.truncf %3 : vector<8x128xf32> to vector<8x128xbf16>
    %cst_75 = arith.constant dense<0.000000e+00> : vector<8x128xf32>
    %109 = tpu.matmul %107, %108, %cst_75 {dimension_numbers = #tpu.dot_dimension_numbers<[1], [0], [0], [1], [0, 0, 1, 1], [], []>} : vector<8x8xbf16>, vector<8x128xbf16>, vector<8x128xf32> -> vector<8x128xf32>
    %110 = arith.truncf %109 : vector<8x128xf32> to vector<8x128xbf16>
    %c0_76 = arith.constant 0 : index
    %c0_77 = arith.constant 0 : index
    %111 = vector.load %arg23[%c0_76, %c0_77] : memref<128x128xbf16, #tpu.memory_space<vmem>>, vector<128x128xbf16>
    %cst_78 = arith.constant dense<0.000000e+00> : vector<8x128xf32>
    %112 = tpu.matmul %110, %111, %cst_78 {dimension_numbers = #tpu.dot_dimension_numbers<[1], [0], [0], [1], [0, 0, 1, 1], [], []>} : vector<8x128xbf16>, vector<128x128xbf16>, vector<8x128xf32> -> vector<8x128xf32>
    %113 = arith.truncf %64 : vector<8x128xf32> to vector<8x128xbf16>
    %c0_79 = arith.constant 0 : index
    %c0_80 = arith.constant 0 : index
    %114 = vector.load %arg24[%c0_79, %c0_80] : memref<128x128xbf16, #tpu.memory_space<vmem>>, vector<128x128xbf16>
    %cst_81 = arith.constant dense<0.000000e+00> : vector<8x128xf32>
    %115 = tpu.matmul %113, %114, %cst_81 {dimension_numbers = #tpu.dot_dimension_numbers<[1], [0], [0], [1], [0, 0, 1, 1], [], []>} : vector<8x128xbf16>, vector<128x128xbf16>, vector<8x128xf32> -> vector<8x128xf32>
    %116 = arith.addf %112, %115 : vector<8x128xf32>
    %c0_82 = arith.constant 0 : index
    %c0_83 = arith.constant 0 : index
    %117 = vector.load %arg25[%c0_82, %c0_83] : memref<1x128xf32, #tpu.memory_space<vmem>>, vector<1x128xf32>
    %118 = vector.broadcast %117 : vector<1x128xf32> to vector<8x128xf32>
    %119 = arith.addf %116, %118 : vector<8x128xf32>
    %cst_84 = arith.constant 0.000000e+00 : f32
    %120 = vector.broadcast %cst_84 : f32 to vector<8x128xf32>
    %121 = arith.cmpf oge, %119, %120 : vector<8x128xf32>
    %cst_85 = arith.constant 0.00999999977 : f32
    %122 = vector.broadcast %cst_85 : f32 to vector<8x128xf32>
    %123 = arith.mulf %122, %119 : vector<8x128xf32>
    %124 = arith.select %121, %119, %123 : vector<8x128xi1>, vector<8x128xf32>
    %c0_86 = arith.constant 0 : index
    %c0_87 = arith.constant 0 : index
    %125 = vector.load %arg5[%c0_86, %c0_87] : memref<80x16xbf16, #tpu.memory_space<vmem>>, vector<80x16xbf16>
    %126 = arith.truncf %88 : vector<16x128xf32> to vector<16x128xbf16>
    %cst_88 = arith.constant dense<0.000000e+00> : vector<80x128xf32>
    %127 = tpu.matmul %125, %126, %cst_88 {dimension_numbers = #tpu.dot_dimension_numbers<[1], [0], [0], [1], [0, 0, 1, 1], [], []>} : vector<80x16xbf16>, vector<16x128xbf16>, vector<80x128xf32> -> vector<80x128xf32>
    %128 = vector.extract_strided_slice %127 {offsets = [0, 0], sizes = [16, 128], strides = [1, 1]} : vector<80x128xf32> to vector<16x128xf32>
    %129 = vector.extract_strided_slice %127 {offsets = [16, 0], sizes = [16, 128], strides = [1, 1]} : vector<80x128xf32> to vector<16x128xf32>
    %130 = vector.extract_strided_slice %127 {offsets = [32, 0], sizes = [16, 128], strides = [1, 1]} : vector<80x128xf32> to vector<16x128xf32>
    %131 = vector.extract_strided_slice %127 {offsets = [48, 0], sizes = [16, 128], strides = [1, 1]} : vector<80x128xf32> to vector<16x128xf32>
    %132 = vector.extract_strided_slice %127 {offsets = [64, 0], sizes = [16, 128], strides = [1, 1]} : vector<80x128xf32> to vector<16x128xf32>
    %133 = tpu.concatenate %128, %129, %130, %131, %132 in 1 : vector<16x128xf32>, vector<16x128xf32>, vector<16x128xf32>, vector<16x128xf32>, vector<16x128xf32> -> vector<16x640xf32>
    %134 = arith.truncf %133 : vector<16x640xf32> to vector<16x640xbf16>
    %c0_89 = arith.constant 0 : index
    %c0_90 = arith.constant 0 : index
    %135 = vector.load %arg26[%c0_89, %c0_90] : memref<640x128xbf16, #tpu.memory_space<vmem>>, vector<640x128xbf16>
    %cst_91 = arith.constant dense<0.000000e+00> : vector<16x128xf32>
    %136 = tpu.matmul %134, %135, %cst_91 {dimension_numbers = #tpu.dot_dimension_numbers<[1], [0], [0], [1], [0, 0, 1, 1], [], []>} : vector<16x640xbf16>, vector<640x128xbf16>, vector<16x128xf32> -> vector<16x128xf32>
    %137 = arith.truncf %88 : vector<16x128xf32> to vector<16x128xbf16>
    %c0_92 = arith.constant 0 : index
    %c0_93 = arith.constant 0 : index
    %138 = vector.load %arg27[%c0_92, %c0_93] : memref<128x128xbf16, #tpu.memory_space<vmem>>, vector<128x128xbf16>
    %cst_94 = arith.constant dense<0.000000e+00> : vector<16x128xf32>
    %139 = tpu.matmul %137, %138, %cst_94 {dimension_numbers = #tpu.dot_dimension_numbers<[1], [0], [0], [1], [0, 0, 1, 1], [], []>} : vector<16x128xbf16>, vector<128x128xbf16>, vector<16x128xf32> -> vector<16x128xf32>
    %140 = arith.addf %136, %139 : vector<16x128xf32>
    %c0_95 = arith.constant 0 : index
    %c0_96 = arith.constant 0 : index
    %141 = vector.load %arg28[%c0_95, %c0_96] : memref<1x128xf32, #tpu.memory_space<vmem>>, vector<1x128xf32>
    %142 = vector.broadcast %141 : vector<1x128xf32> to vector<16x128xf32>
    %143 = arith.addf %140, %142 : vector<16x128xf32>
    %cst_97 = arith.constant 0.000000e+00 : f32
    %144 = vector.broadcast %cst_97 : f32 to vector<16x128xf32>
    %145 = arith.cmpf oge, %143, %144 : vector<16x128xf32>
    %cst_98 = arith.constant 0.00999999977 : f32
    %146 = vector.broadcast %cst_98 : f32 to vector<16x128xf32>
    %147 = arith.mulf %146, %143 : vector<16x128xf32>
    %148 = arith.select %145, %143, %147 : vector<16x128xi1>, vector<16x128xf32>
    %c0_99 = arith.constant 0 : index
    %c0_100 = arith.constant 0 : index
    %149 = vector.load %arg6[%c0_99, %c0_100] : memref<16x16xbf16, #tpu.memory_space<vmem>>, vector<16x16xbf16>
    %150 = arith.truncf %1 : vector<16x128xf32> to vector<16x128xbf16>
    %cst_101 = arith.constant dense<0.000000e+00> : vector<16x128xf32>
    %151 = tpu.matmul %149, %150, %cst_101 {dimension_numbers = #tpu.dot_dimension_numbers<[1], [0], [0], [1], [0, 0, 1, 1], [], []>} : vector<16x16xbf16>, vector<16x128xbf16>, vector<16x128xf32> -> vector<16x128xf32>
    %152 = arith.truncf %151 : vector<16x128xf32> to vector<16x128xbf16>
    %c0_102 = arith.constant 0 : index
    %c0_103 = arith.constant 0 : index
    %153 = vector.load %arg29[%c0_102, %c0_103] : memref<128x128xbf16, #tpu.memory_space<vmem>>, vector<128x128xbf16>
    %cst_104 = arith.constant dense<0.000000e+00> : vector<16x128xf32>
    %154 = tpu.matmul %152, %153, %cst_104 {dimension_numbers = #tpu.dot_dimension_numbers<[1], [0], [0], [1], [0, 0, 1, 1], [], []>} : vector<16x128xbf16>, vector<128x128xbf16>, vector<16x128xf32> -> vector<16x128xf32>
    %155 = arith.truncf %106 : vector<16x128xf32> to vector<16x128xbf16>
    %c0_105 = arith.constant 0 : index
    %c0_106 = arith.constant 0 : index
    %156 = vector.load %arg30[%c0_105, %c0_106] : memref<128x128xbf16, #tpu.memory_space<vmem>>, vector<128x128xbf16>
    %cst_107 = arith.constant dense<0.000000e+00> : vector<16x128xf32>
    %157 = tpu.matmul %155, %156, %cst_107 {dimension_numbers = #tpu.dot_dimension_numbers<[1], [0], [0], [1], [0, 0, 1, 1], [], []>} : vector<16x128xbf16>, vector<128x128xbf16>, vector<16x128xf32> -> vector<16x128xf32>
    %158 = arith.addf %154, %157 : vector<16x128xf32>
    %c0_108 = arith.constant 0 : index
    %c0_109 = arith.constant 0 : index
    %159 = vector.load %arg31[%c0_108, %c0_109] : memref<1x128xf32, #tpu.memory_space<vmem>>, vector<1x128xf32>
    %160 = vector.broadcast %159 : vector<1x128xf32> to vector<16x128xf32>
    %161 = arith.addf %158, %160 : vector<16x128xf32>
    %cst_110 = arith.constant 0.000000e+00 : f32
    %162 = vector.broadcast %cst_110 : f32 to vector<16x128xf32>
    %163 = arith.cmpf oge, %161, %162 : vector<16x128xf32>
    %cst_111 = arith.constant 0.00999999977 : f32
    %164 = vector.broadcast %cst_111 : f32 to vector<16x128xf32>
    %165 = arith.mulf %164, %161 : vector<16x128xf32>
    %166 = arith.select %163, %161, %165 : vector<16x128xi1>, vector<16x128xf32>
    %c0_112 = arith.constant 0 : index
    %c0_113 = arith.constant 0 : index
    %167 = vector.load %arg7[%c0_112, %c0_113] : memref<8x8xbf16, #tpu.memory_space<vmem>>, vector<8x8xbf16>
    %168 = arith.truncf %3 : vector<8x128xf32> to vector<8x128xbf16>
    %cst_114 = arith.constant dense<0.000000e+00> : vector<8x128xf32>
    %169 = tpu.matmul %167, %168, %cst_114 {dimension_numbers = #tpu.dot_dimension_numbers<[1], [0], [0], [1], [0, 0, 1, 1], [], []>} : vector<8x8xbf16>, vector<8x128xbf16>, vector<8x128xf32> -> vector<8x128xf32>
    %170 = arith.truncf %169 : vector<8x128xf32> to vector<8x128xbf16>
    %c0_115 = arith.constant 0 : index
    %c0_116 = arith.constant 0 : index
    %171 = vector.load %arg32[%c0_115, %c0_116] : memref<128x128xbf16, #tpu.memory_space<vmem>>, vector<128x128xbf16>
    %cst_117 = arith.constant dense<0.000000e+00> : vector<8x128xf32>
    %172 = tpu.matmul %170, %171, %cst_117 {dimension_numbers = #tpu.dot_dimension_numbers<[1], [0], [0], [1], [0, 0, 1, 1], [], []>} : vector<8x128xbf16>, vector<128x128xbf16>, vector<8x128xf32> -> vector<8x128xf32>
    %173 = arith.truncf %124 : vector<8x128xf32> to vector<8x128xbf16>
    %c0_118 = arith.constant 0 : index
    %c0_119 = arith.constant 0 : index
    %174 = vector.load %arg33[%c0_118, %c0_119] : memref<128x128xbf16, #tpu.memory_space<vmem>>, vector<128x128xbf16>
    %cst_120 = arith.constant dense<0.000000e+00> : vector<8x128xf32>
    %175 = tpu.matmul %173, %174, %cst_120 {dimension_numbers = #tpu.dot_dimension_numbers<[1], [0], [0], [1], [0, 0, 1, 1], [], []>} : vector<8x128xbf16>, vector<128x128xbf16>, vector<8x128xf32> -> vector<8x128xf32>
    %176 = arith.addf %172, %175 : vector<8x128xf32>
    %c0_121 = arith.constant 0 : index
    %c0_122 = arith.constant 0 : index
    %177 = vector.load %arg34[%c0_121, %c0_122] : memref<1x128xf32, #tpu.memory_space<vmem>>, vector<1x128xf32>
    %178 = vector.broadcast %177 : vector<1x128xf32> to vector<8x128xf32>
    %179 = arith.addf %176, %178 : vector<8x128xf32>
    %cst_123 = arith.constant 0.000000e+00 : f32
    %180 = vector.broadcast %cst_123 : f32 to vector<8x128xf32>
    %181 = arith.cmpf oge, %179, %180 : vector<8x128xf32>
    %cst_124 = arith.constant 0.00999999977 : f32
    %182 = vector.broadcast %cst_124 : f32 to vector<8x128xf32>
    %183 = arith.mulf %182, %179 : vector<8x128xf32>
    %184 = arith.select %181, %179, %183 : vector<8x128xi1>, vector<8x128xf32>
    %c0_125 = arith.constant 0 : index
    %c0_126 = arith.constant 0 : index
    %185 = vector.load %arg35[%c0_125, %c0_126] : memref<16x128xf32, #tpu.memory_space<vmem>>, vector<16x128xf32>
    tpu.vector_store %arg35[%c0_125, %c0_126], %148 {strides = array<i32>} : memref<16x128xf32, #tpu.memory_space<vmem>>, vector<16x128xf32>,
    %c0_127 = arith.constant 0 : index
    %c0_128 = arith.constant 0 : index
    %186 = vector.load %arg36[%c0_127, %c0_128] : memref<16x128xf32, #tpu.memory_space<vmem>>, vector<16x128xf32>
    tpu.vector_store %arg36[%c0_127, %c0_128], %166 {strides = array<i32>} : memref<16x128xf32, #tpu.memory_space<vmem>>, vector<16x128xf32>,
    %c0_129 = arith.constant 0 : index
    %c0_130 = arith.constant 0 : index
    %187 = vector.load %arg37[%c0_129, %c0_130] : memref<8x128xf32, #tpu.memory_space<vmem>>, vector<8x128xf32>
    tpu.vector_store %arg37[%c0_129, %c0_130], %184 {strides = array<i32>} : memref<8x128xf32, #tpu.memory_space<vmem>>, vector<8x128xf32>,
    return
  }
}

</mosaic_0001>

<llo_original>
// kernel: tpu_custom_call.1
$region0: #{tpu_custom_call.1}
  #allocation0 [shape = 'u32[]', space=smem, size = 0x4, offset = 0x4, fixed_abs, tag = 'smem constant byte address 0x4 - core index']
  #allocation1 [shape = 'u32[72,128]{1,0:T(1,128)}', space=vmem, size = 0x9000, scoped, tag = 'internal scratch']
  %s0 = inlined_call_operand.smem [shape: u32[38], index: -1, kind: input, shape index: {}]
  %s1 = sld [smem:[%s0]]
  %s2 = scalar_lea.smem %s0, 1
  %s3 = sld [smem:[%s2]]
  %s4 = scalar_lea.smem %s0, 2
  %s5 = sld [smem:[%s4]]
  %s6 = scalar_lea.smem %s0, 3
  %s7 = sld [smem:[%s6]]
  %s8 = scalar_lea.smem %s0, 4
  %s9 = sld [smem:[%s8]]
  %s10 = scalar_lea.smem %s0, 5
  %s11 = sld [smem:[%s10]]
  %s12 = scalar_lea.smem %s0, 6
  %s13 = sld [smem:[%s12]]
  %s14 = scalar_lea.smem %s0, 7
  %s15 = sld [smem:[%s14]]
  %s16 = scalar_lea.smem %s0, 8
  %s17 = sld [smem:[%s16]]
  %s18 = scalar_lea.smem %s0, 9
  %s19 = sld [smem:[%s18]]
  %s20 = scalar_lea.smem %s0, 10
  %s21 = sld [smem:[%s20]]
  %s22 = scalar_lea.smem %s0, 11
  %s23 = sld [smem:[%s22]]
  %s24 = scalar_lea.smem %s0, 12
  %s25 = sld [smem:[%s24]]
  %s26 = scalar_lea.smem %s0, 13
  %s27 = sld [smem:[%s26]]
  %s28 = scalar_lea.smem %s0, 14
  %s29 = sld [smem:[%s28]]
  %s30 = scalar_lea.smem %s0, 15
  %s31 = sld [smem:[%s30]]
  %s32 = scalar_lea.smem %s0, 16
  %s33 = sld [smem:[%s32]]
  %s34 = scalar_lea.smem %s0, 17
  %s35 = sld [smem:[%s34]]
  %s36 = scalar_lea.smem %s0, 18
  %s37 = sld [smem:[%s36]]
  %s38 = scalar_lea.smem %s0, 19
  %s39 = sld [smem:[%s38]]
  %s40 = scalar_lea.smem %s0, 20
  %s41 = sld [smem:[%s40]]
  %s42 = scalar_lea.smem %s0, 21
  %s43 = sld [smem:[%s42]]
  %s44 = scalar_lea.smem %s0, 22
  %s45 = sld [smem:[%s44]]
  %s46 = scalar_lea.smem %s0, 23
  %s47 = sld [smem:[%s46]]
  %s48 = scalar_lea.smem %s0, 24
  %s49 = sld [smem:[%s48]]
  %s50 = scalar_lea.smem %s0, 25
  %s51 = sld [smem:[%s50]]
  %s52 = scalar_lea.smem %s0, 26
  %s53 = sld [smem:[%s52]]
  %s54 = scalar_lea.smem %s0, 27
  %s55 = sld [smem:[%s54]]
  %s56 = scalar_lea.smem %s0, 28
  %s57 = sld [smem:[%s56]]
  %s58 = scalar_lea.smem %s0, 29
  %s59 = sld [smem:[%s58]]
  %s60 = scalar_lea.smem %s0, 30
  %s61 = sld [smem:[%s60]]
  %s62 = scalar_lea.smem %s0, 31
  %s63 = sld [smem:[%s62]]
  %s64 = scalar_lea.smem %s0, 32
  %s65 = sld [smem:[%s64]]
  %s66 = scalar_lea.smem %s0, 33
  %s67 = sld [smem:[%s66]]
  %s68 = scalar_lea.smem %s0, 34
  %s69 = sld [smem:[%s68]]
  %s70 = scalar_lea.smem %s0, 35
  %s71 = sld [smem:[%s70]]
  %s72 = scalar_lea.smem %s0, 36
  %s73 = sld [smem:[%s72]]
  %s74 = scalar_lea.smem %s0, 37
  %s75 = sld [smem:[%s74]]
  %76 = xla_tuple %s71, %s73, %s75
  %s77 = sld [smem:[#allocation0]]
  $region270: #{tpu_custom_call.1} parent=0
    _
  %s79 = ssub.s32 1, %s77
  %s80 = scalar_select 0, %s79, %s77
  $region1: #{tpu_custom_call.1} parent=0
    #allocation2 [shape = 'u8[8192]{0}', space=vmem, size = 0x2000, scoped, tag = 'input window, operand 0, single buffered']
    #allocation3 [shape = 's32[1]{0}', space=sflag, size = 0x4, scoped, tag = 'scoped memory for tpu_custom_call.1']
    #allocation4 [shape = 's32[1]{0}', space=sflag, size = 0x4, scoped, tag = 'scoped memory for tpu_custom_call.1']
    #allocation5 [shape = 'u8[8192]{0}', space=vmem, size = 0x2000, scoped, tag = 'input window, operand 1, single buffered']
    #allocation6 [shape = 's32[1]{0}', space=sflag, size = 0x4, scoped, tag = 'scoped memory for tpu_custom_call.1']
    #allocation7 [shape = 'u8[8192]{0}', space=vmem, size = 0x2000, scoped, tag = 'input window, operand 2, single buffered']
    #allocation8 [shape = 'u8[4096]{0}', space=vmem, size = 0x1000, scoped, tag = 'input window, operand 3, single buffered']
    #allocation9 [shape = 's32[1]{0}', space=sflag, size = 0x4, scoped, tag = 'scoped memory for tpu_custom_call.1']
    #allocation10 [shape = 'u8[4096]{0}', space=vmem, size = 0x1000, scoped, tag = 'input window, operand 4, single buffered']
    #allocation11 [shape = 'u8[4096]{0}', space=vmem, size = 0x1000, scoped, tag = 'input window, operand 6, single buffered']
    #allocation12 [shape = 's32[1]{0}', space=sflag, size = 0x4, scoped, tag = 'scoped memory for tpu_custom_call.1']
    #allocation13 [shape = 'u8[2048]{0}', space=vmem, size = 0x800, scoped, tag = 'input window, operand 7, single buffered']
    #allocation14 [shape = 'u8[163840]{0}', space=vmem, size = 0x28000, scoped, tag = 'input window, operand 8, single buffered']
    #allocation15 [shape = 's32[1]{0}', space=sflag, size = 0x4, scoped, tag = 'scoped memory for tpu_custom_call.1']
    #allocation16 [shape = 'u8[32768]{0}', space=vmem, size = 0x8000, scoped, tag = 'input window, operand 9, single buffered']
    #allocation17 [shape = 'u8[32768]{0}', space=vmem, size = 0x8000, scoped, tag = 'input window, operand 11, single buffered']
    #allocation18 [shape = 's32[1]{0}', space=sflag, size = 0x4, scoped, tag = 'scoped memory for tpu_custom_call.1']
    #allocation19 [shape = 'u8[32768]{0}', space=vmem, size = 0x8000, scoped, tag = 'input window, operand 12, single buffered']
    #allocation20 [shape = 'u8[512]{0}', space=vmem, size = 0x400, scoped, tag = 'input window, operand 13, single buffered']
    #allocation21 [shape = 's32[1]{0}', space=sflag, size = 0x4, scoped, tag = 'scoped memory for tpu_custom_call.1']
    #allocation22 [shape = 'u8[32768]{0}', space=vmem, size = 0x8000, scoped, tag = 'input window, operand 14, single buffered']
    #allocation23 [shape = 'u8[32768]{0}', space=vmem, size = 0x8000, scoped, tag = 'input window, operand 15, single buffered']
    #allocation24 [shape = 's32[1]{0}', space=sflag, size = 0x4, scoped, tag = 'scoped memory for tpu_custom_call.1']
    #allocation25 [shape = 'u8[512]{0}', space=vmem, size = 0x400, scoped, tag = 'input window, operand 16, single buffered']
    #allocation26 [shape = 'u8[163840]{0}', space=vmem, size = 0x28000, scoped, tag = 'input window, operand 17, single buffered']
    #allocation27 [shape = 's32[1]{0}', space=sflag, size = 0x4, scoped, tag = 'scoped memory for tpu_custom_call.1']
    #allocation28 [shape = 'u8[32768]{0}', space=vmem, size = 0x8000, scoped, tag = 'input window, operand 20, single buffered']
    #allocation29 [shape = 'u8[32768]{0}', space=vmem, size = 0x8000, scoped, tag = 'input window, operand 21, single buffered']
    #allocation30 [shape = 's32[1]{0}', space=sflag, size = 0x4, scoped, tag = 'scoped memory for tpu_custom_call.1']
    #allocation31 [shape = 'u8[32768]{0}', space=vmem, size = 0x8000, scoped, tag = 'input window, operand 23, single buffered']
    #allocation32 [shape = 'u8[32768]{0}', space=vmem, size = 0x8000, scoped, tag = 'input window, operand 24, single buffered']
    #allocation33 [shape = 's32[1]{0}', space=sflag, size = 0x4, scoped, tag = 'scoped memory for tpu_custom_call.1']
    #allocation34 [shape = 'u8[163840]{0}', space=vmem, size = 0x28000, scoped, tag = 'input window, operand 26, single buffered']
    #allocation35 [shape = 'u8[32768]{0}', space=vmem, size = 0x8000, scoped, tag = 'input window, operand 27, single buffered']
    #allocation36 [shape = 's32[1]{0}', space=sflag, size = 0x4, scoped, tag = 'scoped memory for tpu_custom_call.1']
    #allocation37 [shape = 'u8[32768]{0}', space=vmem, size = 0x8000, scoped, tag = 'input window, operand 29, single buffered']
    #allocation38 [shape = 'u8[32768]{0}', space=vmem, size = 0x8000, scoped, tag = 'input window, operand 30, single buffered']
    #allocation39 [shape = 's32[1]{0}', space=sflag, size = 0x4, scoped, tag = 'scoped memory for tpu_custom_call.1']
    #allocation40 [shape = 'u8[32768]{0}', space=vmem, size = 0x8000, scoped, tag = 'input window, operand 32, single buffered']
    #allocation41 [shape = 'u8[32768]{0}', space=vmem, size = 0x8000, scoped, tag = 'input window, operand 33, single buffered']
    #allocation42 [shape = 's32[1]{0}', space=sflag, size = 0x4, scoped, tag = 'scoped memory for tpu_custom_call.1']
    #allocation43 [shape = 'u8[8192]{0}', space=vmem, size = 0x2000, scoped, tag = 'output window, operand 0, single buffered']
    #allocation44 [shape = 'u8[8192]{0}', space=vmem, size = 0x2000, scoped, tag = 'output window, operand 1, single buffered']
    #allocation45 [shape = 's32[1]{0}', space=sflag, size = 0x4, scoped, tag = 'scoped memory for tpu_custom_call.1']
    #allocation46 [shape = 'u8[4096]{0}', space=vmem, size = 0x1000, scoped, tag = 'output window, operand 2, single buffered']
    %81 = vsyncpa [#allocation3], 0
    %82 = vsyncpa [#allocation6], 0
    %83 = vsyncpa [#allocation9], 0
    %84 = vsyncpa [#allocation12], 0
    %85 = vsyncpa [#allocation15], 0
    %86 = vsyncpa [#allocation18], 0
    %87 = vsyncpa [#allocation21], 0
    %88 = vsyncpa [#allocation24], 0
    %89 = vsyncpa [#allocation27], 0
    %90 = vsyncpa [#allocation30], 0
    %91 = vsyncpa [#allocation33], 0
    %92 = vsyncpa [#allocation36], 0
    %93 = vsyncpa [#allocation39], 0
    %94 = vsyncpa [#allocation42], 0
    %95 = vsyncpa [#allocation4], 0
    %96 = vsyncpa [#allocation45], 0
    // Predicated region
    $region2: #{tpu_custom_call.1} parent=1 // pred_check
      _
    $region3: #{tpu_custom_call.1} parent=1 // pred_check_branch
      %98 = sbr.rel (0) target = $region5
    $region4: #{tpu_custom_call.1} parent=1 // pred_region
      %100 = vsyncadd [#allocation3], 0
      %s101 = sshll.u32 %s1, 4
      %s102 = int_to_ptr.hbm [resolvable:$true] %s101
      %s103 = sshll.u32 [#allocation2], 4
      %s104 = int_to_ptr.vmem [resolvable:$true] %s103
      %109 = dma.hbm_to_vmem [thread:$0]  %s102, 256, %s104, [#allocation3], 128, 128, 8
    $region5: #{tpu_custom_call.1} parent=1 // pred_fallthru
      _
    // Predicated region
    $region6: #{tpu_custom_call.1} parent=1 // pred_check
      _
    $region7: #{tpu_custom_call.1} parent=1 // pred_check_branch
      %111 = sbr.rel (0) target = $region9
    $region8: #{tpu_custom_call.1} parent=1 // pred_region
      %113 = vsyncadd [#allocation6], 0
      %s114 = sshll.u32 %s3, 4
      %s115 = int_to_ptr.hbm [resolvable:$true] %s114
      %s116 = sshll.u32 [#allocation5], 4
      %s117 = int_to_ptr.vmem [resolvable:$true] %s116
      %122 = dma.hbm_to_vmem [thread:$0]  %s115, 256, %s117, [#allocation6], 128, 128, 8
    $region9: #{tpu_custom_call.1} parent=1 // pred_fallthru
      _
    // Predicated region
    $region10: #{tpu_custom_call.1} parent=1 // pred_check
      _
    $region11: #{tpu_custom_call.1} parent=1 // pred_check_branch
      %124 = sbr.rel (0) target = $region13
    $region12: #{tpu_custom_call.1} parent=1 // pred_region
      %126 = vsyncadd [#allocation6], 0
      %s127 = sshll.u32 %s5, 4
      %s128 = int_to_ptr.hbm [resolvable:$true] %s127
      %s129 = sshll.u32 [#allocation7], 4
      %s130 = int_to_ptr.vmem [resolvable:$true] %s129
      %135 = dma.hbm_to_vmem [thread:$0]  %s128, 256, %s130, [#allocation6], 128, 128, 8
    $region13: #{tpu_custom_call.1} parent=1 // pred_fallthru
      _
    // Predicated region
    $region14: #{tpu_custom_call.1} parent=1 // pred_check
      _
    $region15: #{tpu_custom_call.1} parent=1 // pred_check_branch
      %137 = sbr.rel (0) target = $region17
    $region16: #{tpu_custom_call.1} parent=1 // pred_region
      %139 = vsyncadd [#allocation9], 0
      %s141 = sshll.u32 %s7, 4
      %s142 = int_to_ptr.hbm [resolvable:$true] %s141
      %s143 = sshll.u32 [#allocation8], 4
      %s144 = int_to_ptr.vmem [resolvable:$true] %s143
      %146 = dma.hbm_to_vmem [thread:$0]  %s142, 128, %s144, [#allocation9]
    $region17: #{tpu_custom_call.1} parent=1 // pred_fallthru
      _
    // Predicated region
    $region18: #{tpu_custom_call.1} parent=1 // pred_check
      _
    $region19: #{tpu_custom_call.1} parent=1 // pred_check_branch
      %148 = sbr.rel (0) target = $region21
    $region20: #{tpu_custom_call.1} parent=1 // pred_region
      %150 = vsyncadd [#allocation9], 0
      %s152 = sshll.u32 %s9, 4
      %s153 = int_to_ptr.hbm [resolvable:$true] %s152
      %s154 = sshll.u32 [#allocation10], 4
      %s155 = int_to_ptr.vmem [resolvable:$true] %s154
      %157 = dma.hbm_to_vmem [thread:$0]  %s153, 128, %s155, [#allocation9]
    $region21: #{tpu_custom_call.1} parent=1 // pred_fallthru
      _
    // Predicated region
    $region22: #{tpu_custom_call.1} parent=1 // pred_check
      _
    $region23: #{tpu_custom_call.1} parent=1 // pred_check_branch
      %159 = sbr.rel (0) target = $region25
    $region24: #{tpu_custom_call.1} parent=1 // pred_region
      _
    $region25: #{tpu_custom_call.1} parent=1 // pred_fallthru
      _
    // Predicated region
    $region26: #{tpu_custom_call.1} parent=1 // pred_check
      _
    $region27: #{tpu_custom_call.1} parent=1 // pred_check_branch
      %161 = sbr.rel (0) target = $region29
    $region28: #{tpu_custom_call.1} parent=1 // pred_region
      %163 = vsyncadd [#allocation12], 0
      %s164 = sshll.u32 %s13, 4
      %s165 = int_to_ptr.hbm [resolvable:$true] %s164
      %s166 = sshll.u32 [#allocation11], 4
      %s167 = int_to_ptr.vmem [resolvable:$true] %s166
      %172 = dma.hbm_to_vmem [thread:$0]  %s165, 128, %s167, [#allocation12], 64, 64, 4
    $region29: #{tpu_custom_call.1} parent=1 // pred_fallthru
      _
    // Predicated region
    $region30: #{tpu_custom_call.1} parent=1 // pred_check
      _
    $region31: #{tpu_custom_call.1} parent=1 // pred_check_branch
      %174 = sbr.rel (0) target = $region33
    $region32: #{tpu_custom_call.1} parent=1 // pred_region
      %176 = vsyncadd [#allocation12], 0
      %s178 = sshll.u32 %s15, 4
      %s179 = int_to_ptr.hbm [resolvable:$true] %s178
      %s180 = sshll.u32 [#allocation13], 4
      %s181 = int_to_ptr.vmem [resolvable:$true] %s180
      %183 = dma.hbm_to_vmem [thread:$0]  %s179, 64, %s181, [#allocation12]
    $region33: #{tpu_custom_call.1} parent=1 // pred_fallthru
      _
    // Predicated region
    $region34: #{tpu_custom_call.1} parent=1 // pred_check
      _
    $region35: #{tpu_custom_call.1} parent=1 // pred_check_branch
      %185 = sbr.rel (0) target = $region37
    $region36: #{tpu_custom_call.1} parent=1 // pred_region
      %187 = vsyncadd [#allocation15], 0
      %s188 = sshll.u32 %s17, 4
      %s189 = int_to_ptr.hbm [resolvable:$true] %s188
      %s190 = sshll.u32 [#allocation14], 4
      %s191 = int_to_ptr.vmem [resolvable:$true] %s190
      %196 = dma.hbm_to_vmem [thread:$0]  %s189, 5120, %s191, [#allocation15], 64, 64, 4
    $region37: #{tpu_custom_call.1} parent=1 // pred_fallthru
      _
    // Predicated region
    $region38: #{tpu_custom_call.1} parent=1 // pred_check
      _
    $region39: #{tpu_custom_call.1} parent=1 // pred_check_branch
      %198 = sbr.rel (0) target = $region41
    $region40: #{tpu_custom_call.1} parent=1 // pred_region
      %200 = vsyncadd [#allocation15], 0
      %s201 = sshll.u32 %s19, 4
      %s202 = int_to_ptr.hbm [resolvable:$true] %s201
      %s203 = sshll.u32 [#allocation16], 4
      %s204 = int_to_ptr.vmem [resolvable:$true] %s203
      %209 = dma.hbm_to_vmem [thread:$0]  %s202, 1024, %s204, [#allocation15], 64, 64, 4
    $region41: #{tpu_custom_call.1} parent=1 // pred_fallthru
      _
    // Predicated region
    $region42: #{tpu_custom_call.1} parent=1 // pred_check
      _
    $region43: #{tpu_custom_call.1} parent=1 // pred_check_branch
      %211 = sbr.rel (0) target = $region45
    $region44: #{tpu_custom_call.1} parent=1 // pred_region
      _
    $region45: #{tpu_custom_call.1} parent=1 // pred_fallthru
      _
    // Predicated region
    $region46: #{tpu_custom_call.1} parent=1 // pred_check
      _
    $region47: #{tpu_custom_call.1} parent=1 // pred_check_branch
      %213 = sbr.rel (0) target = $region49
    $region48: #{tpu_custom_call.1} parent=1 // pred_region
      %215 = vsyncadd [#allocation18], 0
      %s216 = sshll.u32 %s23, 4
      %s217 = int_to_ptr.hbm [resolvable:$true] %s216
      %s218 = sshll.u32 [#allocation17], 4
      %s219 = int_to_ptr.vmem [resolvable:$true] %s218
      %224 = dma.hbm_to_vmem [thread:$0]  %s217, 1024, %s219, [#allocation18], 64, 64, 4
    $region49: #{tpu_custom_call.1} parent=1 // pred_fallthru
      _
    // Predicated region
    $region50: #{tpu_custom_call.1} parent=1 // pred_check
      _
    $region51: #{tpu_custom_call.1} parent=1 // pred_check_branch
      %226 = sbr.rel (0) target = $region53
    $region52: #{tpu_custom_call.1} parent=1 // pred_region
      %228 = vsyncadd [#allocation18], 0
      %s229 = sshll.u32 %s25, 4
      %s230 = int_to_ptr.hbm [resolvable:$true] %s229
      %s231 = sshll.u32 [#allocation19], 4
      %s232 = int_to_ptr.vmem [resolvable:$true] %s231
      %237 = dma.hbm_to_vmem [thread:$0]  %s230, 1024, %s232, [#allocation18], 64, 64, 4
    $region53: #{tpu_custom_call.1} parent=1 // pred_fallthru
      _
    // Predicated region
    $region54: #{tpu_custom_call.1} parent=1 // pred_check
      _
    $region55: #{tpu_custom_call.1} parent=1 // pred_check_branch
      %239 = sbr.rel (0) target = $region57
    $region56: #{tpu_custom_call.1} parent=1 // pred_region
      %241 = vsyncadd [#allocation21], 0
      %s243 = sshll.u32 %s27, 4
      %s244 = int_to_ptr.hbm [resolvable:$true] %s243
      %s245 = sshll.u32 [#allocation20], 4
      %s246 = int_to_ptr.vmem [resolvable:$true] %s245
      %248 = dma.hbm_to_vmem [thread:$0]  %s244, 16, %s246, [#allocation21]
    $region57: #{tpu_custom_call.1} parent=1 // pred_fallthru
      _
    // Predicated region
    $region58: #{tpu_custom_call.1} parent=1 // pred_check
      _
    $region59: #{tpu_custom_call.1} parent=1 // pred_check_branch
      %250 = sbr.rel (0) target = $region61
    $region60: #{tpu_custom_call.1} parent=1 // pred_region
      %252 = vsyncadd [#allocation21], 0
      %s253 = sshll.u32 %s29, 4
      %s254 = int_to_ptr.hbm [resolvable:$true] %s253
      %s255 = sshll.u32 [#allocation22], 4
      %s256 = int_to_ptr.vmem [resolvable:$true] %s255
      %261 = dma.hbm_to_vmem [thread:$0]  %s254, 1024, %s256, [#allocation21], 64, 64, 4
    $region61: #{tpu_custom_call.1} parent=1 // pred_fallthru
      _
    // Predicated region
    $region62: #{tpu_custom_call.1} parent=1 // pred_check
      _
    $region63: #{tpu_custom_call.1} parent=1 // pred_check_branch
      %263 = sbr.rel (0) target = $region65
    $region64: #{tpu_custom_call.1} parent=1 // pred_region
      %265 = vsyncadd [#allocation24], 0
      %s266 = sshll.u32 %s31, 4
      %s267 = int_to_ptr.hbm [resolvable:$true] %s266
      %s268 = sshll.u32 [#allocation23], 4
      %s269 = int_to_ptr.vmem [resolvable:$true] %s268
      %274 = dma.hbm_to_vmem [thread:$0]  %s267, 1024, %s269, [#allocation24], 64, 64, 4
    $region65: #{tpu_custom_call.1} parent=1 // pred_fallthru
      _
    // Predicated region
    $region66: #{tpu_custom_call.1} parent=1 // pred_check
      _
    $region67: #{tpu_custom_call.1} parent=1 // pred_check_branch
      %276 = sbr.rel (0) target = $region69
    $region68: #{tpu_custom_call.1} parent=1 // pred_region
      %278 = vsyncadd [#allocation24], 0
      %s280 = sshll.u32 %s33, 4
      %s281 = int_to_ptr.hbm [resolvable:$true] %s280
      %s282 = sshll.u32 [#allocation25], 4
      %s283 = int_to_ptr.vmem [resolvable:$true] %s282
      %285 = dma.hbm_to_vmem [thread:$0]  %s281, 16, %s283, [#allocation24]
    $region69: #{tpu_custom_call.1} parent=1 // pred_fallthru
      _
    // Predicated region
    $region70: #{tpu_custom_call.1} parent=1 // pred_check
      _
    $region71: #{tpu_custom_call.1} parent=1 // pred_check_branch
      %287 = sbr.rel (0) target = $region73
    $region72: #{tpu_custom_call.1} parent=1 // pred_region
      %289 = vsyncadd [#allocation27], 0
      %s290 = sshll.u32 %s35, 4
      %s291 = int_to_ptr.hbm [resolvable:$true] %s290
      %s292 = sshll.u32 [#allocation26], 4
      %s293 = int_to_ptr.vmem [resolvable:$true] %s292
      %298 = dma.hbm_to_vmem [thread:$0]  %s291, 5120, %s293, [#allocation27], 64, 64, 4
    $region73: #{tpu_custom_call.1} parent=1 // pred_fallthru
      _
    // Predicated region
    $region74: #{tpu_custom_call.1} parent=1 // pred_check
      _
    $region75: #{tpu_custom_call.1} parent=1 // pred_check_branch
      %300 = sbr.rel (0) target = $region77
    $region76: #{tpu_custom_call.1} parent=1 // pred_region
      _
    $region77: #{tpu_custom_call.1} parent=1 // pred_fallthru
      _
    // Predicated region
    $region78: #{tpu_custom_call.1} parent=1 // pred_check
      _
    $region79: #{tpu_custom_call.1} parent=1 // pred_check_branch
      %302 = sbr.rel (0) target = $region81
    $region80: #{tpu_custom_call.1} parent=1 // pred_region
      _
    $region81: #{tpu_custom_call.1} parent=1 // pred_fallthru
      _
    // Predicated region
    $region82: #{tpu_custom_call.1} parent=1 // pred_check
      _
    $region83: #{tpu_custom_call.1} parent=1 // pred_check_branch
      %304 = sbr.rel (0) target = $region85
    $region84: #{tpu_custom_call.1} parent=1 // pred_region
      %306 = vsyncadd [#allocation27], 0
      %s307 = sshll.u32 %s41, 4
      %s308 = int_to_ptr.hbm [resolvable:$true] %s307
      %s309 = sshll.u32 [#allocation28], 4
      %s310 = int_to_ptr.vmem [resolvable:$true] %s309
      %315 = dma.hbm_to_vmem [thread:$0]  %s308, 1024, %s310, [#allocation27], 64, 64, 4
    $region85: #{tpu_custom_call.1} parent=1 // pred_fallthru
      _
    // Predicated region
    $region86: #{tpu_custom_call.1} parent=1 // pred_check
      _
    $region87: #{tpu_custom_call.1} parent=1 // pred_check_branch
      %317 = sbr.rel (0) target = $region89
    $region88: #{tpu_custom_call.1} parent=1 // pred_region
      %319 = vsyncadd [#allocation30], 0
      %s320 = sshll.u32 %s43, 4
      %s321 = int_to_ptr.hbm [resolvable:$true] %s320
      %s322 = sshll.u32 [#allocation29], 4
      %s323 = int_to_ptr.vmem [resolvable:$true] %s322
      %328 = dma.hbm_to_vmem [thread:$0]  %s321, 1024, %s323, [#allocation30], 64, 64, 4
    $region89: #{tpu_custom_call.1} parent=1 // pred_fallthru
      _
    // Predicated region
    $region90: #{tpu_custom_call.1} parent=1 // pred_check
      _
    $region91: #{tpu_custom_call.1} parent=1 // pred_check_branch
      %330 = sbr.rel (0) target = $region93
    $region92: #{tpu_custom_call.1} parent=1 // pred_region
      _
    $region93: #{tpu_custom_call.1} parent=1 // pred_fallthru
      _
    // Predicated region
    $region94: #{tpu_custom_call.1} parent=1 // pred_check
      _
    $region95: #{tpu_custom_call.1} parent=1 // pred_check_branch
      %332 = sbr.rel (0) target = $region97
    $region96: #{tpu_custom_call.1} parent=1 // pred_region
      %334 = vsyncadd [#allocation30], 0
      %s335 = sshll.u32 %s47, 4
      %s336 = int_to_ptr.hbm [resolvable:$true] %s335
      %s337 = sshll.u32 [#allocation31], 4
      %s338 = int_to_ptr.vmem [resolvable:$true] %s337
      %343 = dma.hbm_to_vmem [thread:$0]  %s336, 1024, %s338, [#allocation30], 64, 64, 4
    $region97: #{tpu_custom_call.1} parent=1 // pred_fallthru
      _
    // Predicated region
    $region98: #{tpu_custom_call.1} parent=1 // pred_check
      _
    $region99: #{tpu_custom_call.1} parent=1 // pred_check_branch
      %345 = sbr.rel (0) target = $region101
    $region100: #{tpu_custom_call.1} parent=1 // pred_region
      %347 = vsyncadd [#allocation33], 0
      %s348 = sshll.u32 %s49, 4
      %s349 = int_to_ptr.hbm [resolvable:$true] %s348
      %s350 = sshll.u32 [#allocation32], 4
      %s351 = int_to_ptr.vmem [resolvable:$true] %s350
      %356 = dma.hbm_to_vmem [thread:$0]  %s349, 1024, %s351, [#allocation33], 64, 64, 4
    $region101: #{tpu_custom_call.1} parent=1 // pred_fallthru
      _
    // Predicated region
    $region102: #{tpu_custom_call.1} parent=1 // pred_check
      _
    $region103: #{tpu_custom_call.1} parent=1 // pred_check_branch
      %358 = sbr.rel (0) target = $region105
    $region104: #{tpu_custom_call.1} parent=1 // pred_region
      _
    $region105: #{tpu_custom_call.1} parent=1 // pred_fallthru
      _
    // Predicated region
    $region106: #{tpu_custom_call.1} parent=1 // pred_check
      _
    $region107: #{tpu_custom_call.1} parent=1 // pred_check_branch
      %360 = sbr.rel (0) target = $region109
    $region108: #{tpu_custom_call.1} parent=1 // pred_region
      %362 = vsyncadd [#allocation33], 0
      %s363 = sshll.u32 %s53, 4
      %s364 = int_to_ptr.hbm [resolvable:$true] %s363
      %s365 = sshll.u32 [#allocation34], 4
      %s366 = int_to_ptr.vmem [resolvable:$true] %s365
      %371 = dma.hbm_to_vmem [thread:$0]  %s364, 5120, %s366, [#allocation33], 64, 64, 4
    $region109: #{tpu_custom_call.1} parent=1 // pred_fallthru
      _
    // Predicated region
    $region110: #{tpu_custom_call.1} parent=1 // pred_check
      _
    $region111: #{tpu_custom_call.1} parent=1 // pred_check_branch
      %373 = sbr.rel (0) target = $region113
    $region112: #{tpu_custom_call.1} parent=1 // pred_region
      %375 = vsyncadd [#allocation36], 0
      %s376 = sshll.u32 %s55, 4
      %s377 = int_to_ptr.hbm [resolvable:$true] %s376
      %s378 = sshll.u32 [#allocation35], 4
      %s379 = int_to_ptr.vmem [resolvable:$true] %s378
      %384 = dma.hbm_to_vmem [thread:$0]  %s377, 1024, %s379, [#allocation36], 64, 64, 4
    $region113: #{tpu_custom_call.1} parent=1 // pred_fallthru
      _
    // Predicated region
    $region114: #{tpu_custom_call.1} parent=1 // pred_check
      _
    $region115: #{tpu_custom_call.1} parent=1 // pred_check_branch
      %386 = sbr.rel (0) target = $region117
    $region116: #{tpu_custom_call.1} parent=1 // pred_region
      _
    $region117: #{tpu_custom_call.1} parent=1 // pred_fallthru
      _
    // Predicated region
    $region118: #{tpu_custom_call.1} parent=1 // pred_check
      _
    $region119: #{tpu_custom_call.1} parent=1 // pred_check_branch
      %388 = sbr.rel (0) target = $region121
    $region120: #{tpu_custom_call.1} parent=1 // pred_region
      %390 = vsyncadd [#allocation36], 0
      %s391 = sshll.u32 %s59, 4
      %s392 = int_to_ptr.hbm [resolvable:$true] %s391
      %s393 = sshll.u32 [#allocation37], 4
      %s394 = int_to_ptr.vmem [resolvable:$true] %s393
      %399 = dma.hbm_to_vmem [thread:$0]  %s392, 1024, %s394, [#allocation36], 64, 64, 4
    $region121: #{tpu_custom_call.1} parent=1 // pred_fallthru
      _
    // Predicated region
    $region122: #{tpu_custom_call.1} parent=1 // pred_check
      _
    $region123: #{tpu_custom_call.1} parent=1 // pred_check_branch
      %401 = sbr.rel (0) target = $region125
    $region124: #{tpu_custom_call.1} parent=1 // pred_region
      %403 = vsyncadd [#allocation39], 0
      %s404 = sshll.u32 %s61, 4
      %s405 = int_to_ptr.hbm [resolvable:$true] %s404
      %s406 = sshll.u32 [#allocation38], 4
      %s407 = int_to_ptr.vmem [resolvable:$true] %s406
      %412 = dma.hbm_to_vmem [thread:$0]  %s405, 1024, %s407, [#allocation39], 64, 64, 4
    $region125: #{tpu_custom_call.1} parent=1 // pred_fallthru
      _
    // Predicated region
    $region126: #{tpu_custom_call.1} parent=1 // pred_check
      _
    $region127: #{tpu_custom_call.1} parent=1 // pred_check_branch
      %414 = sbr.rel (0) target = $region129
    $region128: #{tpu_custom_call.1} parent=1 // pred_region
      _
    $region129: #{tpu_custom_call.1} parent=1 // pred_fallthru
      _
    // Predicated region
    $region130: #{tpu_custom_call.1} parent=1 // pred_check
      _
    $region131: #{tpu_custom_call.1} parent=1 // pred_check_branch
      %416 = sbr.rel (0) target = $region133
    $region132: #{tpu_custom_call.1} parent=1 // pred_region
      %418 = vsyncadd [#allocation39], 0
      %s419 = sshll.u32 %s65, 4
      %s420 = int_to_ptr.hbm [resolvable:$true] %s419
      %s421 = sshll.u32 [#allocation40], 4
      %s422 = int_to_ptr.vmem [resolvable:$true] %s421
      %427 = dma.hbm_to_vmem [thread:$0]  %s420, 1024, %s422, [#allocation39], 64, 64, 4
    $region133: #{tpu_custom_call.1} parent=1 // pred_fallthru
      _
    // Predicated region
    $region134: #{tpu_custom_call.1} parent=1 // pred_check
      _
    $region135: #{tpu_custom_call.1} parent=1 // pred_check_branch
      %429 = sbr.rel (0) target = $region137
    $region136: #{tpu_custom_call.1} parent=1 // pred_region
      %431 = vsyncadd [#allocation42], 0
      %s432 = sshll.u32 %s67, 4
      %s433 = int_to_ptr.hbm [resolvable:$true] %s432
      %s434 = sshll.u32 [#allocation41], 4
      %s435 = int_to_ptr.vmem [resolvable:$true] %s434
      %440 = dma.hbm_to_vmem [thread:$0]  %s433, 1024, %s435, [#allocation42], 64, 64, 4
    $region137: #{tpu_custom_call.1} parent=1 // pred_fallthru
      _
    // Predicated region
    $region138: #{tpu_custom_call.1} parent=1 // pred_check
      _
    $region139: #{tpu_custom_call.1} parent=1 // pred_check_branch
      %442 = sbr.rel (0) target = $region141
    $region140: #{tpu_custom_call.1} parent=1 // pred_region
      _
    $region141: #{tpu_custom_call.1} parent=1 // pred_fallthru
      _
    // Predicated region
    $region142: #{tpu_custom_call.1} parent=1 // pred_check
      _
    $region143: #{tpu_custom_call.1} parent=1 // pred_check_branch
      %444 = sbr.rel (0) target = $region145
    $region144: #{tpu_custom_call.1} parent=1 // pred_region
      %446 = dma.done [#allocation3], 256
    $region145: #{tpu_custom_call.1} parent=1 // pred_fallthru
      _
    // Predicated region
    $region146: #{tpu_custom_call.1} parent=1 // pred_check
      _
    $region147: #{tpu_custom_call.1} parent=1 // pred_check_branch
      %448 = sbr.rel (0) target = $region149
    $region148: #{tpu_custom_call.1} parent=1 // pred_region
      %450 = dma.done [#allocation6], 256
    $region149: #{tpu_custom_call.1} parent=1 // pred_fallthru
      _
    // Predicated region
    $region150: #{tpu_custom_call.1} parent=1 // pred_check
      _
    $region151: #{tpu_custom_call.1} parent=1 // pred_check_branch
      %452 = sbr.rel (0) target = $region153
    $region152: #{tpu_custom_call.1} parent=1 // pred_region
      %454 = dma.done [#allocation6], 256
    $region153: #{tpu_custom_call.1} parent=1 // pred_fallthru
      _
    // Predicated region
    $region154: #{tpu_custom_call.1} parent=1 // pred_check
      _
    $region155: #{tpu_custom_call.1} parent=1 // pred_check_branch
      %456 = sbr.rel (0) target = $region157
    $region156: #{tpu_custom_call.1} parent=1 // pred_region
      %458 = dma.done [#allocation9], 128
    $region157: #{tpu_custom_call.1} parent=1 // pred_fallthru
      _
    // Predicated region
    $region158: #{tpu_custom_call.1} parent=1 // pred_check
      _
    $region159: #{tpu_custom_call.1} parent=1 // pred_check_branch
      %460 = sbr.rel (0) target = $region161
    $region160: #{tpu_custom_call.1} parent=1 // pred_region
      %462 = dma.done [#allocation9], 128
    $region161: #{tpu_custom_call.1} parent=1 // pred_fallthru
      _
    // Predicated region
    $region162: #{tpu_custom_call.1} parent=1 // pred_check
      _
    $region163: #{tpu_custom_call.1} parent=1 // pred_check_branch
      %464 = sbr.rel (0) target = $region165
    $region164: #{tpu_custom_call.1} parent=1 // pred_region
      %466 = dma.done [#allocation12], 128
    $region165: #{tpu_custom_call.1} parent=1 // pred_fallthru
      _
    // Predicated region
    $region166: #{tpu_custom_call.1} parent=1 // pred_check
      _
    $region167: #{tpu_custom_call.1} parent=1 // pred_check_branch
      %468 = sbr.rel (0) target = $region169
    $region168: #{tpu_custom_call.1} parent=1 // pred_region
      %470 = dma.done [#allocation12], 64
    $region169: #{tpu_custom_call.1} parent=1 // pred_fallthru
      _
    // Predicated region
    $region170: #{tpu_custom_call.1} parent=1 // pred_check
      _
    $region171: #{tpu_custom_call.1} parent=1 // pred_check_branch
      %472 = sbr.rel (0) target = $region173
    $region172: #{tpu_custom_call.1} parent=1 // pred_region
      %474 = dma.done [#allocation15], 5120
    $region173: #{tpu_custom_call.1} parent=1 // pred_fallthru
      _
    // Predicated region
    $region174: #{tpu_custom_call.1} parent=1 // pred_check
      _
    $region175: #{tpu_custom_call.1} parent=1 // pred_check_branch
      %476 = sbr.rel (0) target = $region177
    $region176: #{tpu_custom_call.1} parent=1 // pred_region
      %478 = dma.done [#allocation15], 1024
    $region177: #{tpu_custom_call.1} parent=1 // pred_fallthru
      _
    // Predicated region
    $region178: #{tpu_custom_call.1} parent=1 // pred_check
      _
    $region179: #{tpu_custom_call.1} parent=1 // pred_check_branch
      %480 = sbr.rel (0) target = $region181
    $region180: #{tpu_custom_call.1} parent=1 // pred_region
      %482 = dma.done [#allocation18], 1024
    $region181: #{tpu_custom_call.1} parent=1 // pred_fallthru
      _
    // Predicated region
    $region182: #{tpu_custom_call.1} parent=1 // pred_check
      _
    $region183: #{tpu_custom_call.1} parent=1 // pred_check_branch
      %484 = sbr.rel (0) target = $region185
    $region184: #{tpu_custom_call.1} parent=1 // pred_region
      %486 = dma.done [#allocation18], 1024
    $region185: #{tpu_custom_call.1} parent=1 // pred_fallthru
      _
    // Predicated region
    $region186: #{tpu_custom_call.1} parent=1 // pred_check
      _
    $region187: #{tpu_custom_call.1} parent=1 // pred_check_branch
      %488 = sbr.rel (0) target = $region189
    $region188: #{tpu_custom_call.1} parent=1 // pred_region
      %490 = dma.done [#allocation21], 16
    $region189: #{tpu_custom_call.1} parent=1 // pred_fallthru
      _
    // Predicated region
    $region190: #{tpu_custom_call.1} parent=1 // pred_check
      _
    $region191: #{tpu_custom_call.1} parent=1 // pred_check_branch
      %492 = sbr.rel (0) target = $region193
    $region192: #{tpu_custom_call.1} parent=1 // pred_region
      %494 = dma.done [#allocation21], 1024
    $region193: #{tpu_custom_call.1} parent=1 // pred_fallthru
      _
    // Predicated region
    $region194: #{tpu_custom_call.1} parent=1 // pred_check
      _
    $region195: #{tpu_custom_call.1} parent=1 // pred_check_branch
      %496 = sbr.rel (0) target = $region197
    $region196: #{tpu_custom_call.1} parent=1 // pred_region
      %498 = dma.done [#allocation24], 1024
    $region197: #{tpu_custom_call.1} parent=1 // pred_fallthru
      _
    // Predicated region
    $region198: #{tpu_custom_call.1} parent=1 // pred_check
      _
    $region199: #{tpu_custom_call.1} parent=1 // pred_check_branch
      %500 = sbr.rel (0) target = $region201
    $region200: #{tpu_custom_call.1} parent=1 // pred_region
      %502 = dma.done [#allocation24], 16
    $region201: #{tpu_custom_call.1} parent=1 // pred_fallthru
      _
    // Predicated region
    $region202: #{tpu_custom_call.1} parent=1 // pred_check
      _
    $region203: #{tpu_custom_call.1} parent=1 // pred_check_branch
      %504 = sbr.rel (0) target = $region205
    $region204: #{tpu_custom_call.1} parent=1 // pred_region
      %506 = dma.done [#allocation27], 5120
    $region205: #{tpu_custom_call.1} parent=1 // pred_fallthru
      _
    // Predicated region
    $region206: #{tpu_custom_call.1} parent=1 // pred_check
      _
    $region207: #{tpu_custom_call.1} parent=1 // pred_check_branch
      %508 = sbr.rel (0) target = $region209
    $region208: #{tpu_custom_call.1} parent=1 // pred_region
      %510 = dma.done [#allocation27], 1024
    $region209: #{tpu_custom_call.1} parent=1 // pred_fallthru
      _
    // Predicated region
    $region210: #{tpu_custom_call.1} parent=1 // pred_check
      _
    $region211: #{tpu_custom_call.1} parent=1 // pred_check_branch
      %512 = sbr.rel (0) target = $region213
    $region212: #{tpu_custom_call.1} parent=1 // pred_region
      %514 = dma.done [#allocation30], 1024
    $region213: #{tpu_custom_call.1} parent=1 // pred_fallthru
      _
    // Predicated region
    $region214: #{tpu_custom_call.1} parent=1 // pred_check
      _
    $region215: #{tpu_custom_call.1} parent=1 // pred_check_branch
      %516 = sbr.rel (0) target = $region217
    $region216: #{tpu_custom_call.1} parent=1 // pred_region
      %518 = dma.done [#allocation30], 1024
    $region217: #{tpu_custom_call.1} parent=1 // pred_fallthru
      _
    // Predicated region
    $region218: #{tpu_custom_call.1} parent=1 // pred_check
      _
    $region219: #{tpu_custom_call.1} parent=1 // pred_check_branch
      %520 = sbr.rel (0) target = $region221
    $region220: #{tpu_custom_call.1} parent=1 // pred_region
      %522 = dma.done [#allocation33], 1024
    $region221: #{tpu_custom_call.1} parent=1 // pred_fallthru
      _
    // Predicated region
    $region222: #{tpu_custom_call.1} parent=1 // pred_check
      _
    $region223: #{tpu_custom_call.1} parent=1 // pred_check_branch
      %524 = sbr.rel (0) target = $region225
    $region224: #{tpu_custom_call.1} parent=1 // pred_region
      %526 = dma.done [#allocation33], 5120
    $region225: #{tpu_custom_call.1} parent=1 // pred_fallthru
      _
    // Predicated region
    $region226: #{tpu_custom_call.1} parent=1 // pred_check
      _
    $region227: #{tpu_custom_call.1} parent=1 // pred_check_branch
      %528 = sbr.rel (0) target = $region229
    $region228: #{tpu_custom_call.1} parent=1 // pred_region
      %530 = dma.done [#allocation36], 1024
    $region229: #{tpu_custom_call.1} parent=1 // pred_fallthru
      _
    // Predicated region
    $region230: #{tpu_custom_call.1} parent=1 // pred_check
      _
    $region231: #{tpu_custom_call.1} parent=1 // pred_check_branch
      %532 = sbr.rel (0) target = $region233
    $region232: #{tpu_custom_call.1} parent=1 // pred_region
      %534 = dma.done [#allocation36], 1024
    $region233: #{tpu_custom_call.1} parent=1 // pred_fallthru
      _
    // Predicated region
    $region234: #{tpu_custom_call.1} parent=1 // pred_check
      _
    $region235: #{tpu_custom_call.1} parent=1 // pred_check_branch
      %536 = sbr.rel (0) target = $region237
    $region236: #{tpu_custom_call.1} parent=1 // pred_region
      %538 = dma.done [#allocation39], 1024
    $region237: #{tpu_custom_call.1} parent=1 // pred_fallthru
      _
    // Predicated region
    $region238: #{tpu_custom_call.1} parent=1 // pred_check
      _
    $region239: #{tpu_custom_call.1} parent=1 // pred_check_branch
      %540 = sbr.rel (0) target = $region241
    $region240: #{tpu_custom_call.1} parent=1 // pred_region
      %542 = dma.done [#allocation39], 1024
    $region241: #{tpu_custom_call.1} parent=1 // pred_fallthru
      _
    // Predicated region
    $region242: #{tpu_custom_call.1} parent=1 // pred_check
      _
    $region243: #{tpu_custom_call.1} parent=1 // pred_check_branch
      %544 = sbr.rel (0) target = $region245
    $region244: #{tpu_custom_call.1} parent=1 // pred_region
      %546 = dma.done [#allocation42], 1024
    $region245: #{tpu_custom_call.1} parent=1 // pred_fallthru
      _
    %v548 = vld [vmem:[#allocation2] sm:$0xff]
    %v549 = vld [vmem:[#allocation2 + $0x8] sm:$0xff]
    %v550 = vld [vmem:[#allocation5] sm:$0xff]
    %v551 = vld [vmem:[#allocation5 + $0x8] sm:$0xff]
    %v552 = vld [vmem:[#allocation7] sm:$0xff]
    %v553 = vld [vmem:[#allocation7 + $0x8] sm:$0xff]
    %v554 = vld [vmem:[#allocation8] sm:$0xff]
    %v555 = vld [vmem:[#allocation10] sm:$0xff]
    %v556 = vld [vmem:[%s11] sm:$0xf]
    %v557 = vld [vmem:[%s11 + $0x4] sm:$0xf]
    %v558 = vld [vmem:[%s11 + $0x8] sm:$0xf]
    %v559 = vld [vmem:[%s11 + $0xc] sm:$0xf]
    %v560 = vld [vmem:[%s11 + $0x10] sm:$0xf]
    %v561 = vld [vmem:[%s11 + $0x14] sm:$0xf]
    %v562 = vld [vmem:[%s11 + $0x18] sm:$0xf]
    %v563 = vld [vmem:[%s11 + $0x1c] sm:$0xf]
    %v564 = vld [vmem:[%s11 + $0x20] sm:$0xf]
    %v565 = vld [vmem:[%s11 + $0x24] sm:$0xf]
    %v566 = vpack.c.bf16 %v549, %v548
    %v577 = vunpack.c.l.b16 %v556
    %v578 = vunpack.c.l.b16 %v557
    %v579 = vunpack.c.l.b16 %v558
    %v580 = vunpack.c.l.b16 %v559
    %v581 = vunpack.c.l.b16 %v560
    %v582 = vunpack.c.l.b16 %v561
    %v583 = vunpack.c.l.b16 %v562
    %v584 = vunpack.c.l.b16 %v563
    %v585 = vunpack.c.l.b16 %v564
    %v586 = vunpack.c.l.b16 %v565
    %v587 = vpack.c.b16 %v578, %v577
    %v588 = vpack.c.b16 %v580, %v579
    %v589 = vpack.c.b16 %v582, %v581
    %v590 = vpack.c.b16 %v584, %v583
    %v591 = vpack.c.b16 %v586, %v585
    %vm592 = vcmask 130048
    %v594 = vsel %vm592, %v587, 0
    %v597 = vsel %vm592, %v588, 0
    %v600 = vsel %vm592, %v589, 0
    %v603 = vsel %vm592, %v590, 0
    %v606 = vsel %vm592, %v591, 0
    %608 = vmatpush.bf16.msra.mxu0 0
    %609 = vmatpush.bf16.msra.mxu0 0
    %610 = vmatpush.bf16.msra.mxu0 0
    %611 = vmatpush.bf16.msra.mxu0 0
    %612 = vmatpush.bf16.msra.mxu0 0
    %613 = vmatpush.bf16.msra.mxu0 0
    %614 = vmatpush.bf16.msra.mxu0 0
    %615 = vmatpush.bf16.msra.mxu0 %v566
    %616 = vmatmul.bf16.gmra.mxu0 %v594
    %v617 = vpop.f32.mrf.mxu0
    %v618 = vadd.f32 0.0, %v617
    %v619 = vpop.f32.mrf.mxu0
    %v620 = vadd.f32 0.0, %v619
    %621 = vmatmul.bf16.gmra.mxu0 %v597
    %v622 = vpop.f32.mrf.mxu0
    %v623 = vadd.f32 0.0, %v622
    %v624 = vpop.f32.mrf.mxu0
    %v625 = vadd.f32 0.0, %v624
    %626 = vmatmul.bf16.gmra.mxu0 %v600
    %v627 = vpop.f32.mrf.mxu0
    %v628 = vadd.f32 0.0, %v627
    %v629 = vpop.f32.mrf.mxu0
    %v630 = vadd.f32 0.0, %v629
    %631 = vmatmul.bf16.gmra.mxu0 %v603
    %v632 = vpop.f32.mrf.mxu0
    %v633 = vadd.f32 0.0, %v632
    %v634 = vpop.f32.mrf.mxu0
    %v635 = vadd.f32 0.0, %v634
    %636 = vmatmul.bf16.gmra.mxu0 %v606
    %v637 = vpop.f32.mrf.mxu0
    %v638 = vadd.f32 0.0, %v637
    %v639 = vpop.f32.mrf.mxu0
    %v640 = vadd.f32 0.0, %v639
    %641 = vdwg.mxu0
    %v642 = vpack.c.bf16 %v620, %v618
    %v643 = vpack.c.bf16 %v625, %v623
    %v644 = vpack.c.bf16 %v630, %v628
    %v645 = vpack.c.bf16 %v635, %v633
    %v646 = vpack.c.bf16 %v640, %v638
    %v647 = vld [vmem:[#allocation14] sm:$0xf]
    %v648 = vld [vmem:[#allocation14 + $0x4] sm:$0xf]
    %v649 = vld [vmem:[#allocation14 + $0x8] sm:$0xf]
    %v650 = vld [vmem:[#allocation14 + $0xc] sm:$0xf]
    %v651 = vld [vmem:[#allocation14 + $0x10] sm:$0xf]
    %v652 = vld [vmem:[#allocation14 + $0x14] sm:$0xf]
    %v653 = vld [vmem:[#allocation14 + $0x18] sm:$0xf]
    %v654 = vld [vmem:[#allocation14 + $0x1c] sm:$0xf]
    %v655 = vld [vmem:[#allocation14 + $0x20] sm:$0xf]
    %v656 = vld [vmem:[#allocation14 + $0x24] sm:$0xf]
    %v657 = vld [vmem:[#allocation14 + $0x28] sm:$0xf]
    %v658 = vld [vmem:[#allocation14 + $0x2c] sm:$0xf]
    %v659 = vld [vmem:[#allocation14 + $0x30] sm:$0xf]
    %v660 = vld [vmem:[#allocation14 + $0x34] sm:$0xf]
    %v661 = vld [vmem:[#allocation14 + $0x38] sm:$0xf]
    %v662 = vld [vmem:[#allocation14 + $0x3c] sm:$0xf]
    %v663 = vld [vmem:[#allocation14 + $0x40] sm:$0xf]
    %v664 = vld [vmem:[#allocation14 + $0x44] sm:$0xf]
    %v665 = vld [vmem:[#allocation14 + $0x48] sm:$0xf]
    %v666 = vld [vmem:[#allocation14 + $0x4c] sm:$0xf]
    %v667 = vld [vmem:[#allocation14 + $0x50] sm:$0xf]
    %v668 = vld [vmem:[#allocation14 + $0x54] sm:$0xf]
    %v669 = vld [vmem:[#allocation14 + $0x58] sm:$0xf]
    %v670 = vld [vmem:[#allocation14 + $0x5c] sm:$0xf]
    %v671 = vld [vmem:[#allocation14 + $0x60] sm:$0xf]
    %v672 = vld [vmem:[#allocation14 + $0x64] sm:$0xf]
    %v673 = vld [vmem:[#allocation14 + $0x68] sm:$0xf]
    %v674 = vld [vmem:[#allocation14 + $0x6c] sm:$0xf]
    %v675 = vld [vmem:[#allocation14 + $0x70] sm:$0xf]
    %v676 = vld [vmem:[#allocation14 + $0x74] sm:$0xf]
    %v677 = vld [vmem:[#allocation14 + $0x78] sm:$0xf]
    %v678 = vld [vmem:[#allocation14 + $0x7c] sm:$0xf]
    %v679 = vld [vmem:[#allocation14 + $0x80] sm:$0xf]
    %v680 = vld [vmem:[#allocation14 + $0x84] sm:$0xf]
    %v681 = vld [vmem:[#allocation14 + $0x88] sm:$0xf]
    %v682 = vld [vmem:[#allocation14 + $0x8c] sm:$0xf]
    %v683 = vld [vmem:[#allocation14 + $0x90] sm:$0xf]
    %v684 = vld [vmem:[#allocation14 + $0x94] sm:$0xf]
    %v685 = vld [vmem:[#allocation14 + $0x98] sm:$0xf]
    %v686 = vld [vmem:[#allocation14 + $0x9c] sm:$0xf]
    %v687 = vld [vmem:[#allocation14 + $0xa0] sm:$0xf]
    %v688 = vld [vmem:[#allocation14 + $0xa4] sm:$0xf]
    %v689 = vld [vmem:[#allocation14 + $0xa8] sm:$0xf]
    %v690 = vld [vmem:[#allocation14 + $0xac] sm:$0xf]
    %v691 = vld [vmem:[#allocation14 + $0xb0] sm:$0xf]
    %v692 = vld [vmem:[#allocation14 + $0xb4] sm:$0xf]
    %v693 = vld [vmem:[#allocation14 + $0xb8] sm:$0xf]
    %v694 = vld [vmem:[#allocation14 + $0xbc] sm:$0xf]
    %v695 = vld [vmem:[#allocation14 + $0xc0] sm:$0xf]
    %v696 = vld [vmem:[#allocation14 + $0xc4] sm:$0xf]
    %v697 = vld [vmem:[#allocation14 + $0xc8] sm:$0xf]
    %v698 = vld [vmem:[#allocation14 + $0xcc] sm:$0xf]
    %v699 = vld [vmem:[#allocation14 + $0xd0] sm:$0xf]
    %v700 = vld [vmem:[#allocation14 + $0xd4] sm:$0xf]
    %v701 = vld [vmem:[#allocation14 + $0xd8] sm:$0xf]
    %v702 = vld [vmem:[#allocation14 + $0xdc] sm:$0xf]
    %v703 = vld [vmem:[#allocation14 + $0xe0] sm:$0xf]
    %v704 = vld [vmem:[#allocation14 + $0xe4] sm:$0xf]
    %v705 = vld [vmem:[#allocation14 + $0xe8] sm:$0xf]
    %v706 = vld [vmem:[#allocation14 + $0xec] sm:$0xf]
    %v707 = vld [vmem:[#allocation14 + $0xf0] sm:$0xf]
    %v708 = vld [vmem:[#allocation14 + $0xf4] sm:$0xf]
    %v709 = vld [vmem:[#allocation14 + $0xf8] sm:$0xf]
    %v710 = vld [vmem:[#allocation14 + $0xfc] sm:$0xf]
    %v711 = vld [vmem:[#allocation14 + $0x100] sm:$0xf]
    %v712 = vld [vmem:[#allocation14 + $0x104] sm:$0xf]
    %v713 = vld [vmem:[#allocation14 + $0x108] sm:$0xf]
    %v714 = vld [vmem:[#allocation14 + $0x10c] sm:$0xf]
    %v715 = vld [vmem:[#allocation14 + $0x110] sm:$0xf]
    %v716 = vld [vmem:[#allocation14 + $0x114] sm:$0xf]
    %v717 = vld [vmem:[#allocation14 + $0x118] sm:$0xf]
    %v718 = vld [vmem:[#allocation14 + $0x11c] sm:$0xf]
    %v719 = vld [vmem:[#allocation14 + $0x120] sm:$0xf]
    %v720 = vld [vmem:[#allocation14 + $0x124] sm:$0xf]
    %v721 = vld [vmem:[#allocation14 + $0x128] sm:$0xf]
    %v722 = vld [vmem:[#allocation14 + $0x12c] sm:$0xf]
    %v723 = vld [vmem:[#allocation14 + $0x130] sm:$0xf]
    %v724 = vld [vmem:[#allocation14 + $0x134] sm:$0xf]
    %v725 = vld [vmem:[#allocation14 + $0x138] sm:$0xf]
    %v726 = vld [vmem:[#allocation14 + $0x13c] sm:$0xf]
    %v727 = vld [vmem:[#allocation16] sm:$0xf]
    %v728 = vld [vmem:[#allocation16 + $0x4] sm:$0xf]
    %v729 = vld [vmem:[#allocation16 + $0x8] sm:$0xf]
    %v730 = vld [vmem:[#allocation16 + $0xc] sm:$0xf]
    %v731 = vld [vmem:[#allocation16 + $0x10] sm:$0xf]
    %v732 = vld [vmem:[#allocation16 + $0x14] sm:$0xf]
    %v733 = vld [vmem:[#allocation16 + $0x18] sm:$0xf]
    %v734 = vld [vmem:[#allocation16 + $0x1c] sm:$0xf]
    %v735 = vld [vmem:[#allocation16 + $0x20] sm:$0xf]
    %v736 = vld [vmem:[#allocation16 + $0x24] sm:$0xf]
    %v737 = vld [vmem:[#allocation16 + $0x28] sm:$0xf]
    %v738 = vld [vmem:[#allocation16 + $0x2c] sm:$0xf]
    %v739 = vld [vmem:[#allocation16 + $0x30] sm:$0xf]
    %v740 = vld [vmem:[#allocation16 + $0x34] sm:$0xf]
    %v741 = vld [vmem:[#allocation16 + $0x38] sm:$0xf]
    %v742 = vld [vmem:[#allocation16 + $0x3c] sm:$0xf]
    %v759 = vunpack.c.l.b16 %v727
    %v760 = vunpack.c.l.b16 %v728
    %v761 = vunpack.c.l.b16 %v729
    %v762 = vunpack.c.l.b16 %v730
    %v763 = vunpack.c.l.b16 %v731
    %v764 = vunpack.c.l.b16 %v732
    %v765 = vunpack.c.l.b16 %v733
    %v766 = vunpack.c.l.b16 %v734
    %v767 = vunpack.c.l.b16 %v735
    %v768 = vunpack.c.l.b16 %v736
    %v769 = vunpack.c.l.b16 %v737
    %v770 = vunpack.c.l.b16 %v738
    %v771 = vunpack.c.l.b16 %v739
    %v772 = vunpack.c.l.b16 %v740
    %v773 = vunpack.c.l.b16 %v741
    %v774 = vunpack.c.l.b16 %v742
    %v775 = vpack.c.b16 %v760, %v759
    %v776 = vpack.c.b16 %v762, %v761
    %v777 = vpack.c.b16 %v764, %v763
    %v778 = vpack.c.b16 %v766, %v765
    %v779 = vpack.c.b16 %v768, %v767
    %v780 = vpack.c.b16 %v770, %v769
    %v781 = vpack.c.b16 %v772, %v771
    %v782 = vpack.c.b16 %v774, %v773
    %791 = vmatpush.bf16.msra.mxu0 %v782
    %792 = vmatpush.bf16.msra.mxu0 %v781
    %793 = vmatpush.bf16.msra.mxu0 %v780
    %794 = vmatpush.bf16.msra.mxu0 %v779
    %795 = vmatpush.bf16.msra.mxu0 %v778
    %796 = vmatpush.bf16.msra.mxu0 %v777
    %797 = vmatpush.bf16.msra.mxu0 %v776
    %798 = vmatpush.bf16.msra.mxu0 %v775
    %799 = vmatmul.bf16.gmra.mxu0 %v566
    %v800 = vpop.f32.mrf.mxu0
    %v801 = vadd.f32 0.0, %v800
    %v802 = vpop.f32.mrf.mxu0
    %v803 = vadd.f32 0.0, %v802
    %804 = vdwg.mxu0
    %v885 = vunpack.c.l.b16 %v647
    %v886 = vunpack.c.l.b16 %v648
    %v887 = vunpack.c.l.b16 %v649
    %v888 = vunpack.c.l.b16 %v650
    %v889 = vunpack.c.l.b16 %v651
    %v890 = vunpack.c.l.b16 %v652
    %v891 = vunpack.c.l.b16 %v653
    %v892 = vunpack.c.l.b16 %v654
    %v893 = vunpack.c.l.b16 %v655
    %v894 = vunpack.c.l.b16 %v656
    %v895 = vunpack.c.l.b16 %v657
    %v896 = vunpack.c.l.b16 %v658
    %v897 = vunpack.c.l.b16 %v659
    %v898 = vunpack.c.l.b16 %v660
    %v899 = vunpack.c.l.b16 %v661
    %v900 = vunpack.c.l.b16 %v662
    %v901 = vunpack.c.l.b16 %v663
    %v902 = vunpack.c.l.b16 %v664
    %v903 = vunpack.c.l.b16 %v665
    %v904 = vunpack.c.l.b16 %v666
    %v905 = vunpack.c.l.b16 %v667
    %v906 = vunpack.c.l.b16 %v668
    %v907 = vunpack.c.l.b16 %v669
    %v908 = vunpack.c.l.b16 %v670
    %v909 = vunpack.c.l.b16 %v671
    %v910 = vunpack.c.l.b16 %v672
    %v911 = vunpack.c.l.b16 %v673
    %v912 = vunpack.c.l.b16 %v674
    %v913 = vunpack.c.l.b16 %v675
    %v914 = vunpack.c.l.b16 %v676
    %v915 = vunpack.c.l.b16 %v677
    %v916 = vunpack.c.l.b16 %v678
    %v917 = vunpack.c.l.b16 %v679
    %v918 = vunpack.c.l.b16 %v680
    %v919 = vunpack.c.l.b16 %v681
    %v920 = vunpack.c.l.b16 %v682
    %v921 = vunpack.c.l.b16 %v683
    %v922 = vunpack.c.l.b16 %v684
    %v923 = vunpack.c.l.b16 %v685
    %v924 = vunpack.c.l.b16 %v686
    %v925 = vunpack.c.l.b16 %v687
    %v926 = vunpack.c.l.b16 %v688
    %v927 = vunpack.c.l.b16 %v689
    %v928 = vunpack.c.l.b16 %v690
    %v929 = vunpack.c.l.b16 %v691
    %v930 = vunpack.c.l.b16 %v692
    %v931 = vunpack.c.l.b16 %v693
    %v932 = vunpack.c.l.b16 %v694
    %v933 = vunpack.c.l.b16 %v695
    %v934 = vunpack.c.l.b16 %v696
    %v935 = vunpack.c.l.b16 %v697
    %v936 = vunpack.c.l.b16 %v698
    %v937 = vunpack.c.l.b16 %v699
    %v938 = vunpack.c.l.b16 %v700
    %v939 = vunpack.c.l.b16 %v701
    %v940 = vunpack.c.l.b16 %v702
    %v941 = vunpack.c.l.b16 %v703
    %v942 = vunpack.c.l.b16 %v704
    %v943 = vunpack.c.l.b16 %v705
    %v944 = vunpack.c.l.b16 %v706
    %v945 = vunpack.c.l.b16 %v707
    %v946 = vunpack.c.l.b16 %v708
    %v947 = vunpack.c.l.b16 %v709
    %v948 = vunpack.c.l.b16 %v710
    %v949 = vunpack.c.l.b16 %v711
    %v950 = vunpack.c.l.b16 %v712
    %v951 = vunpack.c.l.b16 %v713
    %v952 = vunpack.c.l.b16 %v714
    %v953 = vunpack.c.l.b16 %v715
    %v954 = vunpack.c.l.b16 %v716
    %v955 = vunpack.c.l.b16 %v717
    %v956 = vunpack.c.l.b16 %v718
    %v957 = vunpack.c.l.b16 %v719
    %v958 = vunpack.c.l.b16 %v720
    %v959 = vunpack.c.l.b16 %v721
    %v960 = vunpack.c.l.b16 %v722
    %v961 = vunpack.c.l.b16 %v723
    %v962 = vunpack.c.l.b16 %v724
    %v963 = vunpack.c.l.b16 %v725
    %v964 = vunpack.c.l.b16 %v726
    %v965 = vpack.c.b16 %v886, %v885
    %v966 = vpack.c.b16 %v888, %v887
    %v967 = vpack.c.b16 %v890, %v889
    %v968 = vpack.c.b16 %v892, %v891
    %v969 = vpack.c.b16 %v894, %v893
    %v970 = vpack.c.b16 %v896, %v895
    %v971 = vpack.c.b16 %v898, %v897
    %v972 = vpack.c.b16 %v900, %v899
    %v973 = vpack.c.b16 %v902, %v901
    %v974 = vpack.c.b16 %v904, %v903
    %v975 = vpack.c.b16 %v906, %v905
    %v976 = vpack.c.b16 %v908, %v907
    %v977 = vpack.c.b16 %v910, %v909
    %v978 = vpack.c.b16 %v912, %v911
    %v979 = vpack.c.b16 %v914, %v913
    %v980 = vpack.c.b16 %v916, %v915
    %v981 = vpack.c.b16 %v918, %v917
    %v982 = vpack.c.b16 %v920, %v919
    %v983 = vpack.c.b16 %v922, %v921
    %v984 = vpack.c.b16 %v924, %v923
    %v985 = vpack.c.b16 %v926, %v925
    %v986 = vpack.c.b16 %v928, %v927
    %v987 = vpack.c.b16 %v930, %v929
    %v988 = vpack.c.b16 %v932, %v931
    %v989 = vpack.c.b16 %v934, %v933
    %v990 = vpack.c.b16 %v936, %v935
    %v991 = vpack.c.b16 %v938, %v937
    %v992 = vpack.c.b16 %v940, %v939
    %v993 = vpack.c.b16 %v942, %v941
    %v994 = vpack.c.b16 %v944, %v943
    %v995 = vpack.c.b16 %v946, %v945
    %v996 = vpack.c.b16 %v948, %v947
    %v997 = vpack.c.b16 %v950, %v949
    %v998 = vpack.c.b16 %v952, %v951
    %v999 = vpack.c.b16 %v954, %v953
    %v1000 = vpack.c.b16 %v956, %v955
    %v1001 = vpack.c.b16 %v958, %v957
    %v1002 = vpack.c.b16 %v960, %v959
    %v1003 = vpack.c.b16 %v962, %v961
    %v1004 = vpack.c.b16 %v964, %v963
    %1045 = vmatpush.bf16.msra.mxu0 %v972
    %1046 = vmatpush.bf16.msra.mxu0 %v971
    %1047 = vmatpush.bf16.msra.mxu0 %v970
    %1048 = vmatpush.bf16.msra.mxu0 %v969
    %1049 = vmatpush.bf16.msra.mxu0 %v968
    %1050 = vmatpush.bf16.msra.mxu0 %v967
    %1051 = vmatpush.bf16.msra.mxu0 %v966
    %1052 = vmatpush.bf16.msra.mxu0 %v965
    %1053 = vmatmul.bf16.gmra.mxu0 %v642
    %v1054 = vpop.f32.mrf.mxu0
    %v1055 = vadd.f32 %v801, %v1054
    %v1056 = vpop.f32.mrf.mxu0
    %v1057 = vadd.f32 %v803, %v1056
    %1058 = vdwg.mxu0
    %1059 = vmatpush.bf16.msra.mxu0 %v980
    %1060 = vmatpush.bf16.msra.mxu0 %v979
    %1061 = vmatpush.bf16.msra.mxu0 %v978
    %1062 = vmatpush.bf16.msra.mxu0 %v977
    %1063 = vmatpush.bf16.msra.mxu0 %v976
    %1064 = vmatpush.bf16.msra.mxu0 %v975
    %1065 = vmatpush.bf16.msra.mxu0 %v974
    %1066 = vmatpush.bf16.msra.mxu0 %v973
    %1067 = vmatmul.bf16.gmra.mxu0 %v643
    %v1068 = vpop.f32.mrf.mxu0
    %v1069 = vadd.f32 %v1055, %v1068
    %v1070 = vpop.f32.mrf.mxu0
    %v1071 = vadd.f32 %v1057, %v1070
    %1072 = vdwg.mxu0
    %1073 = vmatpush.bf16.msra.mxu0 %v988
    %1074 = vmatpush.bf16.msra.mxu0 %v987
    %1075 = vmatpush.bf16.msra.mxu0 %v986
    %1076 = vmatpush.bf16.msra.mxu0 %v985
    %1077 = vmatpush.bf16.msra.mxu0 %v984
    %1078 = vmatpush.bf16.msra.mxu0 %v983
    %1079 = vmatpush.bf16.msra.mxu0 %v982
    %1080 = vmatpush.bf16.msra.mxu0 %v981
    %1081 = vmatmul.bf16.gmra.mxu0 %v644
    %v1082 = vpop.f32.mrf.mxu0
    %v1083 = vadd.f32 %v1069, %v1082
    %v1084 = vpop.f32.mrf.mxu0
    %v1085 = vadd.f32 %v1071, %v1084
    %1086 = vdwg.mxu0
    %1087 = vmatpush.bf16.msra.mxu0 %v996
    %1088 = vmatpush.bf16.msra.mxu0 %v995
    %1089 = vmatpush.bf16.msra.mxu0 %v994
    %1090 = vmatpush.bf16.msra.mxu0 %v993
    %1091 = vmatpush.bf16.msra.mxu0 %v992
    %1092 = vmatpush.bf16.msra.mxu0 %v991
    %1093 = vmatpush.bf16.msra.mxu0 %v990
    %1094 = vmatpush.bf16.msra.mxu0 %v989
    %1095 = vmatmul.bf16.gmra.mxu0 %v645
    %v1096 = vpop.f32.mrf.mxu0
    %v1097 = vadd.f32 %v1083, %v1096
    %v1098 = vpop.f32.mrf.mxu0
    %v1099 = vadd.f32 %v1085, %v1098
    %1100 = vdwg.mxu0
    %1101 = vmatpush.bf16.msra.mxu0 %v1004
    %1102 = vmatpush.bf16.msra.mxu0 %v1003
    %1103 = vmatpush.bf16.msra.mxu0 %v1002
    %1104 = vmatpush.bf16.msra.mxu0 %v1001
    %1105 = vmatpush.bf16.msra.mxu0 %v1000
    %1106 = vmatpush.bf16.msra.mxu0 %v999
    %1107 = vmatpush.bf16.msra.mxu0 %v998
    %1108 = vmatpush.bf16.msra.mxu0 %v997
    %1109 = vmatmul.bf16.gmra.mxu0 %v646
    %v1110 = vpop.f32.mrf.mxu0
    %v1111 = vadd.f32 %v1097, %v1110
    %v1112 = vpop.f32.mrf.mxu0
    %v1113 = vadd.f32 %v1099, %v1112
    %1114 = vdwg.mxu0
    %v1115 = vld [vmem:[%s21] sm:$0x1]
    %v1117 = vperm.slane %v1115, 0
    %v1119 = vadd.f32 %v1111, %v1117
    %v1120 = vadd.f32 %v1113, %v1117
    %vm1121 = vcmp.ge.f32.partialorder %v1119, 0.0
    %vm1122 = vcmp.ge.f32.partialorder %v1120, 0.0
    %v1123 = vmul.f32 %v1119, 0.01
    %v1124 = vmul.f32 %v1120, 0.01
    %v1125 = vsel %vm1121, %v1119, %v1123
    %v1126 = vsel %vm1122, %v1120, %v1124
    %v1127 = vld [vmem:[#allocation11] sm:$0xf]
    %v1128 = vld [vmem:[#allocation11 + $0x4] sm:$0xf]
    %v1129 = vpack.c.bf16 %v551, %v550
    %v1132 = vunpack.c.l.b16 %v1127
    %v1133 = vunpack.c.l.b16 %v1128
    %v1134 = vpack.c.b16 %v1133, %v1132
    %v1136 = vsel %vm592, %v1134, 0
    %1138 = vmatpush.bf16.msra.mxu0 0
    %1139 = vmatpush.bf16.msra.mxu0 0
    %1140 = vmatpush.bf16.msra.mxu0 0
    %1141 = vmatpush.bf16.msra.mxu0 0
    %1142 = vmatpush.bf16.msra.mxu0 0
    %1143 = vmatpush.bf16.msra.mxu0 0
    %1144 = vmatpush.bf16.msra.mxu0 0
    %1145 = vmatpush.bf16.msra.mxu0 %v1129
    %1146 = vmatmul.bf16.gmra.mxu0 %v1136
    %v1147 = vpop.f32.mrf.mxu0
    %v1148 = vadd.f32 0.0, %v1147
    %v1149 = vpop.f32.mrf.mxu0
    %v1150 = vadd.f32 0.0, %v1149
    %1151 = vdwg.mxu0
    %v1152 = vpack.c.bf16 %v1150, %v1148
    %v1153 = vld [vmem:[#allocation17] sm:$0xf]
    %v1154 = vld [vmem:[#allocation17 + $0x4] sm:$0xf]
    %v1155 = vld [vmem:[#allocation17 + $0x8] sm:$0xf]
    %v1156 = vld [vmem:[#allocation17 + $0xc] sm:$0xf]
    %v1157 = vld [vmem:[#allocation17 + $0x10] sm:$0xf]
    %v1158 = vld [vmem:[#allocation17 + $0x14] sm:$0xf]
    %v1159 = vld [vmem:[#allocation17 + $0x18] sm:$0xf]
    %v1160 = vld [vmem:[#allocation17 + $0x1c] sm:$0xf]
    %v1161 = vld [vmem:[#allocation17 + $0x20] sm:$0xf]
    %v1162 = vld [vmem:[#allocation17 + $0x24] sm:$0xf]
    %v1163 = vld [vmem:[#allocation17 + $0x28] sm:$0xf]
    %v1164 = vld [vmem:[#allocation17 + $0x2c] sm:$0xf]
    %v1165 = vld [vmem:[#allocation17 + $0x30] sm:$0xf]
    %v1166 = vld [vmem:[#allocation17 + $0x34] sm:$0xf]
    %v1167 = vld [vmem:[#allocation17 + $0x38] sm:$0xf]
    %v1168 = vld [vmem:[#allocation17 + $0x3c] sm:$0xf]
    %v1169 = vpack.c.bf16 %v553, %v552
    %v1170 = vld [vmem:[#allocation19] sm:$0xf]
    %v1171 = vld [vmem:[#allocation19 + $0x4] sm:$0xf]
    %v1172 = vld [vmem:[#allocation19 + $0x8] sm:$0xf]
    %v1173 = vld [vmem:[#allocation19 + $0xc] sm:$0xf]
    %v1174 = vld [vmem:[#allocation19 + $0x10] sm:$0xf]
    %v1175 = vld [vmem:[#allocation19 + $0x14] sm:$0xf]
    %v1176 = vld [vmem:[#allocation19 + $0x18] sm:$0xf]
    %v1177 = vld [vmem:[#allocation19 + $0x1c] sm:$0xf]
    %v1178 = vld [vmem:[#allocation19 + $0x20] sm:$0xf]
    %v1179 = vld [vmem:[#allocation19 + $0x24] sm:$0xf]
    %v1180 = vld [vmem:[#allocation19 + $0x28] sm:$0xf]
    %v1181 = vld [vmem:[#allocation19 + $0x2c] sm:$0xf]
    %v1182 = vld [vmem:[#allocation19 + $0x30] sm:$0xf]
    %v1183 = vld [vmem:[#allocation19 + $0x34] sm:$0xf]
    %v1184 = vld [vmem:[#allocation19 + $0x38] sm:$0xf]
    %v1185 = vld [vmem:[#allocation19 + $0x3c] sm:$0xf]
    %v1202 = vunpack.c.l.b16 %v1170
    %v1203 = vunpack.c.l.b16 %v1171
    %v1204 = vunpack.c.l.b16 %v1172
    %v1205 = vunpack.c.l.b16 %v1173
    %v1206 = vunpack.c.l.b16 %v1174
    %v1207 = vunpack.c.l.b16 %v1175
    %v1208 = vunpack.c.l.b16 %v1176
    %v1209 = vunpack.c.l.b16 %v1177
    %v1210 = vunpack.c.l.b16 %v1178
    %v1211 = vunpack.c.l.b16 %v1179
    %v1212 = vunpack.c.l.b16 %v1180
    %v1213 = vunpack.c.l.b16 %v1181
    %v1214 = vunpack.c.l.b16 %v1182
    %v1215 = vunpack.c.l.b16 %v1183
    %v1216 = vunpack.c.l.b16 %v1184
    %v1217 = vunpack.c.l.b16 %v1185
    %v1218 = vpack.c.b16 %v1203, %v1202
    %v1219 = vpack.c.b16 %v1205, %v1204
    %v1220 = vpack.c.b16 %v1207, %v1206
    %v1221 = vpack.c.b16 %v1209, %v1208
    %v1222 = vpack.c.b16 %v1211, %v1210
    %v1223 = vpack.c.b16 %v1213, %v1212
    %v1224 = vpack.c.b16 %v1215, %v1214
    %v1225 = vpack.c.b16 %v1217, %v1216
    %1234 = vmatpush.bf16.msra.mxu0 %v1225
    %1235 = vmatpush.bf16.msra.mxu0 %v1224
    %1236 = vmatpush.bf16.msra.mxu0 %v1223
    %1237 = vmatpush.bf16.msra.mxu0 %v1222
    %1238 = vmatpush.bf16.msra.mxu0 %v1221
    %1239 = vmatpush.bf16.msra.mxu0 %v1220
    %1240 = vmatpush.bf16.msra.mxu0 %v1219
    %1241 = vmatpush.bf16.msra.mxu0 %v1218
    %1242 = vmatmul.bf16.gmra.mxu0 %v1169
    %v1243 = vpop.f32.mrf.mxu0
    %v1244 = vadd.f32 0.0, %v1243
    %v1245 = vpop.f32.mrf.mxu0
    %v1246 = vadd.f32 0.0, %v1245
    %1247 = vdwg.mxu0
    %v1264 = vunpack.c.l.b16 %v1153
    %v1265 = vunpack.c.l.b16 %v1154
    %v1266 = vunpack.c.l.b16 %v1155
    %v1267 = vunpack.c.l.b16 %v1156
    %v1268 = vunpack.c.l.b16 %v1157
    %v1269 = vunpack.c.l.b16 %v1158
    %v1270 = vunpack.c.l.b16 %v1159
    %v1271 = vunpack.c.l.b16 %v1160
    %v1272 = vunpack.c.l.b16 %v1161
    %v1273 = vunpack.c.l.b16 %v1162
    %v1274 = vunpack.c.l.b16 %v1163
    %v1275 = vunpack.c.l.b16 %v1164
    %v1276 = vunpack.c.l.b16 %v1165
    %v1277 = vunpack.c.l.b16 %v1166
    %v1278 = vunpack.c.l.b16 %v1167
    %v1279 = vunpack.c.l.b16 %v1168
    %v1280 = vpack.c.b16 %v1265, %v1264
    %v1281 = vpack.c.b16 %v1267, %v1266
    %v1282 = vpack.c.b16 %v1269, %v1268
    %v1283 = vpack.c.b16 %v1271, %v1270
    %v1284 = vpack.c.b16 %v1273, %v1272
    %v1285 = vpack.c.b16 %v1275, %v1274
    %v1286 = vpack.c.b16 %v1277, %v1276
    %v1287 = vpack.c.b16 %v1279, %v1278
    %1296 = vmatpush.bf16.msra.mxu0 %v1287
    %1297 = vmatpush.bf16.msra.mxu0 %v1286
    %1298 = vmatpush.bf16.msra.mxu0 %v1285
    %1299 = vmatpush.bf16.msra.mxu0 %v1284
    %1300 = vmatpush.bf16.msra.mxu0 %v1283
    %1301 = vmatpush.bf16.msra.mxu0 %v1282
    %1302 = vmatpush.bf16.msra.mxu0 %v1281
    %1303 = vmatpush.bf16.msra.mxu0 %v1280
    %1304 = vmatmul.bf16.gmra.mxu0 %v1152
    %v1305 = vpop.f32.mrf.mxu0
    %v1306 = vadd.f32 %v1244, %v1305
    %v1307 = vpop.f32.mrf.mxu0
    %v1308 = vadd.f32 %v1246, %v1307
    %1309 = vdwg.mxu0
    %v1310 = vld [vmem:[#allocation20] sm:$0x1]
    %v1312 = vperm.slane %v1310, 0
    %v1314 = vadd.f32 %v1306, %v1312
    %v1315 = vadd.f32 %v1308, %v1312
    %vm1316 = vcmp.ge.f32.partialorder %v1314, 0.0
    %vm1317 = vcmp.ge.f32.partialorder %v1315, 0.0
    %v1318 = vmul.f32 %v1314, 0.01
    %v1319 = vmul.f32 %v1315, 0.01
    %v1320 = vsel %vm1316, %v1314, %v1318
    %v1321 = vsel %vm1317, %v1315, %v1319
    %v1322 = vld [vmem:[#allocation13] sm:$0xf]
    %v1323 = vpack.c.bf16 %v554, %v554
    %vm1324 = vcmask 64512
    %v1326 = vsel %vm1324, %v1322, 0
    %vm1328 = vcmask 1043456
    %v1330 = vsel %vm1328, %v1323, 0
    %1332 = vmatpush.bf16.msra.mxu0 0
    %1333 = vmatpush.bf16.msra.mxu0 0
    %1334 = vmatpush.bf16.msra.mxu0 0
    %1335 = vmatpush.bf16.msra.mxu0 0
    %1336 = vmatpush.bf16.msra.mxu0 0
    %1337 = vmatpush.bf16.msra.mxu0 0
    %1338 = vmatpush.bf16.msra.mxu0 0
    %1339 = vmatpush.bf16.msra.mxu0 %v1330
    %1340 = vmatmul.bf16.gmra.mxu0 %v1326
    %v1341 = vpop.f32.mrf.mxu0
    %v1342 = vadd.f32 0.0, %v1341
    %v1343 = vpop.f32.mrf.mxu0
    %1344 = vdwg.mxu0
    %v1345 = vpack.c.bf16 %v1342, %v1342
    %v1346 = vld [vmem:[#allocation22] sm:$0xf]
    %v1347 = vld [vmem:[#allocation22 + $0x4] sm:$0xf]
    %v1348 = vld [vmem:[#allocation22 + $0x8] sm:$0xf]
    %v1349 = vld [vmem:[#allocation22 + $0xc] sm:$0xf]
    %v1350 = vld [vmem:[#allocation22 + $0x10] sm:$0xf]
    %v1351 = vld [vmem:[#allocation22 + $0x14] sm:$0xf]
    %v1352 = vld [vmem:[#allocation22 + $0x18] sm:$0xf]
    %v1353 = vld [vmem:[#allocation22 + $0x1c] sm:$0xf]
    %v1354 = vld [vmem:[#allocation22 + $0x20] sm:$0xf]
    %v1355 = vld [vmem:[#allocation22 + $0x24] sm:$0xf]
    %v1356 = vld [vmem:[#allocation22 + $0x28] sm:$0xf]
    %v1357 = vld [vmem:[#allocation22 + $0x2c] sm:$0xf]
    %v1358 = vld [vmem:[#allocation22 + $0x30] sm:$0xf]
    %v1359 = vld [vmem:[#allocation22 + $0x34] sm:$0xf]
    %v1360 = vld [vmem:[#allocation22 + $0x38] sm:$0xf]
    %v1361 = vld [vmem:[#allocation22 + $0x3c] sm:$0xf]
    %v1362 = vpack.c.bf16 %v555, %v555
    %v1363 = vld [vmem:[#allocation23] sm:$0xf]
    %v1364 = vld [vmem:[#allocation23 + $0x4] sm:$0xf]
    %v1365 = vld [vmem:[#allocation23 + $0x8] sm:$0xf]
    %v1366 = vld [vmem:[#allocation23 + $0xc] sm:$0xf]
    %v1367 = vld [vmem:[#allocation23 + $0x10] sm:$0xf]
    %v1368 = vld [vmem:[#allocation23 + $0x14] sm:$0xf]
    %v1369 = vld [vmem:[#allocation23 + $0x18] sm:$0xf]
    %v1370 = vld [vmem:[#allocation23 + $0x1c] sm:$0xf]
    %v1371 = vld [vmem:[#allocation23 + $0x20] sm:$0xf]
    %v1372 = vld [vmem:[#allocation23 + $0x24] sm:$0xf]
    %v1373 = vld [vmem:[#allocation23 + $0x28] sm:$0xf]
    %v1374 = vld [vmem:[#allocation23 + $0x2c] sm:$0xf]
    %v1375 = vld [vmem:[#allocation23 + $0x30] sm:$0xf]
    %v1376 = vld [vmem:[#allocation23 + $0x34] sm:$0xf]
    %v1377 = vld [vmem:[#allocation23 + $0x38] sm:$0xf]
    %v1378 = vld [vmem:[#allocation23 + $0x3c] sm:$0xf]
    %v1395 = vunpack.c.l.b16 %v1363
    %v1396 = vunpack.c.l.b16 %v1364
    %v1397 = vunpack.c.l.b16 %v1365
    %v1398 = vunpack.c.l.b16 %v1366
    %v1399 = vunpack.c.l.b16 %v1367
    %v1400 = vunpack.c.l.b16 %v1368
    %v1401 = vunpack.c.l.b16 %v1369
    %v1402 = vunpack.c.l.b16 %v1370
    %v1403 = vunpack.c.l.b16 %v1371
    %v1404 = vunpack.c.l.b16 %v1372
    %v1405 = vunpack.c.l.b16 %v1373
    %v1406 = vunpack.c.l.b16 %v1374
    %v1407 = vunpack.c.l.b16 %v1375
    %v1408 = vunpack.c.l.b16 %v1376
    %v1409 = vunpack.c.l.b16 %v1377
    %v1410 = vunpack.c.l.b16 %v1378
    %v1411 = vpack.c.b16 %v1396, %v1395
    %v1412 = vpack.c.b16 %v1398, %v1397
    %v1413 = vpack.c.b16 %v1400, %v1399
    %v1414 = vpack.c.b16 %v1402, %v1401
    %v1415 = vpack.c.b16 %v1404, %v1403
    %v1416 = vpack.c.b16 %v1406, %v1405
    %v1417 = vpack.c.b16 %v1408, %v1407
    %v1418 = vpack.c.b16 %v1410, %v1409
    %1427 = vmatpush.bf16.msra.mxu0 %v1418
    %1428 = vmatpush.bf16.msra.mxu0 %v1417
    %1429 = vmatpush.bf16.msra.mxu0 %v1416
    %1430 = vmatpush.bf16.msra.mxu0 %v1415
    %1431 = vmatpush.bf16.msra.mxu0 %v1414
    %1432 = vmatpush.bf16.msra.mxu0 %v1413
    %1433 = vmatpush.bf16.msra.mxu0 %v1412
    %1434 = vmatpush.bf16.msra.mxu0 %v1411
    %1435 = vmatmul.bf16.gmra.mxu0 %v1362
    %v1436 = vpop.f32.mrf.mxu0
    %v1437 = vadd.f32 0.0, %v1436
    %v1438 = vpop.f32.mrf.mxu0
    %1439 = vdwg.mxu0
    %v1456 = vunpack.c.l.b16 %v1346
    %v1457 = vunpack.c.l.b16 %v1347
    %v1458 = vunpack.c.l.b16 %v1348
    %v1459 = vunpack.c.l.b16 %v1349
    %v1460 = vunpack.c.l.b16 %v1350
    %v1461 = vunpack.c.l.b16 %v1351
    %v1462 = vunpack.c.l.b16 %v1352
    %v1463 = vunpack.c.l.b16 %v1353
    %v1464 = vunpack.c.l.b16 %v1354
    %v1465 = vunpack.c.l.b16 %v1355
    %v1466 = vunpack.c.l.b16 %v1356
    %v1467 = vunpack.c.l.b16 %v1357
    %v1468 = vunpack.c.l.b16 %v1358
    %v1469 = vunpack.c.l.b16 %v1359
    %v1470 = vunpack.c.l.b16 %v1360
    %v1471 = vunpack.c.l.b16 %v1361
    %v1472 = vpack.c.b16 %v1457, %v1456
    %v1473 = vpack.c.b16 %v1459, %v1458
    %v1474 = vpack.c.b16 %v1461, %v1460
    %v1475 = vpack.c.b16 %v1463, %v1462
    %v1476 = vpack.c.b16 %v1465, %v1464
    %v1477 = vpack.c.b16 %v1467, %v1466
    %v1478 = vpack.c.b16 %v1469, %v1468
    %v1479 = vpack.c.b16 %v1471, %v1470
    %1488 = vmatpush.bf16.msra.mxu0 %v1479
    %1489 = vmatpush.bf16.msra.mxu0 %v1478
    %1490 = vmatpush.bf16.msra.mxu0 %v1477
    %1491 = vmatpush.bf16.msra.mxu0 %v1476
    %1492 = vmatpush.bf16.msra.mxu0 %v1475
    %1493 = vmatpush.bf16.msra.mxu0 %v1474
    %1494 = vmatpush.bf16.msra.mxu0 %v1473
    %1495 = vmatpush.bf16.msra.mxu0 %v1472
    %1496 = vmatmul.bf16.gmra.mxu0 %v1345
    %v1497 = vpop.f32.mrf.mxu0
    %v1498 = vadd.f32 %v1437, %v1497
    %v1499 = vpop.f32.mrf.mxu0
    %1500 = vdwg.mxu0
    %v1501 = vld [vmem:[#allocation25] sm:$0x1]
    %v1503 = vperm.slane %v1501, 0
    %v1505 = vadd.f32 %v1498, %v1503
    %vm1506 = vcmp.ge.f32.partialorder %v1505, 0.0
    %v1507 = vmul.f32 %v1505, 0.01
    %v1508 = vsel %vm1506, %v1505, %v1507
    %v1509 = vpack.c.bf16 %v1126, %v1125
    %1510 = vmatpush.bf16.msra.mxu0 0
    %1511 = vmatpush.bf16.msra.mxu0 0
    %1512 = vmatpush.bf16.msra.mxu0 0
    %1513 = vmatpush.bf16.msra.mxu0 0
    %1514 = vmatpush.bf16.msra.mxu0 0
    %1515 = vmatpush.bf16.msra.mxu0 0
    %1516 = vmatpush.bf16.msra.mxu0 0
    %1517 = vmatpush.bf16.msra.mxu0 %v1509
    %1518 = vmatmul.bf16.gmra.mxu0 %v594
    %v1519 = vpop.f32.mrf.mxu0
    %v1520 = vadd.f32 0.0, %v1519
    %v1521 = vpop.f32.mrf.mxu0
    %v1522 = vadd.f32 0.0, %v1521
    %1523 = vmatmul.bf16.gmra.mxu0 %v597
    %v1524 = vpop.f32.mrf.mxu0
    %v1525 = vadd.f32 0.0, %v1524
    %v1526 = vpop.f32.mrf.mxu0
    %v1527 = vadd.f32 0.0, %v1526
    %1528 = vmatmul.bf16.gmra.mxu0 %v600
    %v1529 = vpop.f32.mrf.mxu0
    %v1530 = vadd.f32 0.0, %v1529
    %v1531 = vpop.f32.mrf.mxu0
    %v1532 = vadd.f32 0.0, %v1531
    %1533 = vmatmul.bf16.gmra.mxu0 %v603
    %v1534 = vpop.f32.mrf.mxu0
    %v1535 = vadd.f32 0.0, %v1534
    %v1536 = vpop.f32.mrf.mxu0
    %v1537 = vadd.f32 0.0, %v1536
    %1538 = vmatmul.bf16.gmra.mxu0 %v606
    %v1539 = vpop.f32.mrf.mxu0
    %v1540 = vadd.f32 0.0, %v1539
    %v1541 = vpop.f32.mrf.mxu0
    %v1542 = vadd.f32 0.0, %v1541
    %1543 = vdwg.mxu0
    %v1544 = vpack.c.bf16 %v1522, %v1520
    %v1545 = vpack.c.bf16 %v1527, %v1525
    %v1546 = vpack.c.bf16 %v1532, %v1530
    %v1547 = vpack.c.bf16 %v1537, %v1535
    %v1548 = vpack.c.bf16 %v1542, %v1540
    %v1549 = vld [vmem:[#allocation26] sm:$0xf]
    %v1550 = vld [vmem:[#allocation26 + $0x4] sm:$0xf]
    %v1551 = vld [vmem:[#allocation26 + $0x8] sm:$0xf]
    %v1552 = vld [vmem:[#allocation26 + $0xc] sm:$0xf]
    %v1553 = vld [vmem:[#allocation26 + $0x10] sm:$0xf]
    %v1554 = vld [vmem:[#allocation26 + $0x14] sm:$0xf]
    %v1555 = vld [vmem:[#allocation26 + $0x18] sm:$0xf]
    %v1556 = vld [vmem:[#allocation26 + $0x1c] sm:$0xf]
    %v1557 = vld [vmem:[#allocation26 + $0x20] sm:$0xf]
    %v1558 = vld [vmem:[#allocation26 + $0x24] sm:$0xf]
    %v1559 = vld [vmem:[#allocation26 + $0x28] sm:$0xf]
    %v1560 = vld [vmem:[#allocation26 + $0x2c] sm:$0xf]
    %v1561 = vld [vmem:[#allocation26 + $0x30] sm:$0xf]
    %v1562 = vld [vmem:[#allocation26 + $0x34] sm:$0xf]
    %v1563 = vld [vmem:[#allocation26 + $0x38] sm:$0xf]
    %v1564 = vld [vmem:[#allocation26 + $0x3c] sm:$0xf]
    %v1565 = vld [vmem:[#allocation26 + $0x40] sm:$0xf]
    %v1566 = vld [vmem:[#allocation26 + $0x44] sm:$0xf]
    %v1567 = vld [vmem:[#allocation26 + $0x48] sm:$0xf]
    %v1568 = vld [vmem:[#allocation26 + $0x4c] sm:$0xf]
    %v1569 = vld [vmem:[#allocation26 + $0x50] sm:$0xf]
    %v1570 = vld [vmem:[#allocation26 + $0x54] sm:$0xf]
    %v1571 = vld [vmem:[#allocation26 + $0x58] sm:$0xf]
    %v1572 = vld [vmem:[#allocation26 + $0x5c] sm:$0xf]
    %v1573 = vld [vmem:[#allocation26 + $0x60] sm:$0xf]
    %v1574 = vld [vmem:[#allocation26 + $0x64] sm:$0xf]
    %v1575 = vld [vmem:[#allocation26 + $0x68] sm:$0xf]
    %v1576 = vld [vmem:[#allocation26 + $0x6c] sm:$0xf]
    %v1577 = vld [vmem:[#allocation26 + $0x70] sm:$0xf]
    %v1578 = vld [vmem:[#allocation26 + $0x74] sm:$0xf]
    %v1579 = vld [vmem:[#allocation26 + $0x78] sm:$0xf]
    %v1580 = vld [vmem:[#allocation26 + $0x7c] sm:$0xf]
    %v1581 = vld [vmem:[#allocation26 + $0x80] sm:$0xf]
    %v1582 = vld [vmem:[#allocation26 + $0x84] sm:$0xf]
    %v1583 = vld [vmem:[#allocation26 + $0x88] sm:$0xf]
    %v1584 = vld [vmem:[#allocation26 + $0x8c] sm:$0xf]
    %v1585 = vld [vmem:[#allocation26 + $0x90] sm:$0xf]
    %v1586 = vld [vmem:[#allocation26 + $0x94] sm:$0xf]
    %v1587 = vld [vmem:[#allocation26 + $0x98] sm:$0xf]
    %v1588 = vld [vmem:[#allocation26 + $0x9c] sm:$0xf]
    %v1589 = vld [vmem:[#allocation26 + $0xa0] sm:$0xf]
    %v1590 = vld [vmem:[#allocation26 + $0xa4] sm:$0xf]
    %v1591 = vld [vmem:[#allocation26 + $0xa8] sm:$0xf]
    %v1592 = vld [vmem:[#allocation26 + $0xac] sm:$0xf]
    %v1593 = vld [vmem:[#allocation26 + $0xb0] sm:$0xf]
    %v1594 = vld [vmem:[#allocation26 + $0xb4] sm:$0xf]
    %v1595 = vld [vmem:[#allocation26 + $0xb8] sm:$0xf]
    %v1596 = vld [vmem:[#allocation26 + $0xbc] sm:$0xf]
    %v1597 = vld [vmem:[#allocation26 + $0xc0] sm:$0xf]
    %v1598 = vld [vmem:[#allocation26 + $0xc4] sm:$0xf]
    %v1599 = vld [vmem:[#allocation26 + $0xc8] sm:$0xf]
    %v1600 = vld [vmem:[#allocation26 + $0xcc] sm:$0xf]
    %v1601 = vld [vmem:[#allocation26 + $0xd0] sm:$0xf]
    %v1602 = vld [vmem:[#allocation26 + $0xd4] sm:$0xf]
    %v1603 = vld [vmem:[#allocation26 + $0xd8] sm:$0xf]
    %v1604 = vld [vmem:[#allocation26 + $0xdc] sm:$0xf]
    %v1605 = vld [vmem:[#allocation26 + $0xe0] sm:$0xf]
    %v1606 = vld [vmem:[#allocation26 + $0xe4] sm:$0xf]
    %v1607 = vld [vmem:[#allocation26 + $0xe8] sm:$0xf]
    %v1608 = vld [vmem:[#allocation26 + $0xec] sm:$0xf]
    %v1609 = vld [vmem:[#allocation26 + $0xf0] sm:$0xf]
    %v1610 = vld [vmem:[#allocation26 + $0xf4] sm:$0xf]
    %v1611 = vld [vmem:[#allocation26 + $0xf8] sm:$0xf]
    %v1612 = vld [vmem:[#allocation26 + $0xfc] sm:$0xf]
    %v1613 = vld [vmem:[#allocation26 + $0x100] sm:$0xf]
    %v1614 = vld [vmem:[#allocation26 + $0x104] sm:$0xf]
    %v1615 = vld [vmem:[#allocation26 + $0x108] sm:$0xf]
    %v1616 = vld [vmem:[#allocation26 + $0x10c] sm:$0xf]
    %v1617 = vld [vmem:[#allocation26 + $0x110] sm:$0xf]
    %v1618 = vld [vmem:[#allocation26 + $0x114] sm:$0xf]
    %v1619 = vld [vmem:[#allocation26 + $0x118] sm:$0xf]
    %v1620 = vld [vmem:[#allocation26 + $0x11c] sm:$0xf]
    %v1621 = vld [vmem:[#allocation26 + $0x120] sm:$0xf]
    %v1622 = vld [vmem:[#allocation26 + $0x124] sm:$0xf]
    %v1623 = vld [vmem:[#allocation26 + $0x128] sm:$0xf]
    %v1624 = vld [vmem:[#allocation26 + $0x12c] sm:$0xf]
    %v1625 = vld [vmem:[#allocation26 + $0x130] sm:$0xf]
    %v1626 = vld [vmem:[#allocation26 + $0x134] sm:$0xf]
    %v1627 = vld [vmem:[#allocation26 + $0x138] sm:$0xf]
    %v1628 = vld [vmem:[#allocation26 + $0x13c] sm:$0xf]
    %v1629 = vld [vmem:[%s37] sm:$0xf]
    %v1630 = vld [vmem:[%s37 + $0x4] sm:$0xf]
    %v1631 = vld [vmem:[%s37 + $0x8] sm:$0xf]
    %v1632 = vld [vmem:[%s37 + $0xc] sm:$0xf]
    %v1633 = vld [vmem:[%s37 + $0x10] sm:$0xf]
    %v1634 = vld [vmem:[%s37 + $0x14] sm:$0xf]
    %v1635 = vld [vmem:[%s37 + $0x18] sm:$0xf]
    %v1636 = vld [vmem:[%s37 + $0x1c] sm:$0xf]
    %v1637 = vld [vmem:[%s37 + $0x20] sm:$0xf]
    %v1638 = vld [vmem:[%s37 + $0x24] sm:$0xf]
    %v1639 = vld [vmem:[%s37 + $0x28] sm:$0xf]
    %v1640 = vld [vmem:[%s37 + $0x2c] sm:$0xf]
    %v1641 = vld [vmem:[%s37 + $0x30] sm:$0xf]
    %v1642 = vld [vmem:[%s37 + $0x34] sm:$0xf]
    %v1643 = vld [vmem:[%s37 + $0x38] sm:$0xf]
    %v1644 = vld [vmem:[%s37 + $0x3c] sm:$0xf]
    %v1661 = vunpack.c.l.b16 %v1629
    %v1662 = vunpack.c.l.b16 %v1630
    %v1663 = vunpack.c.l.b16 %v1631
    %v1664 = vunpack.c.l.b16 %v1632
    %v1665 = vunpack.c.l.b16 %v1633
    %v1666 = vunpack.c.l.b16 %v1634
    %v1667 = vunpack.c.l.b16 %v1635
    %v1668 = vunpack.c.l.b16 %v1636
    %v1669 = vunpack.c.l.b16 %v1637
    %v1670 = vunpack.c.l.b16 %v1638
    %v1671 = vunpack.c.l.b16 %v1639
    %v1672 = vunpack.c.l.b16 %v1640
    %v1673 = vunpack.c.l.b16 %v1641
    %v1674 = vunpack.c.l.b16 %v1642
    %v1675 = vunpack.c.l.b16 %v1643
    %v1676 = vunpack.c.l.b16 %v1644
    %v1677 = vpack.c.b16 %v1662, %v1661
    %v1678 = vpack.c.b16 %v1664, %v1663
    %v1679 = vpack.c.b16 %v1666, %v1665
    %v1680 = vpack.c.b16 %v1668, %v1667
    %v1681 = vpack.c.b16 %v1670, %v1669
    %v1682 = vpack.c.b16 %v1672, %v1671
    %v1683 = vpack.c.b16 %v1674, %v1673
    %v1684 = vpack.c.b16 %v1676, %v1675
    %1693 = vmatpush.bf16.msra.mxu0 %v1684
    %1694 = vmatpush.bf16.msra.mxu0 %v1683
    %1695 = vmatpush.bf16.msra.mxu0 %v1682
    %1696 = vmatpush.bf16.msra.mxu0 %v1681
    %1697 = vmatpush.bf16.msra.mxu0 %v1680
    %1698 = vmatpush.bf16.msra.mxu0 %v1679
    %1699 = vmatpush.bf16.msra.mxu0 %v1678
    %1700 = vmatpush.bf16.msra.mxu0 %v1677
    %1701 = vmatmul.bf16.gmra.mxu0 %v1509
    %v1702 = vpop.f32.mrf.mxu0
    %v1703 = vadd.f32 0.0, %v1702
    %v1704 = vpop.f32.mrf.mxu0
    %v1705 = vadd.f32 0.0, %v1704
    %1706 = vdwg.mxu0
    %v1787 = vunpack.c.l.b16 %v1549
    %v1788 = vunpack.c.l.b16 %v1550
    %v1789 = vunpack.c.l.b16 %v1551
    %v1790 = vunpack.c.l.b16 %v1552
    %v1791 = vunpack.c.l.b16 %v1553
    %v1792 = vunpack.c.l.b16 %v1554
    %v1793 = vunpack.c.l.b16 %v1555
    %v1794 = vunpack.c.l.b16 %v1556
    %v1795 = vunpack.c.l.b16 %v1557
    %v1796 = vunpack.c.l.b16 %v1558
    %v1797 = vunpack.c.l.b16 %v1559
    %v1798 = vunpack.c.l.b16 %v1560
    %v1799 = vunpack.c.l.b16 %v1561
    %v1800 = vunpack.c.l.b16 %v1562
    %v1801 = vunpack.c.l.b16 %v1563
    %v1802 = vunpack.c.l.b16 %v1564
    %v1803 = vunpack.c.l.b16 %v1565
    %v1804 = vunpack.c.l.b16 %v1566
    %v1805 = vunpack.c.l.b16 %v1567
    %v1806 = vunpack.c.l.b16 %v1568
    %v1807 = vunpack.c.l.b16 %v1569
    %v1808 = vunpack.c.l.b16 %v1570
    %v1809 = vunpack.c.l.b16 %v1571
    %v1810 = vunpack.c.l.b16 %v1572
    %v1811 = vunpack.c.l.b16 %v1573
    %v1812 = vunpack.c.l.b16 %v1574
    %v1813 = vunpack.c.l.b16 %v1575
    %v1814 = vunpack.c.l.b16 %v1576
    %v1815 = vunpack.c.l.b16 %v1577
    %v1816 = vunpack.c.l.b16 %v1578
    %v1817 = vunpack.c.l.b16 %v1579
    %v1818 = vunpack.c.l.b16 %v1580
    %v1819 = vunpack.c.l.b16 %v1581
    %v1820 = vunpack.c.l.b16 %v1582
    %v1821 = vunpack.c.l.b16 %v1583
    %v1822 = vunpack.c.l.b16 %v1584
    %v1823 = vunpack.c.l.b16 %v1585
    %v1824 = vunpack.c.l.b16 %v1586
    %v1825 = vunpack.c.l.b16 %v1587
    %v1826 = vunpack.c.l.b16 %v1588
    %v1827 = vunpack.c.l.b16 %v1589
    %v1828 = vunpack.c.l.b16 %v1590
    %v1829 = vunpack.c.l.b16 %v1591
    %v1830 = vunpack.c.l.b16 %v1592
    %v1831 = vunpack.c.l.b16 %v1593
    %v1832 = vunpack.c.l.b16 %v1594
    %v1833 = vunpack.c.l.b16 %v1595
    %v1834 = vunpack.c.l.b16 %v1596
    %v1835 = vunpack.c.l.b16 %v1597
    %v1836 = vunpack.c.l.b16 %v1598
    %v1837 = vunpack.c.l.b16 %v1599
    %v1838 = vunpack.c.l.b16 %v1600
    %v1839 = vunpack.c.l.b16 %v1601
    %v1840 = vunpack.c.l.b16 %v1602
    %v1841 = vunpack.c.l.b16 %v1603
    %v1842 = vunpack.c.l.b16 %v1604
    %v1843 = vunpack.c.l.b16 %v1605
    %v1844 = vunpack.c.l.b16 %v1606
    %v1845 = vunpack.c.l.b16 %v1607
    %v1846 = vunpack.c.l.b16 %v1608
    %v1847 = vunpack.c.l.b16 %v1609
    %v1848 = vunpack.c.l.b16 %v1610
    %v1849 = vunpack.c.l.b16 %v1611
    %v1850 = vunpack.c.l.b16 %v1612
    %v1851 = vunpack.c.l.b16 %v1613
    %v1852 = vunpack.c.l.b16 %v1614
    %v1853 = vunpack.c.l.b16 %v1615
    %v1854 = vunpack.c.l.b16 %v1616
    %v1855 = vunpack.c.l.b16 %v1617
    %v1856 = vunpack.c.l.b16 %v1618
    %v1857 = vunpack.c.l.b16 %v1619
    %v1858 = vunpack.c.l.b16 %v1620
    %v1859 = vunpack.c.l.b16 %v1621
    %v1860 = vunpack.c.l.b16 %v1622
    %v1861 = vunpack.c.l.b16 %v1623
    %v1862 = vunpack.c.l.b16 %v1624
    %v1863 = vunpack.c.l.b16 %v1625
    %v1864 = vunpack.c.l.b16 %v1626
    %v1865 = vunpack.c.l.b16 %v1627
    %v1866 = vunpack.c.l.b16 %v1628
    %v1867 = vpack.c.b16 %v1788, %v1787
    %v1868 = vpack.c.b16 %v1790, %v1789
    %v1869 = vpack.c.b16 %v1792, %v1791
    %v1870 = vpack.c.b16 %v1794, %v1793
    %v1871 = vpack.c.b16 %v1796, %v1795
    %v1872 = vpack.c.b16 %v1798, %v1797
    %v1873 = vpack.c.b16 %v1800, %v1799
    %v1874 = vpack.c.b16 %v1802, %v1801
    %v1875 = vpack.c.b16 %v1804, %v1803
    %v1876 = vpack.c.b16 %v1806, %v1805
    %v1877 = vpack.c.b16 %v1808, %v1807
    %v1878 = vpack.c.b16 %v1810, %v1809
    %v1879 = vpack.c.b16 %v1812, %v1811
    %v1880 = vpack.c.b16 %v1814, %v1813
    %v1881 = vpack.c.b16 %v1816, %v1815
    %v1882 = vpack.c.b16 %v1818, %v1817
    %v1883 = vpack.c.b16 %v1820, %v1819
    %v1884 = vpack.c.b16 %v1822, %v1821
    %v1885 = vpack.c.b16 %v1824, %v1823
    %v1886 = vpack.c.b16 %v1826, %v1825
    %v1887 = vpack.c.b16 %v1828, %v1827
    %v1888 = vpack.c.b16 %v1830, %v1829
    %v1889 = vpack.c.b16 %v1832, %v1831
    %v1890 = vpack.c.b16 %v1834, %v1833
    %v1891 = vpack.c.b16 %v1836, %v1835
    %v1892 = vpack.c.b16 %v1838, %v1837
    %v1893 = vpack.c.b16 %v1840, %v1839
    %v1894 = vpack.c.b16 %v1842, %v1841
    %v1895 = vpack.c.b16 %v1844, %v1843
    %v1896 = vpack.c.b16 %v1846, %v1845
    %v1897 = vpack.c.b16 %v1848, %v1847
    %v1898 = vpack.c.b16 %v1850, %v1849
    %v1899 = vpack.c.b16 %v1852, %v1851
    %v1900 = vpack.c.b16 %v1854, %v1853
    %v1901 = vpack.c.b16 %v1856, %v1855
    %v1902 = vpack.c.b16 %v1858, %v1857
    %v1903 = vpack.c.b16 %v1860, %v1859
    %v1904 = vpack.c.b16 %v1862, %v1861
    %v1905 = vpack.c.b16 %v1864, %v1863
    %v1906 = vpack.c.b16 %v1866, %v1865
    %1947 = vmatpush.bf16.msra.mxu0 %v1874
    %1948 = vmatpush.bf16.msra.mxu0 %v1873
    %1949 = vmatpush.bf16.msra.mxu0 %v1872
    %1950 = vmatpush.bf16.msra.mxu0 %v1871
    %1951 = vmatpush.bf16.msra.mxu0 %v1870
    %1952 = vmatpush.bf16.msra.mxu0 %v1869
    %1953 = vmatpush.bf16.msra.mxu0 %v1868
    %1954 = vmatpush.bf16.msra.mxu0 %v1867
    %1955 = vmatmul.bf16.gmra.mxu0 %v1544
    %v1956 = vpop.f32.mrf.mxu0
    %v1957 = vadd.f32 %v1703, %v1956
    %v1958 = vpop.f32.mrf.mxu0
    %v1959 = vadd.f32 %v1705, %v1958
    %1960 = vdwg.mxu0
    %1961 = vmatpush.bf16.msra.mxu0 %v1882
    %1962 = vmatpush.bf16.msra.mxu0 %v1881
    %1963 = vmatpush.bf16.msra.mxu0 %v1880
    %1964 = vmatpush.bf16.msra.mxu0 %v1879
    %1965 = vmatpush.bf16.msra.mxu0 %v1878
    %1966 = vmatpush.bf16.msra.mxu0 %v1877
    %1967 = vmatpush.bf16.msra.mxu0 %v1876
    %1968 = vmatpush.bf16.msra.mxu0 %v1875
    %1969 = vmatmul.bf16.gmra.mxu0 %v1545
    %v1970 = vpop.f32.mrf.mxu0
    %v1971 = vadd.f32 %v1957, %v1970
    %v1972 = vpop.f32.mrf.mxu0
    %v1973 = vadd.f32 %v1959, %v1972
    %1974 = vdwg.mxu0
    %1975 = vmatpush.bf16.msra.mxu0 %v1890
    %1976 = vmatpush.bf16.msra.mxu0 %v1889
    %1977 = vmatpush.bf16.msra.mxu0 %v1888
    %1978 = vmatpush.bf16.msra.mxu0 %v1887
    %1979 = vmatpush.bf16.msra.mxu0 %v1886
    %1980 = vmatpush.bf16.msra.mxu0 %v1885
    %1981 = vmatpush.bf16.msra.mxu0 %v1884
    %1982 = vmatpush.bf16.msra.mxu0 %v1883
    %1983 = vmatmul.bf16.gmra.mxu0 %v1546
    %v1984 = vpop.f32.mrf.mxu0
    %v1985 = vadd.f32 %v1971, %v1984
    %v1986 = vpop.f32.mrf.mxu0
    %v1987 = vadd.f32 %v1973, %v1986
    %1988 = vdwg.mxu0
    %1989 = vmatpush.bf16.msra.mxu0 %v1898
    %1990 = vmatpush.bf16.msra.mxu0 %v1897
    %1991 = vmatpush.bf16.msra.mxu0 %v1896
    %1992 = vmatpush.bf16.msra.mxu0 %v1895
    %1993 = vmatpush.bf16.msra.mxu0 %v1894
    %1994 = vmatpush.bf16.msra.mxu0 %v1893
    %1995 = vmatpush.bf16.msra.mxu0 %v1892
    %1996 = vmatpush.bf16.msra.mxu0 %v1891
    %1997 = vmatmul.bf16.gmra.mxu0 %v1547
    %v1998 = vpop.f32.mrf.mxu0
    %v1999 = vadd.f32 %v1985, %v1998
    %v2000 = vpop.f32.mrf.mxu0
    %v2001 = vadd.f32 %v1987, %v2000
    %2002 = vdwg.mxu0
    %2003 = vmatpush.bf16.msra.mxu0 %v1906
    %2004 = vmatpush.bf16.msra.mxu0 %v1905
    %2005 = vmatpush.bf16.msra.mxu0 %v1904
    %2006 = vmatpush.bf16.msra.mxu0 %v1903
    %2007 = vmatpush.bf16.msra.mxu0 %v1902
    %2008 = vmatpush.bf16.msra.mxu0 %v1901
    %2009 = vmatpush.bf16.msra.mxu0 %v1900
    %2010 = vmatpush.bf16.msra.mxu0 %v1899
    %2011 = vmatmul.bf16.gmra.mxu0 %v1548
    %v2012 = vpop.f32.mrf.mxu0
    %v2013 = vadd.f32 %v1999, %v2012
    %v2014 = vpop.f32.mrf.mxu0
    %v2015 = vadd.f32 %v2001, %v2014
    %2016 = vdwg.mxu0
    %v2017 = vld [vmem:[%s39] sm:$0x1]
    %v2019 = vperm.slane %v2017, 0
    %v2021 = vadd.f32 %v2013, %v2019
    %v2022 = vadd.f32 %v2015, %v2019
    %vm2023 = vcmp.ge.f32.partialorder %v2021, 0.0
    %vm2024 = vcmp.ge.f32.partialorder %v2022, 0.0
    %v2025 = vmul.f32 %v2021, 0.01
    %v2026 = vmul.f32 %v2022, 0.01
    %v2027 = vsel %vm2023, %v2021, %v2025
    %v2028 = vsel %vm2024, %v2022, %v2026
    %v2029 = vld [vmem:[#allocation28] sm:$0xf]
    %v2030 = vld [vmem:[#allocation28 + $0x4] sm:$0xf]
    %v2031 = vld [vmem:[#allocation28 + $0x8] sm:$0xf]
    %v2032 = vld [vmem:[#allocation28 + $0xc] sm:$0xf]
    %v2033 = vld [vmem:[#allocation28 + $0x10] sm:$0xf]
    %v2034 = vld [vmem:[#allocation28 + $0x14] sm:$0xf]
    %v2035 = vld [vmem:[#allocation28 + $0x18] sm:$0xf]
    %v2036 = vld [vmem:[#allocation28 + $0x1c] sm:$0xf]
    %v2037 = vld [vmem:[#allocation28 + $0x20] sm:$0xf]
    %v2038 = vld [vmem:[#allocation28 + $0x24] sm:$0xf]
    %v2039 = vld [vmem:[#allocation28 + $0x28] sm:$0xf]
    %v2040 = vld [vmem:[#allocation28 + $0x2c] sm:$0xf]
    %v2041 = vld [vmem:[#allocation28 + $0x30] sm:$0xf]
    %v2042 = vld [vmem:[#allocation28 + $0x34] sm:$0xf]
    %v2043 = vld [vmem:[#allocation28 + $0x38] sm:$0xf]
    %v2044 = vld [vmem:[#allocation28 + $0x3c] sm:$0xf]
    %v2045 = vpack.c.bf16 %v1321, %v1320
    %v2046 = vld [vmem:[#allocation29] sm:$0xf]
    %v2047 = vld [vmem:[#allocation29 + $0x4] sm:$0xf]
    %v2048 = vld [vmem:[#allocation29 + $0x8] sm:$0xf]
    %v2049 = vld [vmem:[#allocation29 + $0xc] sm:$0xf]
    %v2050 = vld [vmem:[#allocation29 + $0x10] sm:$0xf]
    %v2051 = vld [vmem:[#allocation29 + $0x14] sm:$0xf]
    %v2052 = vld [vmem:[#allocation29 + $0x18] sm:$0xf]
    %v2053 = vld [vmem:[#allocation29 + $0x1c] sm:$0xf]
    %v2054 = vld [vmem:[#allocation29 + $0x20] sm:$0xf]
    %v2055 = vld [vmem:[#allocation29 + $0x24] sm:$0xf]
    %v2056 = vld [vmem:[#allocation29 + $0x28] sm:$0xf]
    %v2057 = vld [vmem:[#allocation29 + $0x2c] sm:$0xf]
    %v2058 = vld [vmem:[#allocation29 + $0x30] sm:$0xf]
    %v2059 = vld [vmem:[#allocation29 + $0x34] sm:$0xf]
    %v2060 = vld [vmem:[#allocation29 + $0x38] sm:$0xf]
    %v2061 = vld [vmem:[#allocation29 + $0x3c] sm:$0xf]
    %v2078 = vunpack.c.l.b16 %v2046
    %v2079 = vunpack.c.l.b16 %v2047
    %v2080 = vunpack.c.l.b16 %v2048
    %v2081 = vunpack.c.l.b16 %v2049
    %v2082 = vunpack.c.l.b16 %v2050
    %v2083 = vunpack.c.l.b16 %v2051
    %v2084 = vunpack.c.l.b16 %v2052
    %v2085 = vunpack.c.l.b16 %v2053
    %v2086 = vunpack.c.l.b16 %v2054
    %v2087 = vunpack.c.l.b16 %v2055
    %v2088 = vunpack.c.l.b16 %v2056
    %v2089 = vunpack.c.l.b16 %v2057
    %v2090 = vunpack.c.l.b16 %v2058
    %v2091 = vunpack.c.l.b16 %v2059
    %v2092 = vunpack.c.l.b16 %v2060
    %v2093 = vunpack.c.l.b16 %v2061
    %v2094 = vpack.c.b16 %v2079, %v2078
    %v2095 = vpack.c.b16 %v2081, %v2080
    %v2096 = vpack.c.b16 %v2083, %v2082
    %v2097 = vpack.c.b16 %v2085, %v2084
    %v2098 = vpack.c.b16 %v2087, %v2086
    %v2099 = vpack.c.b16 %v2089, %v2088
    %v2100 = vpack.c.b16 %v2091, %v2090
    %v2101 = vpack.c.b16 %v2093, %v2092
    %2110 = vmatpush.bf16.msra.mxu0 %v2101
    %2111 = vmatpush.bf16.msra.mxu0 %v2100
    %2112 = vmatpush.bf16.msra.mxu0 %v2099
    %2113 = vmatpush.bf16.msra.mxu0 %v2098
    %2114 = vmatpush.bf16.msra.mxu0 %v2097
    %2115 = vmatpush.bf16.msra.mxu0 %v2096
    %2116 = vmatpush.bf16.msra.mxu0 %v2095
    %2117 = vmatpush.bf16.msra.mxu0 %v2094
    %2118 = vmatmul.bf16.gmra.mxu0 %v2045
    %v2119 = vpop.f32.mrf.mxu0
    %v2120 = vadd.f32 0.0, %v2119
    %v2121 = vpop.f32.mrf.mxu0
    %v2122 = vadd.f32 0.0, %v2121
    %2123 = vdwg.mxu0
    %v2140 = vunpack.c.l.b16 %v2029
    %v2141 = vunpack.c.l.b16 %v2030
    %v2142 = vunpack.c.l.b16 %v2031
    %v2143 = vunpack.c.l.b16 %v2032
    %v2144 = vunpack.c.l.b16 %v2033
    %v2145 = vunpack.c.l.b16 %v2034
    %v2146 = vunpack.c.l.b16 %v2035
    %v2147 = vunpack.c.l.b16 %v2036
    %v2148 = vunpack.c.l.b16 %v2037
    %v2149 = vunpack.c.l.b16 %v2038
    %v2150 = vunpack.c.l.b16 %v2039
    %v2151 = vunpack.c.l.b16 %v2040
    %v2152 = vunpack.c.l.b16 %v2041
    %v2153 = vunpack.c.l.b16 %v2042
    %v2154 = vunpack.c.l.b16 %v2043
    %v2155 = vunpack.c.l.b16 %v2044
    %v2156 = vpack.c.b16 %v2141, %v2140
    %v2157 = vpack.c.b16 %v2143, %v2142
    %v2158 = vpack.c.b16 %v2145, %v2144
    %v2159 = vpack.c.b16 %v2147, %v2146
    %v2160 = vpack.c.b16 %v2149, %v2148
    %v2161 = vpack.c.b16 %v2151, %v2150
    %v2162 = vpack.c.b16 %v2153, %v2152
    %v2163 = vpack.c.b16 %v2155, %v2154
    %2172 = vmatpush.bf16.msra.mxu0 %v2163
    %2173 = vmatpush.bf16.msra.mxu0 %v2162
    %2174 = vmatpush.bf16.msra.mxu0 %v2161
    %2175 = vmatpush.bf16.msra.mxu0 %v2160
    %2176 = vmatpush.bf16.msra.mxu0 %v2159
    %2177 = vmatpush.bf16.msra.mxu0 %v2158
    %2178 = vmatpush.bf16.msra.mxu0 %v2157
    %2179 = vmatpush.bf16.msra.mxu0 %v2156
    %2180 = vmatmul.bf16.gmra.mxu0 %v1152
    %v2181 = vpop.f32.mrf.mxu0
    %v2182 = vadd.f32 %v2120, %v2181
    %v2183 = vpop.f32.mrf.mxu0
    %v2184 = vadd.f32 %v2122, %v2183
    %2185 = vdwg.mxu0
    %v2186 = vld [vmem:[%s45] sm:$0x1]
    %v2188 = vperm.slane %v2186, 0
    %v2190 = vadd.f32 %v2182, %v2188
    %v2191 = vadd.f32 %v2184, %v2188
    %vm2192 = vcmp.ge.f32.partialorder %v2190, 0.0
    %vm2193 = vcmp.ge.f32.partialorder %v2191, 0.0
    %v2194 = vmul.f32 %v2190, 0.01
    %v2195 = vmul.f32 %v2191, 0.01
    %v2196 = vsel %vm2192, %v2190, %v2194
    %v2197 = vsel %vm2193, %v2191, %v2195
    %v2198 = vld [vmem:[#allocation31] sm:$0xf]
    %v2199 = vld [vmem:[#allocation31 + $0x4] sm:$0xf]
    %v2200 = vld [vmem:[#allocation31 + $0x8] sm:$0xf]
    %v2201 = vld [vmem:[#allocation31 + $0xc] sm:$0xf]
    %v2202 = vld [vmem:[#allocation31 + $0x10] sm:$0xf]
    %v2203 = vld [vmem:[#allocation31 + $0x14] sm:$0xf]
    %v2204 = vld [vmem:[#allocation31 + $0x18] sm:$0xf]
    %v2205 = vld [vmem:[#allocation31 + $0x1c] sm:$0xf]
    %v2206 = vld [vmem:[#allocation31 + $0x20] sm:$0xf]
    %v2207 = vld [vmem:[#allocation31 + $0x24] sm:$0xf]
    %v2208 = vld [vmem:[#allocation31 + $0x28] sm:$0xf]
    %v2209 = vld [vmem:[#allocation31 + $0x2c] sm:$0xf]
    %v2210 = vld [vmem:[#allocation31 + $0x30] sm:$0xf]
    %v2211 = vld [vmem:[#allocation31 + $0x34] sm:$0xf]
    %v2212 = vld [vmem:[#allocation31 + $0x38] sm:$0xf]
    %v2213 = vld [vmem:[#allocation31 + $0x3c] sm:$0xf]
    %v2214 = vpack.c.bf16 %v1508, %v1508
    %v2215 = vld [vmem:[#allocation32] sm:$0xf]
    %v2216 = vld [vmem:[#allocation32 + $0x4] sm:$0xf]
    %v2217 = vld [vmem:[#allocation32 + $0x8] sm:$0xf]
    %v2218 = vld [vmem:[#allocation32 + $0xc] sm:$0xf]
    %v2219 = vld [vmem:[#allocation32 + $0x10] sm:$0xf]
    %v2220 = vld [vmem:[#allocation32 + $0x14] sm:$0xf]
    %v2221 = vld [vmem:[#allocation32 + $0x18] sm:$0xf]
    %v2222 = vld [vmem:[#allocation32 + $0x1c] sm:$0xf]
    %v2223 = vld [vmem:[#allocation32 + $0x20] sm:$0xf]
    %v2224 = vld [vmem:[#allocation32 + $0x24] sm:$0xf]
    %v2225 = vld [vmem:[#allocation32 + $0x28] sm:$0xf]
    %v2226 = vld [vmem:[#allocation32 + $0x2c] sm:$0xf]
    %v2227 = vld [vmem:[#allocation32 + $0x30] sm:$0xf]
    %v2228 = vld [vmem:[#allocation32 + $0x34] sm:$0xf]
    %v2229 = vld [vmem:[#allocation32 + $0x38] sm:$0xf]
    %v2230 = vld [vmem:[#allocation32 + $0x3c] sm:$0xf]
    %v2247 = vunpack.c.l.b16 %v2215
    %v2248 = vunpack.c.l.b16 %v2216
    %v2249 = vunpack.c.l.b16 %v2217
    %v2250 = vunpack.c.l.b16 %v2218
    %v2251 = vunpack.c.l.b16 %v2219
    %v2252 = vunpack.c.l.b16 %v2220
    %v2253 = vunpack.c.l.b16 %v2221
    %v2254 = vunpack.c.l.b16 %v2222
    %v2255 = vunpack.c.l.b16 %v2223
    %v2256 = vunpack.c.l.b16 %v2224
    %v2257 = vunpack.c.l.b16 %v2225
    %v2258 = vunpack.c.l.b16 %v2226
    %v2259 = vunpack.c.l.b16 %v2227
    %v2260 = vunpack.c.l.b16 %v2228
    %v2261 = vunpack.c.l.b16 %v2229
    %v2262 = vunpack.c.l.b16 %v2230
    %v2263 = vpack.c.b16 %v2248, %v2247
    %v2264 = vpack.c.b16 %v2250, %v2249
    %v2265 = vpack.c.b16 %v2252, %v2251
    %v2266 = vpack.c.b16 %v2254, %v2253
    %v2267 = vpack.c.b16 %v2256, %v2255
    %v2268 = vpack.c.b16 %v2258, %v2257
    %v2269 = vpack.c.b16 %v2260, %v2259
    %v2270 = vpack.c.b16 %v2262, %v2261
    %2279 = vmatpush.bf16.msra.mxu0 %v2270
    %2280 = vmatpush.bf16.msra.mxu0 %v2269
    %2281 = vmatpush.bf16.msra.mxu0 %v2268
    %2282 = vmatpush.bf16.msra.mxu0 %v2267
    %2283 = vmatpush.bf16.msra.mxu0 %v2266
    %2284 = vmatpush.bf16.msra.mxu0 %v2265
    %2285 = vmatpush.bf16.msra.mxu0 %v2264
    %2286 = vmatpush.bf16.msra.mxu0 %v2263
    %2287 = vmatmul.bf16.gmra.mxu0 %v2214
    %v2288 = vpop.f32.mrf.mxu0
    %v2289 = vadd.f32 0.0, %v2288
    %v2290 = vpop.f32.mrf.mxu0
    %2291 = vdwg.mxu0
    %v2308 = vunpack.c.l.b16 %v2198
    %v2309 = vunpack.c.l.b16 %v2199
    %v2310 = vunpack.c.l.b16 %v2200
    %v2311 = vunpack.c.l.b16 %v2201
    %v2312 = vunpack.c.l.b16 %v2202
    %v2313 = vunpack.c.l.b16 %v2203
    %v2314 = vunpack.c.l.b16 %v2204
    %v2315 = vunpack.c.l.b16 %v2205
    %v2316 = vunpack.c.l.b16 %v2206
    %v2317 = vunpack.c.l.b16 %v2207
    %v2318 = vunpack.c.l.b16 %v2208
    %v2319 = vunpack.c.l.b16 %v2209
    %v2320 = vunpack.c.l.b16 %v2210
    %v2321 = vunpack.c.l.b16 %v2211
    %v2322 = vunpack.c.l.b16 %v2212
    %v2323 = vunpack.c.l.b16 %v2213
    %v2324 = vpack.c.b16 %v2309, %v2308
    %v2325 = vpack.c.b16 %v2311, %v2310
    %v2326 = vpack.c.b16 %v2313, %v2312
    %v2327 = vpack.c.b16 %v2315, %v2314
    %v2328 = vpack.c.b16 %v2317, %v2316
    %v2329 = vpack.c.b16 %v2319, %v2318
    %v2330 = vpack.c.b16 %v2321, %v2320
    %v2331 = vpack.c.b16 %v2323, %v2322
    %2340 = vmatpush.bf16.msra.mxu0 %v2331
    %2341 = vmatpush.bf16.msra.mxu0 %v2330
    %2342 = vmatpush.bf16.msra.mxu0 %v2329
    %2343 = vmatpush.bf16.msra.mxu0 %v2328
    %2344 = vmatpush.bf16.msra.mxu0 %v2327
    %2345 = vmatpush.bf16.msra.mxu0 %v2326
    %2346 = vmatpush.bf16.msra.mxu0 %v2325
    %2347 = vmatpush.bf16.msra.mxu0 %v2324
    %2348 = vmatmul.bf16.gmra.mxu0 %v1345
    %v2349 = vpop.f32.mrf.mxu0
    %v2350 = vadd.f32 %v2289, %v2349
    %v2351 = vpop.f32.mrf.mxu0
    %2352 = vdwg.mxu0
    %v2353 = vld [vmem:[%s51] sm:$0x1]
    %v2355 = vperm.slane %v2353, 0
    %v2357 = vadd.f32 %v2350, %v2355
    %vm2358 = vcmp.ge.f32.partialorder %v2357, 0.0
    %v2359 = vmul.f32 %v2357, 0.01
    %v2360 = vsel %vm2358, %v2357, %v2359
    %v2361 = vpack.c.bf16 %v2028, %v2027
    %2362 = vmatpush.bf16.msra.mxu0 0
    %2363 = vmatpush.bf16.msra.mxu0 0
    %2364 = vmatpush.bf16.msra.mxu0 0
    %2365 = vmatpush.bf16.msra.mxu0 0
    %2366 = vmatpush.bf16.msra.mxu0 0
    %2367 = vmatpush.bf16.msra.mxu0 0
    %2368 = vmatpush.bf16.msra.mxu0 0
    %2369 = vmatpush.bf16.msra.mxu0 %v2361
    %2370 = vmatmul.bf16.gmra.mxu0 %v594
    %v2371 = vpop.f32.mrf.mxu0
    %v2372 = vadd.f32 0.0, %v2371
    %v2373 = vpop.f32.mrf.mxu0
    %v2374 = vadd.f32 0.0, %v2373
    %2375 = vmatmul.bf16.gmra.mxu0 %v597
    %v2376 = vpop.f32.mrf.mxu0
    %v2377 = vadd.f32 0.0, %v2376
    %v2378 = vpop.f32.mrf.mxu0
    %v2379 = vadd.f32 0.0, %v2378
    %2380 = vmatmul.bf16.gmra.mxu0 %v600
    %v2381 = vpop.f32.mrf.mxu0
    %v2382 = vadd.f32 0.0, %v2381
    %v2383 = vpop.f32.mrf.mxu0
    %v2384 = vadd.f32 0.0, %v2383
    %2385 = vmatmul.bf16.gmra.mxu0 %v603
    %v2386 = vpop.f32.mrf.mxu0
    %v2387 = vadd.f32 0.0, %v2386
    %v2388 = vpop.f32.mrf.mxu0
    %v2389 = vadd.f32 0.0, %v2388
    %2390 = vmatmul.bf16.gmra.mxu0 %v606
    %v2391 = vpop.f32.mrf.mxu0
    %v2392 = vadd.f32 0.0, %v2391
    %v2393 = vpop.f32.mrf.mxu0
    %v2394 = vadd.f32 0.0, %v2393
    %2395 = vdwg.mxu0
    %v2396 = vpack.c.bf16 %v2374, %v2372
    %v2397 = vpack.c.bf16 %v2379, %v2377
    %v2398 = vpack.c.bf16 %v2384, %v2382
    %v2399 = vpack.c.bf16 %v2389, %v2387
    %v2400 = vpack.c.bf16 %v2394, %v2392
    %v2401 = vld [vmem:[#allocation34] sm:$0xf]
    %v2402 = vld [vmem:[#allocation34 + $0x4] sm:$0xf]
    %v2403 = vld [vmem:[#allocation34 + $0x8] sm:$0xf]
    %v2404 = vld [vmem:[#allocation34 + $0xc] sm:$0xf]
    %v2405 = vld [vmem:[#allocation34 + $0x10] sm:$0xf]
    %v2406 = vld [vmem:[#allocation34 + $0x14] sm:$0xf]
    %v2407 = vld [vmem:[#allocation34 + $0x18] sm:$0xf]
    %v2408 = vld [vmem:[#allocation34 + $0x1c] sm:$0xf]
    %v2409 = vld [vmem:[#allocation34 + $0x20] sm:$0xf]
    %v2410 = vld [vmem:[#allocation34 + $0x24] sm:$0xf]
    %v2411 = vld [vmem:[#allocation34 + $0x28] sm:$0xf]
    %v2412 = vld [vmem:[#allocation34 + $0x2c] sm:$0xf]
    %v2413 = vld [vmem:[#allocation34 + $0x30] sm:$0xf]
    %v2414 = vld [vmem:[#allocation34 + $0x34] sm:$0xf]
    %v2415 = vld [vmem:[#allocation34 + $0x38] sm:$0xf]
    %v2416 = vld [vmem:[#allocation34 + $0x3c] sm:$0xf]
    %v2417 = vld [vmem:[#allocation34 + $0x40] sm:$0xf]
    %v2418 = vld [vmem:[#allocation34 + $0x44] sm:$0xf]
    %v2419 = vld [vmem:[#allocation34 + $0x48] sm:$0xf]
    %v2420 = vld [vmem:[#allocation34 + $0x4c] sm:$0xf]
    %v2421 = vld [vmem:[#allocation34 + $0x50] sm:$0xf]
    %v2422 = vld [vmem:[#allocation34 + $0x54] sm:$0xf]
    %v2423 = vld [vmem:[#allocation34 + $0x58] sm:$0xf]
    %v2424 = vld [vmem:[#allocation34 + $0x5c] sm:$0xf]
    %v2425 = vld [vmem:[#allocation34 + $0x60] sm:$0xf]
    %v2426 = vld [vmem:[#allocation34 + $0x64] sm:$0xf]
    %v2427 = vld [vmem:[#allocation34 + $0x68] sm:$0xf]
    %v2428 = vld [vmem:[#allocation34 + $0x6c] sm:$0xf]
    %v2429 = vld [vmem:[#allocation34 + $0x70] sm:$0xf]
    %v2430 = vld [vmem:[#allocation34 + $0x74] sm:$0xf]
    %v2431 = vld [vmem:[#allocation34 + $0x78] sm:$0xf]
    %v2432 = vld [vmem:[#allocation34 + $0x7c] sm:$0xf]
    %v2433 = vld [vmem:[#allocation34 + $0x80] sm:$0xf]
    %v2434 = vld [vmem:[#allocation34 + $0x84] sm:$0xf]
    %v2435 = vld [vmem:[#allocation34 + $0x88] sm:$0xf]
    %v2436 = vld [vmem:[#allocation34 + $0x8c] sm:$0xf]
    %v2437 = vld [vmem:[#allocation34 + $0x90] sm:$0xf]
    %v2438 = vld [vmem:[#allocation34 + $0x94] sm:$0xf]
    %v2439 = vld [vmem:[#allocation34 + $0x98] sm:$0xf]
    %v2440 = vld [vmem:[#allocation34 + $0x9c] sm:$0xf]
    %v2441 = vld [vmem:[#allocation34 + $0xa0] sm:$0xf]
    %v2442 = vld [vmem:[#allocation34 + $0xa4] sm:$0xf]
    %v2443 = vld [vmem:[#allocation34 + $0xa8] sm:$0xf]
    %v2444 = vld [vmem:[#allocation34 + $0xac] sm:$0xf]
    %v2445 = vld [vmem:[#allocation34 + $0xb0] sm:$0xf]
    %v2446 = vld [vmem:[#allocation34 + $0xb4] sm:$0xf]
    %v2447 = vld [vmem:[#allocation34 + $0xb8] sm:$0xf]
    %v2448 = vld [vmem:[#allocation34 + $0xbc] sm:$0xf]
    %v2449 = vld [vmem:[#allocation34 + $0xc0] sm:$0xf]
    %v2450 = vld [vmem:[#allocation34 + $0xc4] sm:$0xf]
    %v2451 = vld [vmem:[#allocation34 + $0xc8] sm:$0xf]
    %v2452 = vld [vmem:[#allocation34 + $0xcc] sm:$0xf]
    %v2453 = vld [vmem:[#allocation34 + $0xd0] sm:$0xf]
    %v2454 = vld [vmem:[#allocation34 + $0xd4] sm:$0xf]
    %v2455 = vld [vmem:[#allocation34 + $0xd8] sm:$0xf]
    %v2456 = vld [vmem:[#allocation34 + $0xdc] sm:$0xf]
    %v2457 = vld [vmem:[#allocation34 + $0xe0] sm:$0xf]
    %v2458 = vld [vmem:[#allocation34 + $0xe4] sm:$0xf]
    %v2459 = vld [vmem:[#allocation34 + $0xe8] sm:$0xf]
    %v2460 = vld [vmem:[#allocation34 + $0xec] sm:$0xf]
    %v2461 = vld [vmem:[#allocation34 + $0xf0] sm:$0xf]
    %v2462 = vld [vmem:[#allocation34 + $0xf4] sm:$0xf]
    %v2463 = vld [vmem:[#allocation34 + $0xf8] sm:$0xf]
    %v2464 = vld [vmem:[#allocation34 + $0xfc] sm:$0xf]
    %v2465 = vld [vmem:[#allocation34 + $0x100] sm:$0xf]
    %v2466 = vld [vmem:[#allocation34 + $0x104] sm:$0xf]
    %v2467 = vld [vmem:[#allocation34 + $0x108] sm:$0xf]
    %v2468 = vld [vmem:[#allocation34 + $0x10c] sm:$0xf]
    %v2469 = vld [vmem:[#allocation34 + $0x110] sm:$0xf]
    %v2470 = vld [vmem:[#allocation34 + $0x114] sm:$0xf]
    %v2471 = vld [vmem:[#allocation34 + $0x118] sm:$0xf]
    %v2472 = vld [vmem:[#allocation34 + $0x11c] sm:$0xf]
    %v2473 = vld [vmem:[#allocation34 + $0x120] sm:$0xf]
    %v2474 = vld [vmem:[#allocation34 + $0x124] sm:$0xf]
    %v2475 = vld [vmem:[#allocation34 + $0x128] sm:$0xf]
    %v2476 = vld [vmem:[#allocation34 + $0x12c] sm:$0xf]
    %v2477 = vld [vmem:[#allocation34 + $0x130] sm:$0xf]
    %v2478 = vld [vmem:[#allocation34 + $0x134] sm:$0xf]
    %v2479 = vld [vmem:[#allocation34 + $0x138] sm:$0xf]
    %v2480 = vld [vmem:[#allocation34 + $0x13c] sm:$0xf]
    %v2481 = vld [vmem:[#allocation35] sm:$0xf]
    %v2482 = vld [vmem:[#allocation35 + $0x4] sm:$0xf]
    %v2483 = vld [vmem:[#allocation35 + $0x8] sm:$0xf]
    %v2484 = vld [vmem:[#allocation35 + $0xc] sm:$0xf]
    %v2485 = vld [vmem:[#allocation35 + $0x10] sm:$0xf]
    %v2486 = vld [vmem:[#allocation35 + $0x14] sm:$0xf]
    %v2487 = vld [vmem:[#allocation35 + $0x18] sm:$0xf]
    %v2488 = vld [vmem:[#allocation35 + $0x1c] sm:$0xf]
    %v2489 = vld [vmem:[#allocation35 + $0x20] sm:$0xf]
    %v2490 = vld [vmem:[#allocation35 + $0x24] sm:$0xf]
    %v2491 = vld [vmem:[#allocation35 + $0x28] sm:$0xf]
    %v2492 = vld [vmem:[#allocation35 + $0x2c] sm:$0xf]
    %v2493 = vld [vmem:[#allocation35 + $0x30] sm:$0xf]
    %v2494 = vld [vmem:[#allocation35 + $0x34] sm:$0xf]
    %v2495 = vld [vmem:[#allocation35 + $0x38] sm:$0xf]
    %v2496 = vld [vmem:[#allocation35 + $0x3c] sm:$0xf]
    %v2513 = vunpack.c.l.b16 %v2481
    %v2514 = vunpack.c.l.b16 %v2482
    %v2515 = vunpack.c.l.b16 %v2483
    %v2516 = vunpack.c.l.b16 %v2484
    %v2517 = vunpack.c.l.b16 %v2485
    %v2518 = vunpack.c.l.b16 %v2486
    %v2519 = vunpack.c.l.b16 %v2487
    %v2520 = vunpack.c.l.b16 %v2488
    %v2521 = vunpack.c.l.b16 %v2489
    %v2522 = vunpack.c.l.b16 %v2490
    %v2523 = vunpack.c.l.b16 %v2491
    %v2524 = vunpack.c.l.b16 %v2492
    %v2525 = vunpack.c.l.b16 %v2493
    %v2526 = vunpack.c.l.b16 %v2494
    %v2527 = vunpack.c.l.b16 %v2495
    %v2528 = vunpack.c.l.b16 %v2496
    %v2529 = vpack.c.b16 %v2514, %v2513
    %v2530 = vpack.c.b16 %v2516, %v2515
    %v2531 = vpack.c.b16 %v2518, %v2517
    %v2532 = vpack.c.b16 %v2520, %v2519
    %v2533 = vpack.c.b16 %v2522, %v2521
    %v2534 = vpack.c.b16 %v2524, %v2523
    %v2535 = vpack.c.b16 %v2526, %v2525
    %v2536 = vpack.c.b16 %v2528, %v2527
    %2545 = vmatpush.bf16.msra.mxu0 %v2536
    %2546 = vmatpush.bf16.msra.mxu0 %v2535
    %2547 = vmatpush.bf16.msra.mxu0 %v2534
    %2548 = vmatpush.bf16.msra.mxu0 %v2533
    %2549 = vmatpush.bf16.msra.mxu0 %v2532
    %2550 = vmatpush.bf16.msra.mxu0 %v2531
    %2551 = vmatpush.bf16.msra.mxu0 %v2530
    %2552 = vmatpush.bf16.msra.mxu0 %v2529
    %2553 = vmatmul.bf16.gmra.mxu0 %v2361
    %v2554 = vpop.f32.mrf.mxu0
    %v2555 = vadd.f32 0.0, %v2554
    %v2556 = vpop.f32.mrf.mxu0
    %v2557 = vadd.f32 0.0, %v2556
    %2558 = vdwg.mxu0
    %v2639 = vunpack.c.l.b16 %v2401
    %v2640 = vunpack.c.l.b16 %v2402
    %v2641 = vunpack.c.l.b16 %v2403
    %v2642 = vunpack.c.l.b16 %v2404
    %v2643 = vunpack.c.l.b16 %v2405
    %v2644 = vunpack.c.l.b16 %v2406
    %v2645 = vunpack.c.l.b16 %v2407
    %v2646 = vunpack.c.l.b16 %v2408
    %v2647 = vunpack.c.l.b16 %v2409
    %v2648 = vunpack.c.l.b16 %v2410
    %v2649 = vunpack.c.l.b16 %v2411
    %v2650 = vunpack.c.l.b16 %v2412
    %v2651 = vunpack.c.l.b16 %v2413
    %v2652 = vunpack.c.l.b16 %v2414
    %v2653 = vunpack.c.l.b16 %v2415
    %v2654 = vunpack.c.l.b16 %v2416
    %v2655 = vunpack.c.l.b16 %v2417
    %v2656 = vunpack.c.l.b16 %v2418
    %v2657 = vunpack.c.l.b16 %v2419
    %v2658 = vunpack.c.l.b16 %v2420
    %v2659 = vunpack.c.l.b16 %v2421
    %v2660 = vunpack.c.l.b16 %v2422
    %v2661 = vunpack.c.l.b16 %v2423
    %v2662 = vunpack.c.l.b16 %v2424
    %v2663 = vunpack.c.l.b16 %v2425
    %v2664 = vunpack.c.l.b16 %v2426
    %v2665 = vunpack.c.l.b16 %v2427
    %v2666 = vunpack.c.l.b16 %v2428
    %v2667 = vunpack.c.l.b16 %v2429
    %v2668 = vunpack.c.l.b16 %v2430
    %v2669 = vunpack.c.l.b16 %v2431
    %v2670 = vunpack.c.l.b16 %v2432
    %v2671 = vunpack.c.l.b16 %v2433
    %v2672 = vunpack.c.l.b16 %v2434
    %v2673 = vunpack.c.l.b16 %v2435
    %v2674 = vunpack.c.l.b16 %v2436
    %v2675 = vunpack.c.l.b16 %v2437
    %v2676 = vunpack.c.l.b16 %v2438
    %v2677 = vunpack.c.l.b16 %v2439
    %v2678 = vunpack.c.l.b16 %v2440
    %v2679 = vunpack.c.l.b16 %v2441
    %v2680 = vunpack.c.l.b16 %v2442
    %v2681 = vunpack.c.l.b16 %v2443
    %v2682 = vunpack.c.l.b16 %v2444
    %v2683 = vunpack.c.l.b16 %v2445
    %v2684 = vunpack.c.l.b16 %v2446
    %v2685 = vunpack.c.l.b16 %v2447
    %v2686 = vunpack.c.l.b16 %v2448
    %v2687 = vunpack.c.l.b16 %v2449
    %v2688 = vunpack.c.l.b16 %v2450
    %v2689 = vunpack.c.l.b16 %v2451
    %v2690 = vunpack.c.l.b16 %v2452
    %v2691 = vunpack.c.l.b16 %v2453
    %v2692 = vunpack.c.l.b16 %v2454
    %v2693 = vunpack.c.l.b16 %v2455
    %v2694 = vunpack.c.l.b16 %v2456
    %v2695 = vunpack.c.l.b16 %v2457
    %v2696 = vunpack.c.l.b16 %v2458
    %v2697 = vunpack.c.l.b16 %v2459
    %v2698 = vunpack.c.l.b16 %v2460
    %v2699 = vunpack.c.l.b16 %v2461
    %v2700 = vunpack.c.l.b16 %v2462
    %v2701 = vunpack.c.l.b16 %v2463
    %v2702 = vunpack.c.l.b16 %v2464
    %v2703 = vunpack.c.l.b16 %v2465
    %v2704 = vunpack.c.l.b16 %v2466
    %v2705 = vunpack.c.l.b16 %v2467
    %v2706 = vunpack.c.l.b16 %v2468
    %v2707 = vunpack.c.l.b16 %v2469
    %v2708 = vunpack.c.l.b16 %v2470
    %v2709 = vunpack.c.l.b16 %v2471
    %v2710 = vunpack.c.l.b16 %v2472
    %v2711 = vunpack.c.l.b16 %v2473
    %v2712 = vunpack.c.l.b16 %v2474
    %v2713 = vunpack.c.l.b16 %v2475
    %v2714 = vunpack.c.l.b16 %v2476
    %v2715 = vunpack.c.l.b16 %v2477
    %v2716 = vunpack.c.l.b16 %v2478
    %v2717 = vunpack.c.l.b16 %v2479
    %v2718 = vunpack.c.l.b16 %v2480
    %v2719 = vpack.c.b16 %v2640, %v2639
    %v2720 = vpack.c.b16 %v2642, %v2641
    %v2721 = vpack.c.b16 %v2644, %v2643
    %v2722 = vpack.c.b16 %v2646, %v2645
    %v2723 = vpack.c.b16 %v2648, %v2647
    %v2724 = vpack.c.b16 %v2650, %v2649
    %v2725 = vpack.c.b16 %v2652, %v2651
    %v2726 = vpack.c.b16 %v2654, %v2653
    %v2727 = vpack.c.b16 %v2656, %v2655
    %v2728 = vpack.c.b16 %v2658, %v2657
    %v2729 = vpack.c.b16 %v2660, %v2659
    %v2730 = vpack.c.b16 %v2662, %v2661
    %v2731 = vpack.c.b16 %v2664, %v2663
    %v2732 = vpack.c.b16 %v2666, %v2665
    %v2733 = vpack.c.b16 %v2668, %v2667
    %v2734 = vpack.c.b16 %v2670, %v2669
    %v2735 = vpack.c.b16 %v2672, %v2671
    %v2736 = vpack.c.b16 %v2674, %v2673
    %v2737 = vpack.c.b16 %v2676, %v2675
    %v2738 = vpack.c.b16 %v2678, %v2677
    %v2739 = vpack.c.b16 %v2680, %v2679
    %v2740 = vpack.c.b16 %v2682, %v2681
    %v2741 = vpack.c.b16 %v2684, %v2683
    %v2742 = vpack.c.b16 %v2686, %v2685
    %v2743 = vpack.c.b16 %v2688, %v2687
    %v2744 = vpack.c.b16 %v2690, %v2689
    %v2745 = vpack.c.b16 %v2692, %v2691
    %v2746 = vpack.c.b16 %v2694, %v2693
    %v2747 = vpack.c.b16 %v2696, %v2695
    %v2748 = vpack.c.b16 %v2698, %v2697
    %v2749 = vpack.c.b16 %v2700, %v2699
    %v2750 = vpack.c.b16 %v2702, %v2701
    %v2751 = vpack.c.b16 %v2704, %v2703
    %v2752 = vpack.c.b16 %v2706, %v2705
    %v2753 = vpack.c.b16 %v2708, %v2707
    %v2754 = vpack.c.b16 %v2710, %v2709
    %v2755 = vpack.c.b16 %v2712, %v2711
    %v2756 = vpack.c.b16 %v2714, %v2713
    %v2757 = vpack.c.b16 %v2716, %v2715
    %v2758 = vpack.c.b16 %v2718, %v2717
    %2799 = vmatpush.bf16.msra.mxu0 %v2726
    %2800 = vmatpush.bf16.msra.mxu0 %v2725
    %2801 = vmatpush.bf16.msra.mxu0 %v2724
    %2802 = vmatpush.bf16.msra.mxu0 %v2723
    %2803 = vmatpush.bf16.msra.mxu0 %v2722
    %2804 = vmatpush.bf16.msra.mxu0 %v2721
    %2805 = vmatpush.bf16.msra.mxu0 %v2720
    %2806 = vmatpush.bf16.msra.mxu0 %v2719
    %2807 = vmatmul.bf16.gmra.mxu0 %v2396
    %v2808 = vpop.f32.mrf.mxu0
    %v2809 = vadd.f32 %v2555, %v2808
    %v2810 = vpop.f32.mrf.mxu0
    %v2811 = vadd.f32 %v2557, %v2810
    %2812 = vdwg.mxu0
    %2813 = vmatpush.bf16.msra.mxu0 %v2734
    %2814 = vmatpush.bf16.msra.mxu0 %v2733
    %2815 = vmatpush.bf16.msra.mxu0 %v2732
    %2816 = vmatpush.bf16.msra.mxu0 %v2731
    %2817 = vmatpush.bf16.msra.mxu0 %v2730
    %2818 = vmatpush.bf16.msra.mxu0 %v2729
    %2819 = vmatpush.bf16.msra.mxu0 %v2728
    %2820 = vmatpush.bf16.msra.mxu0 %v2727
    %2821 = vmatmul.bf16.gmra.mxu0 %v2397
    %v2822 = vpop.f32.mrf.mxu0
    %v2823 = vadd.f32 %v2809, %v2822
    %v2824 = vpop.f32.mrf.mxu0
    %v2825 = vadd.f32 %v2811, %v2824
    %2826 = vdwg.mxu0
    %2827 = vmatpush.bf16.msra.mxu0 %v2742
    %2828 = vmatpush.bf16.msra.mxu0 %v2741
    %2829 = vmatpush.bf16.msra.mxu0 %v2740
    %2830 = vmatpush.bf16.msra.mxu0 %v2739
    %2831 = vmatpush.bf16.msra.mxu0 %v2738
    %2832 = vmatpush.bf16.msra.mxu0 %v2737
    %2833 = vmatpush.bf16.msra.mxu0 %v2736
    %2834 = vmatpush.bf16.msra.mxu0 %v2735
    %2835 = vmatmul.bf16.gmra.mxu0 %v2398
    %v2836 = vpop.f32.mrf.mxu0
    %v2837 = vadd.f32 %v2823, %v2836
    %v2838 = vpop.f32.mrf.mxu0
    %v2839 = vadd.f32 %v2825, %v2838
    %2840 = vdwg.mxu0
    %2841 = vmatpush.bf16.msra.mxu0 %v2750
    %2842 = vmatpush.bf16.msra.mxu0 %v2749
    %2843 = vmatpush.bf16.msra.mxu0 %v2748
    %2844 = vmatpush.bf16.msra.mxu0 %v2747
    %2845 = vmatpush.bf16.msra.mxu0 %v2746
    %2846 = vmatpush.bf16.msra.mxu0 %v2745
    %2847 = vmatpush.bf16.msra.mxu0 %v2744
    %2848 = vmatpush.bf16.msra.mxu0 %v2743
    %2849 = vmatmul.bf16.gmra.mxu0 %v2399
    %v2850 = vpop.f32.mrf.mxu0
    %v2851 = vadd.f32 %v2837, %v2850
    %v2852 = vpop.f32.mrf.mxu0
    %v2853 = vadd.f32 %v2839, %v2852
    %2854 = vdwg.mxu0
    %2855 = vmatpush.bf16.msra.mxu0 %v2758
    %2856 = vmatpush.bf16.msra.mxu0 %v2757
    %2857 = vmatpush.bf16.msra.mxu0 %v2756
    %2858 = vmatpush.bf16.msra.mxu0 %v2755
    %2859 = vmatpush.bf16.msra.mxu0 %v2754
    %2860 = vmatpush.bf16.msra.mxu0 %v2753
    %2861 = vmatpush.bf16.msra.mxu0 %v2752
    %2862 = vmatpush.bf16.msra.mxu0 %v2751
    %2863 = vmatmul.bf16.gmra.mxu0 %v2400
    %v2864 = vpop.f32.mrf.mxu0
    %v2865 = vadd.f32 %v2851, %v2864
    %v2866 = vpop.f32.mrf.mxu0
    %v2867 = vadd.f32 %v2853, %v2866
    %2868 = vdwg.mxu0
    %v2869 = vld [vmem:[%s57] sm:$0x1]
    %v2871 = vperm.slane %v2869, 0
    %v2873 = vadd.f32 %v2865, %v2871
    %v2874 = vadd.f32 %v2867, %v2871
    %vm2875 = vcmp.ge.f32.partialorder %v2873, 0.0
    %vm2876 = vcmp.ge.f32.partialorder %v2874, 0.0
    %v2877 = vmul.f32 %v2873, 0.01
    %v2878 = vmul.f32 %v2874, 0.01
    %v2879 = vsel %vm2875, %v2873, %v2877
    %v2880 = vsel %vm2876, %v2874, %v2878
    %v2881 = vld [vmem:[#allocation37] sm:$0xf]
    %v2882 = vld [vmem:[#allocation37 + $0x4] sm:$0xf]
    %v2883 = vld [vmem:[#allocation37 + $0x8] sm:$0xf]
    %v2884 = vld [vmem:[#allocation37 + $0xc] sm:$0xf]
    %v2885 = vld [vmem:[#allocation37 + $0x10] sm:$0xf]
    %v2886 = vld [vmem:[#allocation37 + $0x14] sm:$0xf]
    %v2887 = vld [vmem:[#allocation37 + $0x18] sm:$0xf]
    %v2888 = vld [vmem:[#allocation37 + $0x1c] sm:$0xf]
    %v2889 = vld [vmem:[#allocation37 + $0x20] sm:$0xf]
    %v2890 = vld [vmem:[#allocation37 + $0x24] sm:$0xf]
    %v2891 = vld [vmem:[#allocation37 + $0x28] sm:$0xf]
    %v2892 = vld [vmem:[#allocation37 + $0x2c] sm:$0xf]
    %v2893 = vld [vmem:[#allocation37 + $0x30] sm:$0xf]
    %v2894 = vld [vmem:[#allocation37 + $0x34] sm:$0xf]
    %v2895 = vld [vmem:[#allocation37 + $0x38] sm:$0xf]
    %v2896 = vld [vmem:[#allocation37 + $0x3c] sm:$0xf]
    %v2897 = vpack.c.bf16 %v2197, %v2196
    %v2898 = vld [vmem:[#allocation38] sm:$0xf]
    %v2899 = vld [vmem:[#allocation38 + $0x4] sm:$0xf]
    %v2900 = vld [vmem:[#allocation38 + $0x8] sm:$0xf]
    %v2901 = vld [vmem:[#allocation38 + $0xc] sm:$0xf]
    %v2902 = vld [vmem:[#allocation38 + $0x10] sm:$0xf]
    %v2903 = vld [vmem:[#allocation38 + $0x14] sm:$0xf]
    %v2904 = vld [vmem:[#allocation38 + $0x18] sm:$0xf]
    %v2905 = vld [vmem:[#allocation38 + $0x1c] sm:$0xf]
    %v2906 = vld [vmem:[#allocation38 + $0x20] sm:$0xf]
    %v2907 = vld [vmem:[#allocation38 + $0x24] sm:$0xf]
    %v2908 = vld [vmem:[#allocation38 + $0x28] sm:$0xf]
    %v2909 = vld [vmem:[#allocation38 + $0x2c] sm:$0xf]
    %v2910 = vld [vmem:[#allocation38 + $0x30] sm:$0xf]
    %v2911 = vld [vmem:[#allocation38 + $0x34] sm:$0xf]
    %v2912 = vld [vmem:[#allocation38 + $0x38] sm:$0xf]
    %v2913 = vld [vmem:[#allocation38 + $0x3c] sm:$0xf]
    %v2930 = vunpack.c.l.b16 %v2898
    %v2931 = vunpack.c.l.b16 %v2899
    %v2932 = vunpack.c.l.b16 %v2900
    %v2933 = vunpack.c.l.b16 %v2901
    %v2934 = vunpack.c.l.b16 %v2902
    %v2935 = vunpack.c.l.b16 %v2903
    %v2936 = vunpack.c.l.b16 %v2904
    %v2937 = vunpack.c.l.b16 %v2905
    %v2938 = vunpack.c.l.b16 %v2906
    %v2939 = vunpack.c.l.b16 %v2907
    %v2940 = vunpack.c.l.b16 %v2908
    %v2941 = vunpack.c.l.b16 %v2909
    %v2942 = vunpack.c.l.b16 %v2910
    %v2943 = vunpack.c.l.b16 %v2911
    %v2944 = vunpack.c.l.b16 %v2912
    %v2945 = vunpack.c.l.b16 %v2913
    %v2946 = vpack.c.b16 %v2931, %v2930
    %v2947 = vpack.c.b16 %v2933, %v2932
    %v2948 = vpack.c.b16 %v2935, %v2934
    %v2949 = vpack.c.b16 %v2937, %v2936
    %v2950 = vpack.c.b16 %v2939, %v2938
    %v2951 = vpack.c.b16 %v2941, %v2940
    %v2952 = vpack.c.b16 %v2943, %v2942
    %v2953 = vpack.c.b16 %v2945, %v2944
    %2962 = vmatpush.bf16.msra.mxu0 %v2953
    %2963 = vmatpush.bf16.msra.mxu0 %v2952
    %2964 = vmatpush.bf16.msra.mxu0 %v2951
    %2965 = vmatpush.bf16.msra.mxu0 %v2950
    %2966 = vmatpush.bf16.msra.mxu0 %v2949
    %2967 = vmatpush.bf16.msra.mxu0 %v2948
    %2968 = vmatpush.bf16.msra.mxu0 %v2947
    %2969 = vmatpush.bf16.msra.mxu0 %v2946
    %2970 = vmatmul.bf16.gmra.mxu0 %v2897
    %v2971 = vpop.f32.mrf.mxu0
    %v2972 = vadd.f32 0.0, %v2971
    %v2973 = vpop.f32.mrf.mxu0
    %v2974 = vadd.f32 0.0, %v2973
    %2975 = vdwg.mxu0
    %v2992 = vunpack.c.l.b16 %v2881
    %v2993 = vunpack.c.l.b16 %v2882
    %v2994 = vunpack.c.l.b16 %v2883
    %v2995 = vunpack.c.l.b16 %v2884
    %v2996 = vunpack.c.l.b16 %v2885
    %v2997 = vunpack.c.l.b16 %v2886
    %v2998 = vunpack.c.l.b16 %v2887
    %v2999 = vunpack.c.l.b16 %v2888
    %v3000 = vunpack.c.l.b16 %v2889
    %v3001 = vunpack.c.l.b16 %v2890
    %v3002 = vunpack.c.l.b16 %v2891
    %v3003 = vunpack.c.l.b16 %v2892
    %v3004 = vunpack.c.l.b16 %v2893
    %v3005 = vunpack.c.l.b16 %v2894
    %v3006 = vunpack.c.l.b16 %v2895
    %v3007 = vunpack.c.l.b16 %v2896
    %v3008 = vpack.c.b16 %v2993, %v2992
    %v3009 = vpack.c.b16 %v2995, %v2994
    %v3010 = vpack.c.b16 %v2997, %v2996
    %v3011 = vpack.c.b16 %v2999, %v2998
    %v3012 = vpack.c.b16 %v3001, %v3000
    %v3013 = vpack.c.b16 %v3003, %v3002
    %v3014 = vpack.c.b16 %v3005, %v3004
    %v3015 = vpack.c.b16 %v3007, %v3006
    %3024 = vmatpush.bf16.msra.mxu0 %v3015
    %3025 = vmatpush.bf16.msra.mxu0 %v3014
    %3026 = vmatpush.bf16.msra.mxu0 %v3013
    %3027 = vmatpush.bf16.msra.mxu0 %v3012
    %3028 = vmatpush.bf16.msra.mxu0 %v3011
    %3029 = vmatpush.bf16.msra.mxu0 %v3010
    %3030 = vmatpush.bf16.msra.mxu0 %v3009
    %3031 = vmatpush.bf16.msra.mxu0 %v3008
    %3032 = vmatmul.bf16.gmra.mxu0 %v1152
    %v3033 = vpop.f32.mrf.mxu0
    %v3034 = vadd.f32 %v2972, %v3033
    %v3035 = vpop.f32.mrf.mxu0
    %v3036 = vadd.f32 %v2974, %v3035
    %3037 = vdwg.mxu0
    %v3038 = vld [vmem:[%s63] sm:$0x1]
    %v3040 = vperm.slane %v3038, 0
    %v3042 = vadd.f32 %v3034, %v3040
    %v3043 = vadd.f32 %v3036, %v3040
    %vm3044 = vcmp.ge.f32.partialorder %v3042, 0.0
    %vm3045 = vcmp.ge.f32.partialorder %v3043, 0.0
    %v3046 = vmul.f32 %v3042, 0.01
    %v3047 = vmul.f32 %v3043, 0.01
    %v3048 = vsel %vm3044, %v3042, %v3046
    %v3049 = vsel %vm3045, %v3043, %v3047
    %v3050 = vld [vmem:[#allocation40] sm:$0xf]
    %v3051 = vld [vmem:[#allocation40 + $0x4] sm:$0xf]
    %v3052 = vld [vmem:[#allocation40 + $0x8] sm:$0xf]
    %v3053 = vld [vmem:[#allocation40 + $0xc] sm:$0xf]
    %v3054 = vld [vmem:[#allocation40 + $0x10] sm:$0xf]
    %v3055 = vld [vmem:[#allocation40 + $0x14] sm:$0xf]
    %v3056 = vld [vmem:[#allocation40 + $0x18] sm:$0xf]
    %v3057 = vld [vmem:[#allocation40 + $0x1c] sm:$0xf]
    %v3058 = vld [vmem:[#allocation40 + $0x20] sm:$0xf]
    %v3059 = vld [vmem:[#allocation40 + $0x24] sm:$0xf]
    %v3060 = vld [vmem:[#allocation40 + $0x28] sm:$0xf]
    %v3061 = vld [vmem:[#allocation40 + $0x2c] sm:$0xf]
    %v3062 = vld [vmem:[#allocation40 + $0x30] sm:$0xf]
    %v3063 = vld [vmem:[#allocation40 + $0x34] sm:$0xf]
    %v3064 = vld [vmem:[#allocation40 + $0x38] sm:$0xf]
    %v3065 = vld [vmem:[#allocation40 + $0x3c] sm:$0xf]
    %v3066 = vpack.c.bf16 %v2360, %v2360
    %v3067 = vld [vmem:[#allocation41] sm:$0xf]
    %v3068 = vld [vmem:[#allocation41 + $0x4] sm:$0xf]
    %v3069 = vld [vmem:[#allocation41 + $0x8] sm:$0xf]
    %v3070 = vld [vmem:[#allocation41 + $0xc] sm:$0xf]
    %v3071 = vld [vmem:[#allocation41 + $0x10] sm:$0xf]
    %v3072 = vld [vmem:[#allocation41 + $0x14] sm:$0xf]
    %v3073 = vld [vmem:[#allocation41 + $0x18] sm:$0xf]
    %v3074 = vld [vmem:[#allocation41 + $0x1c] sm:$0xf]
    %v3075 = vld [vmem:[#allocation41 + $0x20] sm:$0xf]
    %v3076 = vld [vmem:[#allocation41 + $0x24] sm:$0xf]
    %v3077 = vld [vmem:[#allocation41 + $0x28] sm:$0xf]
    %v3078 = vld [vmem:[#allocation41 + $0x2c] sm:$0xf]
    %v3079 = vld [vmem:[#allocation41 + $0x30] sm:$0xf]
    %v3080 = vld [vmem:[#allocation41 + $0x34] sm:$0xf]
    %v3081 = vld [vmem:[#allocation41 + $0x38] sm:$0xf]
    %v3082 = vld [vmem:[#allocation41 + $0x3c] sm:$0xf]
    %v3099 = vunpack.c.l.b16 %v3067
    %v3100 = vunpack.c.l.b16 %v3068
    %v3101 = vunpack.c.l.b16 %v3069
    %v3102 = vunpack.c.l.b16 %v3070
    %v3103 = vunpack.c.l.b16 %v3071
    %v3104 = vunpack.c.l.b16 %v3072
    %v3105 = vunpack.c.l.b16 %v3073
    %v3106 = vunpack.c.l.b16 %v3074
    %v3107 = vunpack.c.l.b16 %v3075
    %v3108 = vunpack.c.l.b16 %v3076
    %v3109 = vunpack.c.l.b16 %v3077
    %v3110 = vunpack.c.l.b16 %v3078
    %v3111 = vunpack.c.l.b16 %v3079
    %v3112 = vunpack.c.l.b16 %v3080
    %v3113 = vunpack.c.l.b16 %v3081
    %v3114 = vunpack.c.l.b16 %v3082
    %v3115 = vpack.c.b16 %v3100, %v3099
    %v3116 = vpack.c.b16 %v3102, %v3101
    %v3117 = vpack.c.b16 %v3104, %v3103
    %v3118 = vpack.c.b16 %v3106, %v3105
    %v3119 = vpack.c.b16 %v3108, %v3107
    %v3120 = vpack.c.b16 %v3110, %v3109
    %v3121 = vpack.c.b16 %v3112, %v3111
    %v3122 = vpack.c.b16 %v3114, %v3113
    %3131 = vmatpush.bf16.msra.mxu0 %v3122
    %3132 = vmatpush.bf16.msra.mxu0 %v3121
    %3133 = vmatpush.bf16.msra.mxu0 %v3120
    %3134 = vmatpush.bf16.msra.mxu0 %v3119
    %3135 = vmatpush.bf16.msra.mxu0 %v3118
    %3136 = vmatpush.bf16.msra.mxu0 %v3117
    %3137 = vmatpush.bf16.msra.mxu0 %v3116
    %3138 = vmatpush.bf16.msra.mxu0 %v3115
    %3139 = vmatmul.bf16.gmra.mxu0 %v3066
    %v3140 = vpop.f32.mrf.mxu0
    %v3141 = vadd.f32 0.0, %v3140
    %v3142 = vpop.f32.mrf.mxu0
    %3143 = vdwg.mxu0
    %v3160 = vunpack.c.l.b16 %v3050
    %v3161 = vunpack.c.l.b16 %v3051
    %v3162 = vunpack.c.l.b16 %v3052
    %v3163 = vunpack.c.l.b16 %v3053
    %v3164 = vunpack.c.l.b16 %v3054
    %v3165 = vunpack.c.l.b16 %v3055
    %v3166 = vunpack.c.l.b16 %v3056
    %v3167 = vunpack.c.l.b16 %v3057
    %v3168 = vunpack.c.l.b16 %v3058
    %v3169 = vunpack.c.l.b16 %v3059
    %v3170 = vunpack.c.l.b16 %v3060
    %v3171 = vunpack.c.l.b16 %v3061
    %v3172 = vunpack.c.l.b16 %v3062
    %v3173 = vunpack.c.l.b16 %v3063
    %v3174 = vunpack.c.l.b16 %v3064
    %v3175 = vunpack.c.l.b16 %v3065
    %v3176 = vpack.c.b16 %v3161, %v3160
    %v3177 = vpack.c.b16 %v3163, %v3162
    %v3178 = vpack.c.b16 %v3165, %v3164
    %v3179 = vpack.c.b16 %v3167, %v3166
    %v3180 = vpack.c.b16 %v3169, %v3168
    %v3181 = vpack.c.b16 %v3171, %v3170
    %v3182 = vpack.c.b16 %v3173, %v3172
    %v3183 = vpack.c.b16 %v3175, %v3174
    %3192 = vmatpush.bf16.msra.mxu0 %v3183
    %3193 = vmatpush.bf16.msra.mxu0 %v3182
    %3194 = vmatpush.bf16.msra.mxu0 %v3181
    %3195 = vmatpush.bf16.msra.mxu0 %v3180
    %3196 = vmatpush.bf16.msra.mxu0 %v3179
    %3197 = vmatpush.bf16.msra.mxu0 %v3178
    %3198 = vmatpush.bf16.msra.mxu0 %v3177
    %3199 = vmatpush.bf16.msra.mxu0 %v3176
    %3200 = vmatmul.bf16.gmra.mxu0 %v1345
    %v3201 = vpop.f32.mrf.mxu0
    %v3202 = vadd.f32 %v3141, %v3201
    %v3203 = vpop.f32.mrf.mxu0
    %3204 = vdwg.mxu0
    %v3205 = vld [vmem:[%s69] sm:$0x1]
    %v3207 = vperm.slane %v3205, 0
    %v3209 = vadd.f32 %v3202, %v3207
    %vm3210 = vcmp.ge.f32.partialorder %v3209, 0.0
    %v3211 = vmul.f32 %v3209, 0.01
    %v3212 = vsel %vm3210, %v3209, %v3211
    %3213 = vst [vmem:[#allocation43] sm:$0xff] %v2879
    %3214 = vst [vmem:[#allocation43 + $0x8] sm:$0xff] %v2880
    %3215 = vst [vmem:[#allocation44] sm:$0xff] %v3048
    %3216 = vst [vmem:[#allocation44 + $0x8] sm:$0xff] %v3049
    %3217 = vst [vmem:[#allocation46] sm:$0xff] %v3212
    // Predicated region
    $region246: #{tpu_custom_call.1} parent=1 // pred_check
      _
    $region247: #{tpu_custom_call.1} parent=1 // pred_check_branch
      %3219 = sbr.rel (0) target = $region249
    $region248: #{tpu_custom_call.1} parent=1 // pred_region
      %3221 = vsyncadd [#allocation4], 0
      %s3222 = sshll.u32 [#allocation43], 4
      %s3223 = int_to_ptr.vmem [resolvable:$true] %s3222
      %s3224 = sshll.u32 %s71, 4
      %s3225 = int_to_ptr.hbm [resolvable:$true] %s3224
      %3230 = dma.vmem_to_hbm [thread:$0]  %s3223, 256, %s3225, [#allocation4], 128, 128, 8
    $region249: #{tpu_custom_call.1} parent=1 // pred_fallthru
      _
    // Predicated region
    $region250: #{tpu_custom_call.1} parent=1 // pred_check
      _
    $region251: #{tpu_custom_call.1} parent=1 // pred_check_branch
      %3232 = sbr.rel (0) target = $region253
    $region252: #{tpu_custom_call.1} parent=1 // pred_region
      %3234 = vsyncadd [#allocation45], 0
      %s3235 = sshll.u32 [#allocation44], 4
      %s3236 = int_to_ptr.vmem [resolvable:$true] %s3235
      %s3237 = sshll.u32 %s73, 4
      %s3238 = int_to_ptr.hbm [resolvable:$true] %s3237
      %3243 = dma.vmem_to_hbm [thread:$0]  %s3236, 256, %s3238, [#allocation45], 128, 128, 8
    $region253: #{tpu_custom_call.1} parent=1 // pred_fallthru
      _
    // Predicated region
    $region254: #{tpu_custom_call.1} parent=1 // pred_check
      _
    $region255: #{tpu_custom_call.1} parent=1 // pred_check_branch
      %3245 = sbr.rel (0) target = $region257
    $region256: #{tpu_custom_call.1} parent=1 // pred_region
      %3247 = vsyncadd [#allocation45], 0
      %s3249 = sshll.u32 [#allocation46], 4
      %s3250 = int_to_ptr.vmem [resolvable:$true] %s3249
      %s3251 = sshll.u32 %s75, 4
      %s3252 = int_to_ptr.hbm [resolvable:$true] %s3251
      %3254 = dma.vmem_to_hbm [thread:$0]  %s3250, 128, %s3252, [#allocation45]
    $region257: #{tpu_custom_call.1} parent=1 // pred_fallthru
      _
    // Predicated region
    $region258: #{tpu_custom_call.1} parent=1 // pred_check
      _
    $region259: #{tpu_custom_call.1} parent=1 // pred_check_branch
      %3256 = sbr.rel (0) target = $region261
    $region260: #{tpu_custom_call.1} parent=1 // pred_region
      %3258 = dma.done [#allocation4], 256
    $region261: #{tpu_custom_call.1} parent=1 // pred_fallthru
      _
    // Predicated region
    $region262: #{tpu_custom_call.1} parent=1 // pred_check
      _
    $region263: #{tpu_custom_call.1} parent=1 // pred_check_branch
      %3260 = sbr.rel (0) target = $region265
    $region264: #{tpu_custom_call.1} parent=1 // pred_region
      %3262 = dma.done [#allocation45], 256
    $region265: #{tpu_custom_call.1} parent=1 // pred_fallthru
      _
    // Predicated region
    $region266: #{tpu_custom_call.1} parent=1 // pred_check
      _
    $region267: #{tpu_custom_call.1} parent=1 // pred_check_branch
      %3264 = sbr.rel (0) target = $region269
    $region268: #{tpu_custom_call.1} parent=1 // pred_region
      %3266 = dma.done [#allocation45], 128
    $region269: #{tpu_custom_call.1} parent=1 // pred_fallthru
      _
    %3267 = vsyncpa [#allocation3], 1
    %3268 = vsyncpa [#allocation6], 1
    %3269 = vsyncpa [#allocation9], 1
    %3270 = vsyncpa [#allocation12], 1
    %3271 = vsyncpa [#allocation15], 1
    %3272 = vsyncpa [#allocation18], 1
    %3273 = vsyncpa [#allocation21], 1
    %3274 = vsyncpa [#allocation24], 1
    %3275 = vsyncpa [#allocation27], 1
    %3276 = vsyncpa [#allocation30], 1
    %3277 = vsyncpa [#allocation33], 1
    %3278 = vsyncpa [#allocation36], 1
    %3279 = vsyncpa [#allocation39], 1
    %3280 = vsyncpa [#allocation42], 1
    %3281 = vsyncpa [#allocation4], 1
    %3282 = vsyncpa [#allocation45], 1

</llo_original>
